<compile_context>
chip_gen: v7x
topology: tpu7x:2x2x1
jax: 0.10.0
libtpu: 0.0.40
codegen_flags: <defaults>
</compile_context>

<pallas_src>
import jax
import jax.numpy as jnp
from jax import lax
from jax.experimental import pallas as pl
from jax.experimental.pallas import tpu as pltpu

# ----------------------------- config -----------------------------
INPUT_DIM = 16
OUTPUT_DIM = 4
OUT_PAD = 128            # lane-dense padded output width
HIDDEN_DIM = 32
NUM_HEADS = 4
HEAD_DIM = HIDDEN_DIM // NUM_HEADS
FFN_DIM = 2048           # nn.TransformerEncoderLayer default dim_feedforward
LN_EPS = 1e-5
BATCH = 2
SEQ = 8
BS = BATCH * SEQ         # batch folded into rows


# ----------------------------- kernel -----------------------------
def graph_transformer_kernel(
    x_ref,                        # (BS, D_in)            f32
    mask_ref,                     # (BS, BS)              f32 additive mask
    w_in_ref, b_in_ref,           # (D_in, H), (1, H)     f32
    wq_ref, wk_ref, wv_ref,       # (NH, H, HD)           f32 (wq pre-scaled)
    bq_ref, bk_ref, bv_ref,       # (NH, 1, HD)           f32 (bq pre-scaled)
    w_o_ref, b_o_ref,             # (H, H), (1, H)        f32
    ln1_w_ref, ln1_b_ref,         # (1, H)                f32
    w1_ref, b1_ref,               # (H, FF) bf16, (1, FF) f32
    w2_ref, b2_ref,               # (FF, H) bf16, (1, H)  f32
    ln2_w_ref, ln2_b_ref,         # (1, H)                f32
    w_out_ref, b_out_ref,         # (H, OUT_PAD), (1, OUT_PAD) f32
    o_ref,                        # (BS, OUT_PAD)         f32
):
    x = x_ref[...]                                                   # (BS, D_in)

    # fc_in
    h = jnp.dot(x, w_in_ref[...], preferred_element_type=jnp.float32) + b_in_ref[...]

    mask = mask_ref[...]          # 0 for same-batch pairs, -1e30 for cross-batch

    # ---- multi-head self-attention (per-head weights, no lane slicing) ----
    attn = jnp.zeros((BS, HIDDEN_DIM), jnp.float32)
    for hh in range(NUM_HEADS):                       # static unroll over heads
        q_h = jnp.dot(h, wq_ref[hh], preferred_element_type=jnp.float32) + bq_ref[hh]
        k_h = jnp.dot(h, wk_ref[hh], preferred_element_type=jnp.float32) + bk_ref[hh]
        v_h = jnp.dot(h, wv_ref[hh], preferred_element_type=jnp.float32) + bv_ref[hh]

        # contract last axes of both operands -> no k.T transpose; scale folded
        # into q weights in the wrapper; mask is additive.
        scores = lax.dot_general(
            q_h, k_h,
            dimension_numbers=(((1,), (1,)), ((), ())),
            preferred_element_type=jnp.float32) + mask                # (BS, BS)
        scores = scores - jnp.max(scores, axis=-1, keepdims=True)
        p = jnp.exp(scores)
        p = p * pl.reciprocal(jnp.sum(p, axis=-1, keepdims=True), approx=True)

        ctx_h = jnp.dot(p, v_h, preferred_element_type=jnp.float32)   # (BS, HD)
        # accumulate through sublane-row slice of w_o (HEAD_DIM=8 is sublane-aligned)
        attn = attn + jnp.dot(
            ctx_h, w_o_ref[hh * HEAD_DIM:(hh + 1) * HEAD_DIM, :],
            preferred_element_type=jnp.float32)
    attn = attn + b_o_ref[...]

    # residual + LayerNorm1  (dropout1 is identity in eval)
    r1 = h + attn
    mu1 = jnp.mean(r1, axis=-1, keepdims=True)
    var1 = jnp.mean((r1 - mu1) ** 2, axis=-1, keepdims=True)
    n1 = (r1 - mu1) * lax.rsqrt(var1 + LN_EPS) * ln1_w_ref[...] + ln1_b_ref[...]

    # feed-forward (relu); bf16 weights/activations, f32 accumulation
    f = jnp.dot(n1.astype(jnp.bfloat16), w1_ref[...],
                preferred_element_type=jnp.float32) + b1_ref[...]
    f = jnp.maximum(f, 0.0)
    f = jnp.dot(f.astype(jnp.bfloat16), w2_ref[...],
                preferred_element_type=jnp.float32) + b2_ref[...]

    # residual + LayerNorm2
    r2 = n1 + f
    mu2 = jnp.mean(r2, axis=-1, keepdims=True)
    var2 = jnp.mean((r2 - mu2) ** 2, axis=-1, keepdims=True)
    n2 = (r2 - mu2) * lax.rsqrt(var2 + LN_EPS) * ln2_w_ref[...] + ln2_b_ref[...]

    # fc_out (padded to OUT_PAD lanes -> lane-dense store)
    o_ref[...] = jnp.dot(n2, w_out_ref[...],
                         preferred_element_type=jnp.float32) + b_out_ref[...]


# ----------------------------- wrapper -----------------------------
def graph_transformer(x, params):
    B, S, _ = x.shape
    assert (B, S) == (BATCH, SEQ)
    x2 = x.reshape(B * S, INPUT_DIM)

    # pre-split q/k/v weights/biases per head (avoids in-kernel lane slicing)
    wqkv = params["w_qkv_T"]                  # (H, 3H)
    bqkv = params["b_qkv"]                    # (1, 3H)

    def split_w(w):                           # (H, H) -> (NH, H, HD)
        return w.reshape(HIDDEN_DIM, NUM_HEADS, HEAD_DIM).transpose(1, 0, 2)

    def split_b(b):                           # (1, H) -> (NH, 1, HD)
        return b.reshape(NUM_HEADS, HEAD_DIM)[:, None, :]

    # fold the 1/sqrt(head_dim) attention scale into the q projection
    scale = 1.0 / jnp.sqrt(jnp.float32(HEAD_DIM))
    wq = split_w(wqkv[:, 0 * HIDDEN_DIM:1 * HIDDEN_DIM]) * scale
    wk = split_w(wqkv[:, 1 * HIDDEN_DIM:2 * HIDDEN_DIM])
    wv = split_w(wqkv[:, 2 * HIDDEN_DIM:3 * HIDDEN_DIM])
    bq = split_b(bqkv[:, 0 * HIDDEN_DIM:1 * HIDDEN_DIM]) * scale
    bk = split_b(bqkv[:, 1 * HIDDEN_DIM:2 * HIDDEN_DIM])
    bv = split_b(bqkv[:, 2 * HIDDEN_DIM:3 * HIDDEN_DIM])

    # additive block-diagonal mask: row i may only attend to same-batch rows
    row_b = jnp.arange(BS) // SEQ
    allowed = row_b[:, None] == row_b[None, :]
    mask = jnp.where(allowed, 0.0, -1e30).astype(jnp.float32)        # (BS, BS)

    # FFN weights in bf16 (f32 accumulation in kernel)
    w1 = params["w1_T"].astype(jnp.bfloat16)
    w2 = params["w2_T"].astype(jnp.bfloat16)

    # pad fc_out to 128 lanes -> lane-dense output store
    w_out = jnp.zeros((HIDDEN_DIM, OUT_PAD), jnp.float32)
    w_out = w_out.at[:, :OUTPUT_DIM].set(params["w_out_T"])
    b_out = jnp.zeros((1, OUT_PAD), jnp.float32)
    b_out = b_out.at[:, :OUTPUT_DIM].set(params["b_out"])

    args = [
        x2, mask,
        params["w_in_T"], params["b_in"],
        wq, wk, wv, bq, bk, bv,
        params["w_o_T"], params["b_o"],
        params["ln1_w"], params["ln1_b"],
        w1, params["b1"], w2, params["b2"],
        params["ln2_w"], params["ln2_b"],
        w_out, b_out,
    ]

    def full_spec(arr):
        nd = arr.ndim
        return pl.BlockSpec(arr.shape, lambda i, _nd=nd: (0,) * _nd)

    in_specs = [full_spec(a) for a in args]

    # advisory cost estimate (tiny kernel; keep XLA from over-serializing around it)
    bytes_accessed = int(sum(int(a.size) * a.dtype.itemsize for a in args)
                         + BS * OUT_PAD * 4)
    flops = int(
        2 * BS * (INPUT_DIM * HIDDEN_DIM
                  + 3 * HIDDEN_DIM * HIDDEN_DIM
                  + HIDDEN_DIM * HIDDEN_DIM
                  + 2 * HIDDEN_DIM * FFN_DIM
                  + HIDDEN_DIM * OUT_PAD)
        + 4 * NUM_HEADS * BS * BS * HEAD_DIM)
    transcendentals = int(NUM_HEADS * BS * (BS + 1))

    out = pl.pallas_call(
        graph_transformer_kernel,
        out_shape=jax.ShapeDtypeStruct((BS, OUT_PAD), jnp.float32),
        grid_spec=pltpu.PrefetchScalarGridSpec(
            num_scalar_prefetch=0,
            grid=(1,),                     # single step: batch folded into M
            in_specs=in_specs,
            out_specs=pl.BlockSpec((BS, OUT_PAD), lambda i: (0, 0)),
        ),
        compiler_params=pltpu.CompilerParams(
            dimension_semantics=("arbitrary",),
        ),
        cost_estimate=pl.CostEstimate(
            flops=flops,
            transcendentals=transcendentals,
            bytes_accessed=bytes_accessed),
    )(*args)

    return out[:, :OUTPUT_DIM].reshape(B, S, OUTPUT_DIM)


# ----------------------------- pure-JAX reference -----------------------------
def reference(x, params):
    B, S, _ = x.shape
    h = x @ params["w_in_T"] + params["b_in"]                         # (B,S,H)
    qkv = h @ params["w_qkv_T"] + params["b_qkv"]                     # (B,S,3H)
    q, k, v = jnp.split(qkv, 3, axis=-1)

    def heads(t):                                                     # (B,S,H)->(B,NH,S,HD)
        return t.reshape(B, S, NUM_HEADS, HEAD_DIM).transpose(0, 2, 1, 3)

    qh, kh, vh = heads(q), heads(k), heads(v)
    scores = jnp.einsum("bhqd,bhkd->bhqk", qh, kh) / jnp.sqrt(jnp.float32(HEAD_DIM))
    p = jax.nn.softmax(scores, axis=-1)
    ctx = jnp.einsum("bhqk,bhkd->bhqd", p, vh).transpose(0, 2, 1, 3).reshape(B, S, HIDDEN_DIM)
    attn = ctx @ params["w_o_T"] + params["b_o"]

    r1 = h + attn
    mu1 = jnp.mean(r1, axis=-1, keepdims=True)
    var1 = jnp.mean((r1 - mu1) ** 2, axis=-1, keepdims=True)
    n1 = (r1 - mu1) * lax.rsqrt(var1 + LN_EPS) * params["ln1_w"] + params["ln1_b"]

    f = jnp.maximum(n1 @ params["w1_T"] + params["b1"], 0.0)
    f = f @ params["w2_T"] + params["b2"]

    r2 = n1 + f
    mu2 = jnp.mean(r2, axis=-1, keepdims=True)
    var2 = jnp.mean((r2 - mu2) ** 2, axis=-1, keepdims=True)
    n2 = (r2 - mu2) * lax.rsqrt(var2 + LN_EPS) * params["ln2_w"] + params["ln2_b"]

    return n2 @ params["w_out_T"] + params["b_out"]


# ----------------------------- params -----------------------------
def init_params(key):
    ks = jax.random.split(key, 8)
    s = 0.02

    def norm(k, shape):
        return (s * jax.random.normal(k, shape)).astype(jnp.float32)

    return {
        "w_in_T": norm(ks[0], (INPUT_DIM, HIDDEN_DIM)),
        "b_in": jnp.zeros((1, HIDDEN_DIM), jnp.float32),
        "w_qkv_T": norm(ks[1], (HIDDEN_DIM, 3 * HIDDEN_DIM)),
        "b_qkv": jnp.zeros((1, 3 * HIDDEN_DIM), jnp.float32),   # PyTorch zero-inits in_proj_bias
        "w_o_T": norm(ks[3], (HIDDEN_DIM, HIDDEN_DIM)),
        "b_o": jnp.zeros((1, HIDDEN_DIM), jnp.float32),
        "ln1_w": jnp.ones((1, HIDDEN_DIM), jnp.float32),
        "ln1_b": jnp.zeros((1, HIDDEN_DIM), jnp.float32),
        "w1_T": norm(ks[4], (HIDDEN_DIM, FFN_DIM)),
        "b1": jnp.zeros((1, FFN_DIM), jnp.float32),
        "w2_T": norm(ks[5], (FFN_DIM, HIDDEN_DIM)),
        "b2": jnp.zeros((1, HIDDEN_DIM), jnp.float32),
        "ln2_w": jnp.ones((1, HIDDEN_DIM), jnp.float32),
        "ln2_b": jnp.zeros((1, HIDDEN_DIM), jnp.float32),
        "w_out_T": norm(ks[6], (HIDDEN_DIM, OUTPUT_DIM)),
        "b_out": norm(ks[7], (1, OUTPUT_DIM)),
    }


# ----------------------------- main -----------------------------
if __name__ == "__main__":
    key = jax.random.PRNGKey(0)
    kx, kp = jax.random.split(key)
    x = jax.random.normal(kx, (BATCH, SEQ, INPUT_DIM), dtype=jnp.float32)
    params = init_params(kp)

    out = graph_transformer(x, params)
    out = jax.block_until_ready(out)
    assert out.shape == (BATCH, SEQ, OUTPUT_DIM)
    assert jnp.all(jnp.isfinite(out))

    ref = reference(x, params)
    assert jnp.allclose(out, ref, atol=1e-2, rtol=1e-2), (
        float(jnp.max(jnp.abs(out - ref))))
    print("KERNEL_OK")
</pallas_src>

<mosaic_0001>
module attributes {stable_mosaic.version = 11 : i64} {
  func.func @graph_transformer_kernel(%arg0: i32, %arg1: memref<16x16xf32, #tpu.memory_space<vmem>>, %arg2: memref<16x16xf32, #tpu.memory_space<vmem>>, %arg3: memref<16x32xf32, #tpu.memory_space<vmem>>, %arg4: memref<1x32xf32, #tpu.memory_space<vmem>>, %arg5: memref<4x32x8xf32, #tpu.memory_space<vmem>>, %arg6: memref<4x32x8xf32, #tpu.memory_space<vmem>>, %arg7: memref<4x32x8xf32, #tpu.memory_space<vmem>>, %arg8: memref<4x1x8xf32, #tpu.memory_space<vmem>>, %arg9: memref<4x1x8xf32, #tpu.memory_space<vmem>>, %arg10: memref<4x1x8xf32, #tpu.memory_space<vmem>>, %arg11: memref<32x32xf32, #tpu.memory_space<vmem>>, %arg12: memref<1x32xf32, #tpu.memory_space<vmem>>, %arg13: memref<1x32xf32, #tpu.memory_space<vmem>>, %arg14: memref<1x32xf32, #tpu.memory_space<vmem>>, %arg15: memref<32x2048xbf16, #tpu.memory_space<vmem>>, %arg16: memref<1x2048xf32, #tpu.memory_space<vmem>>, %arg17: memref<2048x32xbf16, #tpu.memory_space<vmem>>, %arg18: memref<1x32xf32, #tpu.memory_space<vmem>>, %arg19: memref<1x32xf32, #tpu.memory_space<vmem>>, %arg20: memref<1x32xf32, #tpu.memory_space<vmem>>, %arg21: memref<32x128xf32, #tpu.memory_space<vmem>>, %arg22: memref<1x128xf32, #tpu.memory_space<vmem>>, %arg23: memref<16x128xf32, #tpu.memory_space<vmem>>) attributes {dimension_semantics = [#tpu.dimension_semantics<arbitrary>], iteration_bounds = array<i64: 1>, scalar_prefetch = 0 : i64, scratch_operands = 0 : i64, tpu.core_type = #tpu.core_type<tc>, window_params = [{pipeline_mode = #tpu.pipeline_mode<synchronous>, transform_indices = @transform_0, window_bounds = array<i64: 16, 16>}, {pipeline_mode = #tpu.pipeline_mode<synchronous>, transform_indices = @transform_1, window_bounds = array<i64: 16, 16>}, {pipeline_mode = #tpu.pipeline_mode<synchronous>, transform_indices = @transform_2, window_bounds = array<i64: 16, 32>}, {pipeline_mode = #tpu.pipeline_mode<synchronous>, transform_indices = @transform_3, window_bounds = array<i64: 1, 32>}, {pipeline_mode = #tpu.pipeline_mode<synchronous>, transform_indices = @transform_4, window_bounds = array<i64: 4, 32, 8>}, {pipeline_mode = #tpu.pipeline_mode<synchronous>, transform_indices = @transform_5, window_bounds = array<i64: 4, 32, 8>}, {pipeline_mode = #tpu.pipeline_mode<synchronous>, transform_indices = @transform_6, window_bounds = array<i64: 4, 32, 8>}, {pipeline_mode = #tpu.pipeline_mode<synchronous>, transform_indices = @transform_7, window_bounds = array<i64: 4, 1, 8>}, {pipeline_mode = #tpu.pipeline_mode<synchronous>, transform_indices = @transform_8, window_bounds = array<i64: 4, 1, 8>}, {pipeline_mode = #tpu.pipeline_mode<synchronous>, transform_indices = @transform_9, window_bounds = array<i64: 4, 1, 8>}, {pipeline_mode = #tpu.pipeline_mode<synchronous>, transform_indices = @transform_10, window_bounds = array<i64: 32, 32>}, {pipeline_mode = #tpu.pipeline_mode<synchronous>, transform_indices = @transform_11, window_bounds = array<i64: 1, 32>}, {pipeline_mode = #tpu.pipeline_mode<synchronous>, transform_indices = @transform_12, window_bounds = array<i64: 1, 32>}, {pipeline_mode = #tpu.pipeline_mode<synchronous>, transform_indices = @transform_13, window_bounds = array<i64: 1, 32>}, {pipeline_mode = #tpu.pipeline_mode<synchronous>, transform_indices = @transform_14, window_bounds = array<i64: 32, 2048>}, {pipeline_mode = #tpu.pipeline_mode<synchronous>, transform_indices = @transform_15, window_bounds = array<i64: 1, 2048>}, {pipeline_mode = #tpu.pipeline_mode<synchronous>, transform_indices = @transform_16, window_bounds = array<i64: 2048, 32>}, {pipeline_mode = #tpu.pipeline_mode<synchronous>, transform_indices = @transform_17, window_bounds = array<i64: 1, 32>}, {pipeline_mode = #tpu.pipeline_mode<synchronous>, transform_indices = @transform_18, window_bounds = array<i64: 1, 32>}, {pipeline_mode = #tpu.pipeline_mode<synchronous>, transform_indices = @transform_19, window_bounds = array<i64: 1, 32>}, {pipeline_mode = #tpu.pipeline_mode<synchronous>, transform_indices = @transform_20, window_bounds = array<i64: 32, 128>}, {pipeline_mode = #tpu.pipeline_mode<synchronous>, transform_indices = @transform_21, window_bounds = array<i64: 1, 128>}, {pipeline_mode = #tpu.pipeline_mode<synchronous>, transform_indices = @transform_22, window_bounds = array<i64: 16, 128>}]} {
    %c0 = arith.constant 0 : index
    %c0_0 = arith.constant 0 : index
    %0 = vector.load %arg1[%c0, %c0_0] : memref<16x16xf32, #tpu.memory_space<vmem>>, vector<16x16xf32>
    %c0_1 = arith.constant 0 : index
    %c0_2 = arith.constant 0 : index
    %1 = vector.load %arg3[%c0_1, %c0_2] : memref<16x32xf32, #tpu.memory_space<vmem>>, vector<16x32xf32>
    %cst = arith.constant dense<0.000000e+00> : vector<16x32xf32>
    %2 = tpu.matmul %0, %1, %cst {dimension_numbers = #tpu.dot_dimension_numbers<[1], [0], [0], [1], [0, 0, 1, 1], [], []>} : vector<16x16xf32>, vector<16x32xf32>, vector<16x32xf32> -> vector<16x32xf32>
    %c0_3 = arith.constant 0 : index
    %c0_4 = arith.constant 0 : index
    %3 = vector.load %arg4[%c0_3, %c0_4] : memref<1x32xf32, #tpu.memory_space<vmem>>, vector<1x32xf32>
    %4 = vector.broadcast %3 : vector<1x32xf32> to vector<16x32xf32>
    %5 = arith.addf %2, %4 : vector<16x32xf32>
    %c0_5 = arith.constant 0 : index
    %c0_6 = arith.constant 0 : index
    %6 = vector.load %arg2[%c0_5, %c0_6] : memref<16x16xf32, #tpu.memory_space<vmem>>, vector<16x16xf32>
    %cst_7 = arith.constant 0.000000e+00 : f32
    %7 = vector.broadcast %cst_7 : f32 to vector<16x32xf32>
    %c0_8 = arith.constant 0 : index
    %c0_9 = arith.constant 0 : index
    %c0_10 = arith.constant 0 : index
    %8 = vector.load %arg5[%c0_8, %c0_9, %c0_10] : memref<4x32x8xf32, #tpu.memory_space<vmem>>, vector<1x32x8xf32>
    %9 = vector.shape_cast %8 : vector<1x32x8xf32> to vector<32x8xf32>
    %cst_11 = arith.constant dense<0.000000e+00> : vector<16x8xf32>
    %10 = tpu.matmul %5, %9, %cst_11 {dimension_numbers = #tpu.dot_dimension_numbers<[1], [0], [0], [1], [0, 0, 1, 1], [], []>} : vector<16x32xf32>, vector<32x8xf32>, vector<16x8xf32> -> vector<16x8xf32>
    %c0_12 = arith.constant 0 : index
    %c0_13 = arith.constant 0 : index
    %c0_14 = arith.constant 0 : index
    %11 = vector.load %arg8[%c0_12, %c0_13, %c0_14] : memref<4x1x8xf32, #tpu.memory_space<vmem>>, vector<1x1x8xf32>
    %12 = vector.shape_cast %11 : vector<1x1x8xf32> to vector<1x8xf32>
    %13 = vector.broadcast %12 : vector<1x8xf32> to vector<16x8xf32>
    %14 = arith.addf %10, %13 : vector<16x8xf32>
    %c0_15 = arith.constant 0 : index
    %c0_16 = arith.constant 0 : index
    %c0_17 = arith.constant 0 : index
    %15 = vector.load %arg6[%c0_15, %c0_16, %c0_17] : memref<4x32x8xf32, #tpu.memory_space<vmem>>, vector<1x32x8xf32>
    %16 = vector.shape_cast %15 : vector<1x32x8xf32> to vector<32x8xf32>
    %cst_18 = arith.constant dense<0.000000e+00> : vector<16x8xf32>
    %17 = tpu.matmul %5, %16, %cst_18 {dimension_numbers = #tpu.dot_dimension_numbers<[1], [0], [0], [1], [0, 0, 1, 1], [], []>} : vector<16x32xf32>, vector<32x8xf32>, vector<16x8xf32> -> vector<16x8xf32>
    %c0_19 = arith.constant 0 : index
    %c0_20 = arith.constant 0 : index
    %c0_21 = arith.constant 0 : index
    %18 = vector.load %arg9[%c0_19, %c0_20, %c0_21] : memref<4x1x8xf32, #tpu.memory_space<vmem>>, vector<1x1x8xf32>
    %19 = vector.shape_cast %18 : vector<1x1x8xf32> to vector<1x8xf32>
    %20 = vector.broadcast %19 : vector<1x8xf32> to vector<16x8xf32>
    %21 = arith.addf %17, %20 : vector<16x8xf32>
    %c0_22 = arith.constant 0 : index
    %c0_23 = arith.constant 0 : index
    %c0_24 = arith.constant 0 : index
    %22 = vector.load %arg7[%c0_22, %c0_23, %c0_24] : memref<4x32x8xf32, #tpu.memory_space<vmem>>, vector<1x32x8xf32>
    %23 = vector.shape_cast %22 : vector<1x32x8xf32> to vector<32x8xf32>
    %cst_25 = arith.constant dense<0.000000e+00> : vector<16x8xf32>
    %24 = tpu.matmul %5, %23, %cst_25 {dimension_numbers = #tpu.dot_dimension_numbers<[1], [0], [0], [1], [0, 0, 1, 1], [], []>} : vector<16x32xf32>, vector<32x8xf32>, vector<16x8xf32> -> vector<16x8xf32>
    %c0_26 = arith.constant 0 : index
    %c0_27 = arith.constant 0 : index
    %c0_28 = arith.constant 0 : index
    %25 = vector.load %arg10[%c0_26, %c0_27, %c0_28] : memref<4x1x8xf32, #tpu.memory_space<vmem>>, vector<1x1x8xf32>
    %26 = vector.shape_cast %25 : vector<1x1x8xf32> to vector<1x8xf32>
    %27 = vector.broadcast %26 : vector<1x8xf32> to vector<16x8xf32>
    %28 = arith.addf %24, %27 : vector<16x8xf32>
    %cst_29 = arith.constant dense<0.000000e+00> : vector<16x16xf32>
    %29 = tpu.matmul %14, %21, %cst_29 {dimension_numbers = #tpu.dot_dimension_numbers<[1], [1], [0], [0], [0, 0, 1, 0], [], []>} : vector<16x8xf32>, vector<16x8xf32>, vector<16x16xf32> -> vector<16x16xf32>
    %30 = arith.addf %29, %6 : vector<16x16xf32>
    %cst_30 = arith.constant dense<0xFF800000> : vector<16xf32>
    %31 = vector.multi_reduction <maximumf>, %30, %cst_30 [1] : vector<16x16xf32> to vector<16xf32>
    %32 = vector.shape_cast %31 : vector<16xf32> to vector<16x1xf32>
    %33 = vector.broadcast %32 : vector<16x1xf32> to vector<16x16xf32>
    %34 = arith.subf %30, %33 : vector<16x16xf32>
    %35 = math.exp %34 : vector<16x16xf32>
    %cst_31 = arith.constant dense<0.000000e+00> : vector<16xf32>
    %36 = vector.multi_reduction <add>, %35, %cst_31 [1] : vector<16x16xf32> to vector<16xf32>
    %37 = vector.shape_cast %36 : vector<16xf32> to vector<16x1xf32>
    %38 = tpu.reciprocal %37 {approx = true} : vector<16x1xf32> -> vector<16x1xf32>
    %39 = vector.broadcast %38 : vector<16x1xf32> to vector<16x16xf32>
    %40 = arith.mulf %35, %39 : vector<16x16xf32>
    %cst_32 = arith.constant dense<0.000000e+00> : vector<16x8xf32>
    %41 = tpu.matmul %40, %28, %cst_32 {dimension_numbers = #tpu.dot_dimension_numbers<[1], [0], [0], [1], [0, 0, 1, 1], [], []>} : vector<16x16xf32>, vector<16x8xf32>, vector<16x8xf32> -> vector<16x8xf32>
    %c0_33 = arith.constant 0 : index
    %c0_34 = arith.constant 0 : index
    %42 = vector.load %arg11[%c0_33, %c0_34] : memref<32x32xf32, #tpu.memory_space<vmem>>, vector<8x32xf32>
    %cst_35 = arith.constant dense<0.000000e+00> : vector<16x32xf32>
    %43 = tpu.matmul %41, %42, %cst_35 {dimension_numbers = #tpu.dot_dimension_numbers<[1], [0], [0], [1], [0, 0, 1, 1], [], []>} : vector<16x8xf32>, vector<8x32xf32>, vector<16x32xf32> -> vector<16x32xf32>
    %44 = arith.addf %7, %43 : vector<16x32xf32>
    %c1 = arith.constant 1 : index
    %c0_36 = arith.constant 0 : index
    %c0_37 = arith.constant 0 : index
    %45 = vector.load %arg5[%c1, %c0_36, %c0_37] : memref<4x32x8xf32, #tpu.memory_space<vmem>>, vector<1x32x8xf32>
    %46 = vector.shape_cast %45 : vector<1x32x8xf32> to vector<32x8xf32>
    %cst_38 = arith.constant dense<0.000000e+00> : vector<16x8xf32>
    %47 = tpu.matmul %5, %46, %cst_38 {dimension_numbers = #tpu.dot_dimension_numbers<[1], [0], [0], [1], [0, 0, 1, 1], [], []>} : vector<16x32xf32>, vector<32x8xf32>, vector<16x8xf32> -> vector<16x8xf32>
    %c1_39 = arith.constant 1 : index
    %c0_40 = arith.constant 0 : index
    %c0_41 = arith.constant 0 : index
    %48 = vector.load %arg8[%c1_39, %c0_40, %c0_41] : memref<4x1x8xf32, #tpu.memory_space<vmem>>, vector<1x1x8xf32>
    %49 = vector.shape_cast %48 : vector<1x1x8xf32> to vector<1x8xf32>
    %50 = vector.broadcast %49 : vector<1x8xf32> to vector<16x8xf32>
    %51 = arith.addf %47, %50 : vector<16x8xf32>
    %c1_42 = arith.constant 1 : index
    %c0_43 = arith.constant 0 : index
    %c0_44 = arith.constant 0 : index
    %52 = vector.load %arg6[%c1_42, %c0_43, %c0_44] : memref<4x32x8xf32, #tpu.memory_space<vmem>>, vector<1x32x8xf32>
    %53 = vector.shape_cast %52 : vector<1x32x8xf32> to vector<32x8xf32>
    %cst_45 = arith.constant dense<0.000000e+00> : vector<16x8xf32>
    %54 = tpu.matmul %5, %53, %cst_45 {dimension_numbers = #tpu.dot_dimension_numbers<[1], [0], [0], [1], [0, 0, 1, 1], [], []>} : vector<16x32xf32>, vector<32x8xf32>, vector<16x8xf32> -> vector<16x8xf32>
    %c1_46 = arith.constant 1 : index
    %c0_47 = arith.constant 0 : index
    %c0_48 = arith.constant 0 : index
    %55 = vector.load %arg9[%c1_46, %c0_47, %c0_48] : memref<4x1x8xf32, #tpu.memory_space<vmem>>, vector<1x1x8xf32>
    %56 = vector.shape_cast %55 : vector<1x1x8xf32> to vector<1x8xf32>
    %57 = vector.broadcast %56 : vector<1x8xf32> to vector<16x8xf32>
    %58 = arith.addf %54, %57 : vector<16x8xf32>
    %c1_49 = arith.constant 1 : index
    %c0_50 = arith.constant 0 : index
    %c0_51 = arith.constant 0 : index
    %59 = vector.load %arg7[%c1_49, %c0_50, %c0_51] : memref<4x32x8xf32, #tpu.memory_space<vmem>>, vector<1x32x8xf32>
    %60 = vector.shape_cast %59 : vector<1x32x8xf32> to vector<32x8xf32>
    %cst_52 = arith.constant dense<0.000000e+00> : vector<16x8xf32>
    %61 = tpu.matmul %5, %60, %cst_52 {dimension_numbers = #tpu.dot_dimension_numbers<[1], [0], [0], [1], [0, 0, 1, 1], [], []>} : vector<16x32xf32>, vector<32x8xf32>, vector<16x8xf32> -> vector<16x8xf32>
    %c1_53 = arith.constant 1 : index
    %c0_54 = arith.constant 0 : index
    %c0_55 = arith.constant 0 : index
    %62 = vector.load %arg10[%c1_53, %c0_54, %c0_55] : memref<4x1x8xf32, #tpu.memory_space<vmem>>, vector<1x1x8xf32>
    %63 = vector.shape_cast %62 : vector<1x1x8xf32> to vector<1x8xf32>
    %64 = vector.broadcast %63 : vector<1x8xf32> to vector<16x8xf32>
    %65 = arith.addf %61, %64 : vector<16x8xf32>
    %cst_56 = arith.constant dense<0.000000e+00> : vector<16x16xf32>
    %66 = tpu.matmul %51, %58, %cst_56 {dimension_numbers = #tpu.dot_dimension_numbers<[1], [1], [0], [0], [0, 0, 1, 0], [], []>} : vector<16x8xf32>, vector<16x8xf32>, vector<16x16xf32> -> vector<16x16xf32>
    %67 = arith.addf %66, %6 : vector<16x16xf32>
    %cst_57 = arith.constant dense<0xFF800000> : vector<16xf32>
    %68 = vector.multi_reduction <maximumf>, %67, %cst_57 [1] : vector<16x16xf32> to vector<16xf32>
    %69 = vector.shape_cast %68 : vector<16xf32> to vector<16x1xf32>
    %70 = vector.broadcast %69 : vector<16x1xf32> to vector<16x16xf32>
    %71 = arith.subf %67, %70 : vector<16x16xf32>
    %72 = math.exp %71 : vector<16x16xf32>
    %cst_58 = arith.constant dense<0.000000e+00> : vector<16xf32>
    %73 = vector.multi_reduction <add>, %72, %cst_58 [1] : vector<16x16xf32> to vector<16xf32>
    %74 = vector.shape_cast %73 : vector<16xf32> to vector<16x1xf32>
    %75 = tpu.reciprocal %74 {approx = true} : vector<16x1xf32> -> vector<16x1xf32>
    %76 = vector.broadcast %75 : vector<16x1xf32> to vector<16x16xf32>
    %77 = arith.mulf %72, %76 : vector<16x16xf32>
    %cst_59 = arith.constant dense<0.000000e+00> : vector<16x8xf32>
    %78 = tpu.matmul %77, %65, %cst_59 {dimension_numbers = #tpu.dot_dimension_numbers<[1], [0], [0], [1], [0, 0, 1, 1], [], []>} : vector<16x16xf32>, vector<16x8xf32>, vector<16x8xf32> -> vector<16x8xf32>
    %c8 = arith.constant 8 : index
    %c0_60 = arith.constant 0 : index
    %79 = vector.load %arg11[%c8, %c0_60] : memref<32x32xf32, #tpu.memory_space<vmem>>, vector<8x32xf32>
    %cst_61 = arith.constant dense<0.000000e+00> : vector<16x32xf32>
    %80 = tpu.matmul %78, %79, %cst_61 {dimension_numbers = #tpu.dot_dimension_numbers<[1], [0], [0], [1], [0, 0, 1, 1], [], []>} : vector<16x8xf32>, vector<8x32xf32>, vector<16x32xf32> -> vector<16x32xf32>
    %81 = arith.addf %44, %80 : vector<16x32xf32>
    %c2 = arith.constant 2 : index
    %c0_62 = arith.constant 0 : index
    %c0_63 = arith.constant 0 : index
    %82 = vector.load %arg5[%c2, %c0_62, %c0_63] : memref<4x32x8xf32, #tpu.memory_space<vmem>>, vector<1x32x8xf32>
    %83 = vector.shape_cast %82 : vector<1x32x8xf32> to vector<32x8xf32>
    %cst_64 = arith.constant dense<0.000000e+00> : vector<16x8xf32>
    %84 = tpu.matmul %5, %83, %cst_64 {dimension_numbers = #tpu.dot_dimension_numbers<[1], [0], [0], [1], [0, 0, 1, 1], [], []>} : vector<16x32xf32>, vector<32x8xf32>, vector<16x8xf32> -> vector<16x8xf32>
    %c2_65 = arith.constant 2 : index
    %c0_66 = arith.constant 0 : index
    %c0_67 = arith.constant 0 : index
    %85 = vector.load %arg8[%c2_65, %c0_66, %c0_67] : memref<4x1x8xf32, #tpu.memory_space<vmem>>, vector<1x1x8xf32>
    %86 = vector.shape_cast %85 : vector<1x1x8xf32> to vector<1x8xf32>
    %87 = vector.broadcast %86 : vector<1x8xf32> to vector<16x8xf32>
    %88 = arith.addf %84, %87 : vector<16x8xf32>
    %c2_68 = arith.constant 2 : index
    %c0_69 = arith.constant 0 : index
    %c0_70 = arith.constant 0 : index
    %89 = vector.load %arg6[%c2_68, %c0_69, %c0_70] : memref<4x32x8xf32, #tpu.memory_space<vmem>>, vector<1x32x8xf32>
    %90 = vector.shape_cast %89 : vector<1x32x8xf32> to vector<32x8xf32>
    %cst_71 = arith.constant dense<0.000000e+00> : vector<16x8xf32>
    %91 = tpu.matmul %5, %90, %cst_71 {dimension_numbers = #tpu.dot_dimension_numbers<[1], [0], [0], [1], [0, 0, 1, 1], [], []>} : vector<16x32xf32>, vector<32x8xf32>, vector<16x8xf32> -> vector<16x8xf32>
    %c2_72 = arith.constant 2 : index
    %c0_73 = arith.constant 0 : index
    %c0_74 = arith.constant 0 : index
    %92 = vector.load %arg9[%c2_72, %c0_73, %c0_74] : memref<4x1x8xf32, #tpu.memory_space<vmem>>, vector<1x1x8xf32>
    %93 = vector.shape_cast %92 : vector<1x1x8xf32> to vector<1x8xf32>
    %94 = vector.broadcast %93 : vector<1x8xf32> to vector<16x8xf32>
    %95 = arith.addf %91, %94 : vector<16x8xf32>
    %c2_75 = arith.constant 2 : index
    %c0_76 = arith.constant 0 : index
    %c0_77 = arith.constant 0 : index
    %96 = vector.load %arg7[%c2_75, %c0_76, %c0_77] : memref<4x32x8xf32, #tpu.memory_space<vmem>>, vector<1x32x8xf32>
    %97 = vector.shape_cast %96 : vector<1x32x8xf32> to vector<32x8xf32>
    %cst_78 = arith.constant dense<0.000000e+00> : vector<16x8xf32>
    %98 = tpu.matmul %5, %97, %cst_78 {dimension_numbers = #tpu.dot_dimension_numbers<[1], [0], [0], [1], [0, 0, 1, 1], [], []>} : vector<16x32xf32>, vector<32x8xf32>, vector<16x8xf32> -> vector<16x8xf32>
    %c2_79 = arith.constant 2 : index
    %c0_80 = arith.constant 0 : index
    %c0_81 = arith.constant 0 : index
    %99 = vector.load %arg10[%c2_79, %c0_80, %c0_81] : memref<4x1x8xf32, #tpu.memory_space<vmem>>, vector<1x1x8xf32>
    %100 = vector.shape_cast %99 : vector<1x1x8xf32> to vector<1x8xf32>
    %101 = vector.broadcast %100 : vector<1x8xf32> to vector<16x8xf32>
    %102 = arith.addf %98, %101 : vector<16x8xf32>
    %cst_82 = arith.constant dense<0.000000e+00> : vector<16x16xf32>
    %103 = tpu.matmul %88, %95, %cst_82 {dimension_numbers = #tpu.dot_dimension_numbers<[1], [1], [0], [0], [0, 0, 1, 0], [], []>} : vector<16x8xf32>, vector<16x8xf32>, vector<16x16xf32> -> vector<16x16xf32>
    %104 = arith.addf %103, %6 : vector<16x16xf32>
    %cst_83 = arith.constant dense<0xFF800000> : vector<16xf32>
    %105 = vector.multi_reduction <maximumf>, %104, %cst_83 [1] : vector<16x16xf32> to vector<16xf32>
    %106 = vector.shape_cast %105 : vector<16xf32> to vector<16x1xf32>
    %107 = vector.broadcast %106 : vector<16x1xf32> to vector<16x16xf32>
    %108 = arith.subf %104, %107 : vector<16x16xf32>
    %109 = math.exp %108 : vector<16x16xf32>
    %cst_84 = arith.constant dense<0.000000e+00> : vector<16xf32>
    %110 = vector.multi_reduction <add>, %109, %cst_84 [1] : vector<16x16xf32> to vector<16xf32>
    %111 = vector.shape_cast %110 : vector<16xf32> to vector<16x1xf32>
    %112 = tpu.reciprocal %111 {approx = true} : vector<16x1xf32> -> vector<16x1xf32>
    %113 = vector.broadcast %112 : vector<16x1xf32> to vector<16x16xf32>
    %114 = arith.mulf %109, %113 : vector<16x16xf32>
    %cst_85 = arith.constant dense<0.000000e+00> : vector<16x8xf32>
    %115 = tpu.matmul %114, %102, %cst_85 {dimension_numbers = #tpu.dot_dimension_numbers<[1], [0], [0], [1], [0, 0, 1, 1], [], []>} : vector<16x16xf32>, vector<16x8xf32>, vector<16x8xf32> -> vector<16x8xf32>
    %c16 = arith.constant 16 : index
    %c0_86 = arith.constant 0 : index
    %116 = vector.load %arg11[%c16, %c0_86] : memref<32x32xf32, #tpu.memory_space<vmem>>, vector<8x32xf32>
    %cst_87 = arith.constant dense<0.000000e+00> : vector<16x32xf32>
    %117 = tpu.matmul %115, %116, %cst_87 {dimension_numbers = #tpu.dot_dimension_numbers<[1], [0], [0], [1], [0, 0, 1, 1], [], []>} : vector<16x8xf32>, vector<8x32xf32>, vector<16x32xf32> -> vector<16x32xf32>
    %118 = arith.addf %81, %117 : vector<16x32xf32>
    %c3 = arith.constant 3 : index
    %c0_88 = arith.constant 0 : index
    %c0_89 = arith.constant 0 : index
    %119 = vector.load %arg5[%c3, %c0_88, %c0_89] : memref<4x32x8xf32, #tpu.memory_space<vmem>>, vector<1x32x8xf32>
    %120 = vector.shape_cast %119 : vector<1x32x8xf32> to vector<32x8xf32>
    %cst_90 = arith.constant dense<0.000000e+00> : vector<16x8xf32>
    %121 = tpu.matmul %5, %120, %cst_90 {dimension_numbers = #tpu.dot_dimension_numbers<[1], [0], [0], [1], [0, 0, 1, 1], [], []>} : vector<16x32xf32>, vector<32x8xf32>, vector<16x8xf32> -> vector<16x8xf32>
    %c3_91 = arith.constant 3 : index
    %c0_92 = arith.constant 0 : index
    %c0_93 = arith.constant 0 : index
    %122 = vector.load %arg8[%c3_91, %c0_92, %c0_93] : memref<4x1x8xf32, #tpu.memory_space<vmem>>, vector<1x1x8xf32>
    %123 = vector.shape_cast %122 : vector<1x1x8xf32> to vector<1x8xf32>
    %124 = vector.broadcast %123 : vector<1x8xf32> to vector<16x8xf32>
    %125 = arith.addf %121, %124 : vector<16x8xf32>
    %c3_94 = arith.constant 3 : index
    %c0_95 = arith.constant 0 : index
    %c0_96 = arith.constant 0 : index
    %126 = vector.load %arg6[%c3_94, %c0_95, %c0_96] : memref<4x32x8xf32, #tpu.memory_space<vmem>>, vector<1x32x8xf32>
    %127 = vector.shape_cast %126 : vector<1x32x8xf32> to vector<32x8xf32>
    %cst_97 = arith.constant dense<0.000000e+00> : vector<16x8xf32>
    %128 = tpu.matmul %5, %127, %cst_97 {dimension_numbers = #tpu.dot_dimension_numbers<[1], [0], [0], [1], [0, 0, 1, 1], [], []>} : vector<16x32xf32>, vector<32x8xf32>, vector<16x8xf32> -> vector<16x8xf32>
    %c3_98 = arith.constant 3 : index
    %c0_99 = arith.constant 0 : index
    %c0_100 = arith.constant 0 : index
    %129 = vector.load %arg9[%c3_98, %c0_99, %c0_100] : memref<4x1x8xf32, #tpu.memory_space<vmem>>, vector<1x1x8xf32>
    %130 = vector.shape_cast %129 : vector<1x1x8xf32> to vector<1x8xf32>
    %131 = vector.broadcast %130 : vector<1x8xf32> to vector<16x8xf32>
    %132 = arith.addf %128, %131 : vector<16x8xf32>
    %c3_101 = arith.constant 3 : index
    %c0_102 = arith.constant 0 : index
    %c0_103 = arith.constant 0 : index
    %133 = vector.load %arg7[%c3_101, %c0_102, %c0_103] : memref<4x32x8xf32, #tpu.memory_space<vmem>>, vector<1x32x8xf32>
    %134 = vector.shape_cast %133 : vector<1x32x8xf32> to vector<32x8xf32>
    %cst_104 = arith.constant dense<0.000000e+00> : vector<16x8xf32>
    %135 = tpu.matmul %5, %134, %cst_104 {dimension_numbers = #tpu.dot_dimension_numbers<[1], [0], [0], [1], [0, 0, 1, 1], [], []>} : vector<16x32xf32>, vector<32x8xf32>, vector<16x8xf32> -> vector<16x8xf32>
    %c3_105 = arith.constant 3 : index
    %c0_106 = arith.constant 0 : index
    %c0_107 = arith.constant 0 : index
    %136 = vector.load %arg10[%c3_105, %c0_106, %c0_107] : memref<4x1x8xf32, #tpu.memory_space<vmem>>, vector<1x1x8xf32>
    %137 = vector.shape_cast %136 : vector<1x1x8xf32> to vector<1x8xf32>
    %138 = vector.broadcast %137 : vector<1x8xf32> to vector<16x8xf32>
    %139 = arith.addf %135, %138 : vector<16x8xf32>
    %cst_108 = arith.constant dense<0.000000e+00> : vector<16x16xf32>
    %140 = tpu.matmul %125, %132, %cst_108 {dimension_numbers = #tpu.dot_dimension_numbers<[1], [1], [0], [0], [0, 0, 1, 0], [], []>} : vector<16x8xf32>, vector<16x8xf32>, vector<16x16xf32> -> vector<16x16xf32>
    %141 = arith.addf %140, %6 : vector<16x16xf32>
    %cst_109 = arith.constant dense<0xFF800000> : vector<16xf32>
    %142 = vector.multi_reduction <maximumf>, %141, %cst_109 [1] : vector<16x16xf32> to vector<16xf32>
    %143 = vector.shape_cast %142 : vector<16xf32> to vector<16x1xf32>
    %144 = vector.broadcast %143 : vector<16x1xf32> to vector<16x16xf32>
    %145 = arith.subf %141, %144 : vector<16x16xf32>
    %146 = math.exp %145 : vector<16x16xf32>
    %cst_110 = arith.constant dense<0.000000e+00> : vector<16xf32>
    %147 = vector.multi_reduction <add>, %146, %cst_110 [1] : vector<16x16xf32> to vector<16xf32>
    %148 = vector.shape_cast %147 : vector<16xf32> to vector<16x1xf32>
    %149 = tpu.reciprocal %148 {approx = true} : vector<16x1xf32> -> vector<16x1xf32>
    %150 = vector.broadcast %149 : vector<16x1xf32> to vector<16x16xf32>
    %151 = arith.mulf %146, %150 : vector<16x16xf32>
    %cst_111 = arith.constant dense<0.000000e+00> : vector<16x8xf32>
    %152 = tpu.matmul %151, %139, %cst_111 {dimension_numbers = #tpu.dot_dimension_numbers<[1], [0], [0], [1], [0, 0, 1, 1], [], []>} : vector<16x16xf32>, vector<16x8xf32>, vector<16x8xf32> -> vector<16x8xf32>
    %c24 = arith.constant 24 : index
    %c0_112 = arith.constant 0 : index
    %153 = vector.load %arg11[%c24, %c0_112] : memref<32x32xf32, #tpu.memory_space<vmem>>, vector<8x32xf32>
    %cst_113 = arith.constant dense<0.000000e+00> : vector<16x32xf32>
    %154 = tpu.matmul %152, %153, %cst_113 {dimension_numbers = #tpu.dot_dimension_numbers<[1], [0], [0], [1], [0, 0, 1, 1], [], []>} : vector<16x8xf32>, vector<8x32xf32>, vector<16x32xf32> -> vector<16x32xf32>
    %155 = arith.addf %118, %154 : vector<16x32xf32>
    %c0_114 = arith.constant 0 : index
    %c0_115 = arith.constant 0 : index
    %156 = vector.load %arg12[%c0_114, %c0_115] : memref<1x32xf32, #tpu.memory_space<vmem>>, vector<1x32xf32>
    %157 = vector.broadcast %156 : vector<1x32xf32> to vector<16x32xf32>
    %158 = arith.addf %155, %157 : vector<16x32xf32>
    %159 = arith.addf %5, %158 : vector<16x32xf32>
    %cst_116 = arith.constant dense<0.000000e+00> : vector<16xf32>
    %160 = vector.multi_reduction <add>, %159, %cst_116 [1] : vector<16x32xf32> to vector<16xf32>
    %161 = vector.shape_cast %160 : vector<16xf32> to vector<16x1xf32>
    %cst_117 = arith.constant 3.200000e+01 : f32
    %162 = vector.broadcast %cst_117 : f32 to vector<16x1xf32>
    %163 = arith.divf %161, %162 : vector<16x1xf32>
    %164 = vector.broadcast %163 : vector<16x1xf32> to vector<16x32xf32>
    %165 = arith.subf %159, %164 : vector<16x32xf32>
    %166 = arith.mulf %165, %165 : vector<16x32xf32>
    %cst_118 = arith.constant dense<0.000000e+00> : vector<16xf32>
    %167 = vector.multi_reduction <add>, %166, %cst_118 [1] : vector<16x32xf32> to vector<16xf32>
    %168 = vector.shape_cast %167 : vector<16xf32> to vector<16x1xf32>
    %cst_119 = arith.constant 3.200000e+01 : f32
    %169 = vector.broadcast %cst_119 : f32 to vector<16x1xf32>
    %170 = arith.divf %168, %169 : vector<16x1xf32>
    %171 = vector.broadcast %163 : vector<16x1xf32> to vector<16x32xf32>
    %172 = arith.subf %159, %171 : vector<16x32xf32>
    %cst_120 = arith.constant 9.99999974E-6 : f32
    %173 = vector.broadcast %cst_120 : f32 to vector<16x1xf32>
    %174 = arith.addf %170, %173 : vector<16x1xf32>
    %175 = math.rsqrt %174 : vector<16x1xf32>
    %176 = vector.broadcast %175 : vector<16x1xf32> to vector<16x32xf32>
    %177 = arith.mulf %172, %176 : vector<16x32xf32>
    %c0_121 = arith.constant 0 : index
    %c0_122 = arith.constant 0 : index
    %178 = vector.load %arg13[%c0_121, %c0_122] : memref<1x32xf32, #tpu.memory_space<vmem>>, vector<1x32xf32>
    %179 = vector.broadcast %178 : vector<1x32xf32> to vector<16x32xf32>
    %180 = arith.mulf %177, %179 : vector<16x32xf32>
    %c0_123 = arith.constant 0 : index
    %c0_124 = arith.constant 0 : index
    %181 = vector.load %arg14[%c0_123, %c0_124] : memref<1x32xf32, #tpu.memory_space<vmem>>, vector<1x32xf32>
    %182 = vector.broadcast %181 : vector<1x32xf32> to vector<16x32xf32>
    %183 = arith.addf %180, %182 : vector<16x32xf32>
    %184 = arith.truncf %183 : vector<16x32xf32> to vector<16x32xbf16>
    %c0_125 = arith.constant 0 : index
    %c0_126 = arith.constant 0 : index
    %185 = vector.load %arg15[%c0_125, %c0_126] : memref<32x2048xbf16, #tpu.memory_space<vmem>>, vector<32x2048xbf16>
    %cst_127 = arith.constant dense<0.000000e+00> : vector<16x2048xf32>
    %186 = tpu.matmul %184, %185, %cst_127 {dimension_numbers = #tpu.dot_dimension_numbers<[1], [0], [0], [1], [0, 0, 1, 1], [], []>} : vector<16x32xbf16>, vector<32x2048xbf16>, vector<16x2048xf32> -> vector<16x2048xf32>
    %c0_128 = arith.constant 0 : index
    %c0_129 = arith.constant 0 : index
    %187 = vector.load %arg16[%c0_128, %c0_129] : memref<1x2048xf32, #tpu.memory_space<vmem>>, vector<1x2048xf32>
    %188 = vector.broadcast %187 : vector<1x2048xf32> to vector<16x2048xf32>
    %189 = arith.addf %186, %188 : vector<16x2048xf32>
    %cst_130 = arith.constant 0.000000e+00 : f32
    %190 = vector.broadcast %cst_130 : f32 to vector<16x2048xf32>
    %191 = arith.maximumf %189, %190 : vector<16x2048xf32>
    %192 = arith.truncf %191 : vector<16x2048xf32> to vector<16x2048xbf16>
    %c0_131 = arith.constant 0 : index
    %c0_132 = arith.constant 0 : index
    %193 = vector.load %arg17[%c0_131, %c0_132] : memref<2048x32xbf16, #tpu.memory_space<vmem>>, vector<2048x32xbf16>
    %cst_133 = arith.constant dense<0.000000e+00> : vector<16x32xf32>
    %194 = tpu.matmul %192, %193, %cst_133 {dimension_numbers = #tpu.dot_dimension_numbers<[1], [0], [0], [1], [0, 0, 1, 1], [], []>} : vector<16x2048xbf16>, vector<2048x32xbf16>, vector<16x32xf32> -> vector<16x32xf32>
    %c0_134 = arith.constant 0 : index
    %c0_135 = arith.constant 0 : index
    %195 = vector.load %arg18[%c0_134, %c0_135] : memref<1x32xf32, #tpu.memory_space<vmem>>, vector<1x32xf32>
    %196 = vector.broadcast %195 : vector<1x32xf32> to vector<16x32xf32>
    %197 = arith.addf %194, %196 : vector<16x32xf32>
    %198 = arith.addf %183, %197 : vector<16x32xf32>
    %cst_136 = arith.constant dense<0.000000e+00> : vector<16xf32>
    %199 = vector.multi_reduction <add>, %198, %cst_136 [1] : vector<16x32xf32> to vector<16xf32>
    %200 = vector.shape_cast %199 : vector<16xf32> to vector<16x1xf32>
    %cst_137 = arith.constant 3.200000e+01 : f32
    %201 = vector.broadcast %cst_137 : f32 to vector<16x1xf32>
    %202 = arith.divf %200, %201 : vector<16x1xf32>
    %203 = vector.broadcast %202 : vector<16x1xf32> to vector<16x32xf32>
    %204 = arith.subf %198, %203 : vector<16x32xf32>
    %205 = arith.mulf %204, %204 : vector<16x32xf32>
    %cst_138 = arith.constant dense<0.000000e+00> : vector<16xf32>
    %206 = vector.multi_reduction <add>, %205, %cst_138 [1] : vector<16x32xf32> to vector<16xf32>
    %207 = vector.shape_cast %206 : vector<16xf32> to vector<16x1xf32>
    %cst_139 = arith.constant 3.200000e+01 : f32
    %208 = vector.broadcast %cst_139 : f32 to vector<16x1xf32>
    %209 = arith.divf %207, %208 : vector<16x1xf32>
    %210 = vector.broadcast %202 : vector<16x1xf32> to vector<16x32xf32>
    %211 = arith.subf %198, %210 : vector<16x32xf32>
    %cst_140 = arith.constant 9.99999974E-6 : f32
    %212 = vector.broadcast %cst_140 : f32 to vector<16x1xf32>
    %213 = arith.addf %209, %212 : vector<16x1xf32>
    %214 = math.rsqrt %213 : vector<16x1xf32>
    %215 = vector.broadcast %214 : vector<16x1xf32> to vector<16x32xf32>
    %216 = arith.mulf %211, %215 : vector<16x32xf32>
    %c0_141 = arith.constant 0 : index
    %c0_142 = arith.constant 0 : index
    %217 = vector.load %arg19[%c0_141, %c0_142] : memref<1x32xf32, #tpu.memory_space<vmem>>, vector<1x32xf32>
    %218 = vector.broadcast %217 : vector<1x32xf32> to vector<16x32xf32>
    %219 = arith.mulf %216, %218 : vector<16x32xf32>
    %c0_143 = arith.constant 0 : index
    %c0_144 = arith.constant 0 : index
    %220 = vector.load %arg20[%c0_143, %c0_144] : memref<1x32xf32, #tpu.memory_space<vmem>>, vector<1x32xf32>
    %221 = vector.broadcast %220 : vector<1x32xf32> to vector<16x32xf32>
    %222 = arith.addf %219, %221 : vector<16x32xf32>
    %c0_145 = arith.constant 0 : index
    %c0_146 = arith.constant 0 : index
    %223 = vector.load %arg21[%c0_145, %c0_146] : memref<32x128xf32, #tpu.memory_space<vmem>>, vector<32x128xf32>
    %cst_147 = arith.constant dense<0.000000e+00> : vector<16x128xf32>
    %224 = tpu.matmul %222, %223, %cst_147 {dimension_numbers = #tpu.dot_dimension_numbers<[1], [0], [0], [1], [0, 0, 1, 1], [], []>} : vector<16x32xf32>, vector<32x128xf32>, vector<16x128xf32> -> vector<16x128xf32>
    %c0_148 = arith.constant 0 : index
    %c0_149 = arith.constant 0 : index
    %225 = vector.load %arg22[%c0_148, %c0_149] : memref<1x128xf32, #tpu.memory_space<vmem>>, vector<1x128xf32>
    %226 = vector.broadcast %225 : vector<1x128xf32> to vector<16x128xf32>
    %227 = arith.addf %224, %226 : vector<16x128xf32>
    %c0_150 = arith.constant 0 : index
    %c0_151 = arith.constant 0 : index
    %228 = vector.load %arg23[%c0_150, %c0_151] : memref<16x128xf32, #tpu.memory_space<vmem>>, vector<16x128xf32>
    tpu.vector_store %arg23[%c0_150, %c0_151], %227 {strides = array<i32>} : memref<16x128xf32, #tpu.memory_space<vmem>>, vector<16x128xf32>,
    return
  }
  func.func @transform_0(%arg0: i32) -> (i32, i32) {
    %c0_i32 = arith.constant 0 : i32
    %c0_i32_0 = arith.constant 0 : i32
    %c0_i32_1 = arith.constant 0 : i32
    return %c0_i32, %c0_i32_0 : i32, i32
  }
  func.func @transform_1(%arg0: i32) -> (i32, i32) {
    %c0_i32 = arith.constant 0 : i32
    %c0_i32_0 = arith.constant 0 : i32
    %c0_i32_1 = arith.constant 0 : i32
    return %c0_i32, %c0_i32_0 : i32, i32
  }
  func.func @transform_2(%arg0: i32) -> (i32, i32) {
    %c0_i32 = arith.constant 0 : i32
    %c0_i32_0 = arith.constant 0 : i32
    %c0_i32_1 = arith.constant 0 : i32
    return %c0_i32, %c0_i32_0 : i32, i32
  }
  func.func @transform_3(%arg0: i32) -> (i32, i32) {
    %c0_i32 = arith.constant 0 : i32
    %c0_i32_0 = arith.constant 0 : i32
    %c0_i32_1 = arith.constant 0 : i32
    return %c0_i32, %c0_i32_0 : i32, i32
  }
  func.func @transform_4(%arg0: i32) -> (i32, i32, i32) {
    %c0_i32 = arith.constant 0 : i32
    %c0_i32_0 = arith.constant 0 : i32
    %c0_i32_1 = arith.constant 0 : i32
    %c0_i32_2 = arith.constant 0 : i32
    return %c0_i32, %c0_i32_0, %c0_i32_1 : i32, i32, i32
  }
  func.func @transform_5(%arg0: i32) -> (i32, i32, i32) {
    %c0_i32 = arith.constant 0 : i32
    %c0_i32_0 = arith.constant 0 : i32
    %c0_i32_1 = arith.constant 0 : i32
    %c0_i32_2 = arith.constant 0 : i32
    return %c0_i32, %c0_i32_0, %c0_i32_1 : i32, i32, i32
  }
  func.func @transform_6(%arg0: i32) -> (i32, i32, i32) {
    %c0_i32 = arith.constant 0 : i32
    %c0_i32_0 = arith.constant 0 : i32
    %c0_i32_1 = arith.constant 0 : i32
    %c0_i32_2 = arith.constant 0 : i32
    return %c0_i32, %c0_i32_0, %c0_i32_1 : i32, i32, i32
  }
  func.func @transform_7(%arg0: i32) -> (i32, i32, i32) {
    %c0_i32 = arith.constant 0 : i32
    %c0_i32_0 = arith.constant 0 : i32
    %c0_i32_1 = arith.constant 0 : i32
    %c0_i32_2 = arith.constant 0 : i32
    return %c0_i32, %c0_i32_0, %c0_i32_1 : i32, i32, i32
  }
  func.func @transform_8(%arg0: i32) -> (i32, i32, i32) {
    %c0_i32 = arith.constant 0 : i32
    %c0_i32_0 = arith.constant 0 : i32
    %c0_i32_1 = arith.constant 0 : i32
    %c0_i32_2 = arith.constant 0 : i32
    return %c0_i32, %c0_i32_0, %c0_i32_1 : i32, i32, i32
  }
  func.func @transform_9(%arg0: i32) -> (i32, i32, i32) {
    %c0_i32 = arith.constant 0 : i32
    %c0_i32_0 = arith.constant 0 : i32
    %c0_i32_1 = arith.constant 0 : i32
    %c0_i32_2 = arith.constant 0 : i32
    return %c0_i32, %c0_i32_0, %c0_i32_1 : i32, i32, i32
  }
  func.func @transform_10(%arg0: i32) -> (i32, i32) {
    %c0_i32 = arith.constant 0 : i32
    %c0_i32_0 = arith.constant 0 : i32
    %c0_i32_1 = arith.constant 0 : i32
    return %c0_i32, %c0_i32_0 : i32, i32
  }
  func.func @transform_11(%arg0: i32) -> (i32, i32) {
    %c0_i32 = arith.constant 0 : i32
    %c0_i32_0 = arith.constant 0 : i32
    %c0_i32_1 = arith.constant 0 : i32
    return %c0_i32, %c0_i32_0 : i32, i32
  }
  func.func @transform_12(%arg0: i32) -> (i32, i32) {
    %c0_i32 = arith.constant 0 : i32
    %c0_i32_0 = arith.constant 0 : i32
    %c0_i32_1 = arith.constant 0 : i32
    return %c0_i32, %c0_i32_0 : i32, i32
  }
  func.func @transform_13(%arg0: i32) -> (i32, i32) {
    %c0_i32 = arith.constant 0 : i32
    %c0_i32_0 = arith.constant 0 : i32
    %c0_i32_1 = arith.constant 0 : i32
    return %c0_i32, %c0_i32_0 : i32, i32
  }
  func.func @transform_14(%arg0: i32) -> (i32, i32) {
    %c0_i32 = arith.constant 0 : i32
    %c0_i32_0 = arith.constant 0 : i32
    %c0_i32_1 = arith.constant 0 : i32
    return %c0_i32, %c0_i32_0 : i32, i32
  }
  func.func @transform_15(%arg0: i32) -> (i32, i32) {
    %c0_i32 = arith.constant 0 : i32
    %c0_i32_0 = arith.constant 0 : i32
    %c0_i32_1 = arith.constant 0 : i32
    return %c0_i32, %c0_i32_0 : i32, i32
  }
  func.func @transform_16(%arg0: i32) -> (i32, i32) {
    %c0_i32 = arith.constant 0 : i32
    %c0_i32_0 = arith.constant 0 : i32
    %c0_i32_1 = arith.constant 0 : i32
    return %c0_i32, %c0_i32_0 : i32, i32
  }
  func.func @transform_17(%arg0: i32) -> (i32, i32) {
    %c0_i32 = arith.constant 0 : i32
    %c0_i32_0 = arith.constant 0 : i32
    %c0_i32_1 = arith.constant 0 : i32
    return %c0_i32, %c0_i32_0 : i32, i32
  }
  func.func @transform_18(%arg0: i32) -> (i32, i32) {
    %c0_i32 = arith.constant 0 : i32
    %c0_i32_0 = arith.constant 0 : i32
    %c0_i32_1 = arith.constant 0 : i32
    return %c0_i32, %c0_i32_0 : i32, i32
  }
  func.func @transform_19(%arg0: i32) -> (i32, i32) {
    %c0_i32 = arith.constant 0 : i32
    %c0_i32_0 = arith.constant 0 : i32
    %c0_i32_1 = arith.constant 0 : i32
    return %c0_i32, %c0_i32_0 : i32, i32
  }
  func.func @transform_20(%arg0: i32) -> (i32, i32) {
    %c0_i32 = arith.constant 0 : i32
    %c0_i32_0 = arith.constant 0 : i32
    %c0_i32_1 = arith.constant 0 : i32
    return %c0_i32, %c0_i32_0 : i32, i32
  }
  func.func @transform_21(%arg0: i32) -> (i32, i32) {
    %c0_i32 = arith.constant 0 : i32
    %c0_i32_0 = arith.constant 0 : i32
    %c0_i32_1 = arith.constant 0 : i32
    return %c0_i32, %c0_i32_0 : i32, i32
  }
  func.func @transform_22(%arg0: i32) -> (i32, i32) {
    %c0_i32 = arith.constant 0 : i32
    %c0_i32_0 = arith.constant 0 : i32
    %c0_i32_1 = arith.constant 0 : i32
    return %c0_i32, %c0_i32_0 : i32, i32
  }
}

</mosaic_0001>

<llo_original>
// kernel: tpu_custom_call.1
$region0: #{tpu_custom_call.1}
  #allocation0 [shape = 'u32[]', space=smem, size = 0x4, offset = 0x4, fixed_abs, tag = 'smem constant byte address 0x4 - core index']
  #allocation1 [shape = 'u32[144,128]{1,0:T(1,128)}', space=vmem, size = 0x12000, scoped, tag = 'internal scratch']
  %s0 = inlined_call_operand.vmem [shape: f32[16,16], index: 0, kind: input, shape index: {}]
  %s1 = inlined_call_operand.vmem [shape: f32[16,16], index: 1, kind: input, shape index: {}]
  %s2 = inlined_call_operand.vmem [shape: f32[16,32], index: 2, kind: input, shape index: {}]
  %s3 = inlined_call_operand.vmem [shape: f32[1,32], index: 3, kind: input, shape index: {}]
  %s4 = inlined_call_operand.vmem [shape: f32[4,32,8], index: 4, kind: input, shape index: {}]
  %s5 = inlined_call_operand.vmem [shape: f32[4,32,8], index: 5, kind: input, shape index: {}]
  %s6 = inlined_call_operand.vmem [shape: f32[4,32,8], index: 6, kind: input, shape index: {}]
  %s7 = inlined_call_operand.vmem [shape: f32[4,1,8], index: 7, kind: input, shape index: {}]
  %s8 = inlined_call_operand.vmem [shape: f32[4,1,8], index: 8, kind: input, shape index: {}]
  %s9 = inlined_call_operand.vmem [shape: f32[4,1,8], index: 9, kind: input, shape index: {}]
  %s10 = inlined_call_operand.vmem [shape: f32[32,32], index: 10, kind: input, shape index: {}]
  %s11 = inlined_call_operand.vmem [shape: f32[1,32], index: 11, kind: input, shape index: {}]
  %s12 = inlined_call_operand.vmem [shape: f32[1,32], index: 12, kind: input, shape index: {}]
  %s13 = inlined_call_operand.vmem [shape: f32[1,32], index: 13, kind: input, shape index: {}]
  %s14 = inlined_call_operand.vmem [shape: bf16[32,2048], index: 14, kind: input, shape index: {}]
  %s15 = inlined_call_operand.vmem [shape: f32[1,2048], index: 15, kind: input, shape index: {}]
  %s16 = inlined_call_operand.vmem [shape: bf16[2048,32], index: 16, kind: input, shape index: {}]
  %s17 = inlined_call_operand.vmem [shape: f32[1,32], index: 17, kind: input, shape index: {}]
  %s18 = inlined_call_operand.vmem [shape: f32[1,32], index: 18, kind: input, shape index: {}]
  %s19 = inlined_call_operand.vmem [shape: f32[1,32], index: 19, kind: input, shape index: {}]
  %s20 = inlined_call_operand.vmem [shape: f32[32,128], index: 20, kind: input, shape index: {}]
  %s21 = inlined_call_operand.vmem [shape: f32[1,128], index: 21, kind: input, shape index: {}]
  %s22 = inlined_call_operand.hbm [shape: f32[16,128], index: 22, kind: output, shape index: {}]
  %s23 = sld [smem:[#allocation0]]
  $region98: #{tpu_custom_call.1} parent=0
    _
  %s25 = ssub.s32 1, %s23
  %s26 = scalar_select 0, %s25, %s23
  $region1: #{tpu_custom_call.1} parent=0
    #allocation2 [shape = 'u8[8192]{0}', space=vmem, size = 0x2000, scoped, tag = 'output window, operand 0, single buffered']
    #allocation3 [shape = 's32[1]{0}', space=sflag, size = 0x4, scoped, tag = 'scoped memory for tpu_custom_call.1']
    %27 = vsyncpa [#allocation3], 0
    // Predicated region
    $region2: #{tpu_custom_call.1} parent=1 // pred_check
      _
    $region3: #{tpu_custom_call.1} parent=1 // pred_check_branch
      %29 = sbr.rel (0) target = $region5
    $region4: #{tpu_custom_call.1} parent=1 // pred_region
      _
    $region5: #{tpu_custom_call.1} parent=1 // pred_fallthru
      _
    // Predicated region
    $region6: #{tpu_custom_call.1} parent=1 // pred_check
      _
    $region7: #{tpu_custom_call.1} parent=1 // pred_check_branch
      %31 = sbr.rel (0) target = $region9
    $region8: #{tpu_custom_call.1} parent=1 // pred_region
      _
    $region9: #{tpu_custom_call.1} parent=1 // pred_fallthru
      _
    // Predicated region
    $region10: #{tpu_custom_call.1} parent=1 // pred_check
      _
    $region11: #{tpu_custom_call.1} parent=1 // pred_check_branch
      %33 = sbr.rel (0) target = $region13
    $region12: #{tpu_custom_call.1} parent=1 // pred_region
      _
    $region13: #{tpu_custom_call.1} parent=1 // pred_fallthru
      _
    // Predicated region
    $region14: #{tpu_custom_call.1} parent=1 // pred_check
      _
    $region15: #{tpu_custom_call.1} parent=1 // pred_check_branch
      %35 = sbr.rel (0) target = $region17
    $region16: #{tpu_custom_call.1} parent=1 // pred_region
      _
    $region17: #{tpu_custom_call.1} parent=1 // pred_fallthru
      _
    // Predicated region
    $region18: #{tpu_custom_call.1} parent=1 // pred_check
      _
    $region19: #{tpu_custom_call.1} parent=1 // pred_check_branch
      %37 = sbr.rel (0) target = $region21
    $region20: #{tpu_custom_call.1} parent=1 // pred_region
      _
    $region21: #{tpu_custom_call.1} parent=1 // pred_fallthru
      _
    // Predicated region
    $region22: #{tpu_custom_call.1} parent=1 // pred_check
      _
    $region23: #{tpu_custom_call.1} parent=1 // pred_check_branch
      %39 = sbr.rel (0) target = $region25
    $region24: #{tpu_custom_call.1} parent=1 // pred_region
      _
    $region25: #{tpu_custom_call.1} parent=1 // pred_fallthru
      _
    // Predicated region
    $region26: #{tpu_custom_call.1} parent=1 // pred_check
      _
    $region27: #{tpu_custom_call.1} parent=1 // pred_check_branch
      %41 = sbr.rel (0) target = $region29
    $region28: #{tpu_custom_call.1} parent=1 // pred_region
      _
    $region29: #{tpu_custom_call.1} parent=1 // pred_fallthru
      _
    // Predicated region
    $region30: #{tpu_custom_call.1} parent=1 // pred_check
      _
    $region31: #{tpu_custom_call.1} parent=1 // pred_check_branch
      %43 = sbr.rel (0) target = $region33
    $region32: #{tpu_custom_call.1} parent=1 // pred_region
      _
    $region33: #{tpu_custom_call.1} parent=1 // pred_fallthru
      _
    // Predicated region
    $region34: #{tpu_custom_call.1} parent=1 // pred_check
      _
    $region35: #{tpu_custom_call.1} parent=1 // pred_check_branch
      %45 = sbr.rel (0) target = $region37
    $region36: #{tpu_custom_call.1} parent=1 // pred_region
      _
    $region37: #{tpu_custom_call.1} parent=1 // pred_fallthru
      _
    // Predicated region
    $region38: #{tpu_custom_call.1} parent=1 // pred_check
      _
    $region39: #{tpu_custom_call.1} parent=1 // pred_check_branch
      %47 = sbr.rel (0) target = $region41
    $region40: #{tpu_custom_call.1} parent=1 // pred_region
      _
    $region41: #{tpu_custom_call.1} parent=1 // pred_fallthru
      _
    // Predicated region
    $region42: #{tpu_custom_call.1} parent=1 // pred_check
      _
    $region43: #{tpu_custom_call.1} parent=1 // pred_check_branch
      %49 = sbr.rel (0) target = $region45
    $region44: #{tpu_custom_call.1} parent=1 // pred_region
      _
    $region45: #{tpu_custom_call.1} parent=1 // pred_fallthru
      _
    // Predicated region
    $region46: #{tpu_custom_call.1} parent=1 // pred_check
      _
    $region47: #{tpu_custom_call.1} parent=1 // pred_check_branch
      %51 = sbr.rel (0) target = $region49
    $region48: #{tpu_custom_call.1} parent=1 // pred_region
      _
    $region49: #{tpu_custom_call.1} parent=1 // pred_fallthru
      _
    // Predicated region
    $region50: #{tpu_custom_call.1} parent=1 // pred_check
      _
    $region51: #{tpu_custom_call.1} parent=1 // pred_check_branch
      %53 = sbr.rel (0) target = $region53
    $region52: #{tpu_custom_call.1} parent=1 // pred_region
      _
    $region53: #{tpu_custom_call.1} parent=1 // pred_fallthru
      _
    // Predicated region
    $region54: #{tpu_custom_call.1} parent=1 // pred_check
      _
    $region55: #{tpu_custom_call.1} parent=1 // pred_check_branch
      %55 = sbr.rel (0) target = $region57
    $region56: #{tpu_custom_call.1} parent=1 // pred_region
      _
    $region57: #{tpu_custom_call.1} parent=1 // pred_fallthru
      _
    // Predicated region
    $region58: #{tpu_custom_call.1} parent=1 // pred_check
      _
    $region59: #{tpu_custom_call.1} parent=1 // pred_check_branch
      %57 = sbr.rel (0) target = $region61
    $region60: #{tpu_custom_call.1} parent=1 // pred_region
      _
    $region61: #{tpu_custom_call.1} parent=1 // pred_fallthru
      _
    // Predicated region
    $region62: #{tpu_custom_call.1} parent=1 // pred_check
      _
    $region63: #{tpu_custom_call.1} parent=1 // pred_check_branch
      %59 = sbr.rel (0) target = $region65
    $region64: #{tpu_custom_call.1} parent=1 // pred_region
      _
    $region65: #{tpu_custom_call.1} parent=1 // pred_fallthru
      _
    // Predicated region
    $region66: #{tpu_custom_call.1} parent=1 // pred_check
      _
    $region67: #{tpu_custom_call.1} parent=1 // pred_check_branch
      %61 = sbr.rel (0) target = $region69
    $region68: #{tpu_custom_call.1} parent=1 // pred_region
      _
    $region69: #{tpu_custom_call.1} parent=1 // pred_fallthru
      _
    // Predicated region
    $region70: #{tpu_custom_call.1} parent=1 // pred_check
      _
    $region71: #{tpu_custom_call.1} parent=1 // pred_check_branch
      %63 = sbr.rel (0) target = $region73
    $region72: #{tpu_custom_call.1} parent=1 // pred_region
      _
    $region73: #{tpu_custom_call.1} parent=1 // pred_fallthru
      _
    // Predicated region
    $region74: #{tpu_custom_call.1} parent=1 // pred_check
      _
    $region75: #{tpu_custom_call.1} parent=1 // pred_check_branch
      %65 = sbr.rel (0) target = $region77
    $region76: #{tpu_custom_call.1} parent=1 // pred_region
      _
    $region77: #{tpu_custom_call.1} parent=1 // pred_fallthru
      _
    // Predicated region
    $region78: #{tpu_custom_call.1} parent=1 // pred_check
      _
    $region79: #{tpu_custom_call.1} parent=1 // pred_check_branch
      %67 = sbr.rel (0) target = $region81
    $region80: #{tpu_custom_call.1} parent=1 // pred_region
      _
    $region81: #{tpu_custom_call.1} parent=1 // pred_fallthru
      _
    // Predicated region
    $region82: #{tpu_custom_call.1} parent=1 // pred_check
      _
    $region83: #{tpu_custom_call.1} parent=1 // pred_check_branch
      %69 = sbr.rel (0) target = $region85
    $region84: #{tpu_custom_call.1} parent=1 // pred_region
      _
    $region85: #{tpu_custom_call.1} parent=1 // pred_fallthru
      _
    // Predicated region
    $region86: #{tpu_custom_call.1} parent=1 // pred_check
      _
    $region87: #{tpu_custom_call.1} parent=1 // pred_check_branch
      %71 = sbr.rel (0) target = $region89
    $region88: #{tpu_custom_call.1} parent=1 // pred_region
      _
    $region89: #{tpu_custom_call.1} parent=1 // pred_fallthru
      _
    %v73 = vld [vmem:[%s0] sm:$0xff]
    %v74 = vld [vmem:[%s0 + $0x8] sm:$0xff]
    %v75 = vld [vmem:[%s2] sm:$0xff]
    %v76 = vld [vmem:[%s2 + $0x8] sm:$0xff]
    %v77 = vld [vmem:[%s3] sm:$0x1]
    %v79 = vlaneseq
    %v80 = vshrl.u32 %v79, 7
    %v81 = vsub.s32 0, %v80
    %v82 = vrot.slane %v77, %v81
    %vm84 = vcmask 130048
    %v86 = vsel %vm84, %v73, 0
    %v89 = vsel %vm84, %v74, 0
    %91 = vmatprep.subr.mxu0 0.0
    %92 = vmatpush1.msra.mxu0 %v75
    %93 = vmatprep.subr.mxu0 0.0
    %94 = vmatpush1.msra.mxu0 %v76
    %95 = vmatprep.subr.mxu0 0.0
    %96 = vmatpush1.msra.mxu0 0.0
    %97 = vmatprep.subr.mxu0 0.0
    %98 = vmatpush1.msra.mxu0 0.0
    %99 = vmatprep.subr.mxu0 0.0
    %100 = vmatpush1.msra.mxu0 0.0
    %101 = vmatprep.subr.mxu0 0.0
    %102 = vmatpush1.msra.mxu0 0.0
    %103 = vmatprep.subr.mxu0 0.0
    %104 = vmatpush1.msra.mxu0 0.0
    %105 = vmatprep.subr.mxu0 0.0
    %106 = vmatpush1.msra.mxu0 0.0
    %107 = vmatprep.subr.mxu0 0.0
    %108 = vmatpush1.msra.mxu0 0.0
    %109 = vmatprep.subr.mxu0 0.0
    %110 = vmatpush1.msra.mxu0 0.0
    %111 = vmatprep.subr.mxu0 0.0
    %112 = vmatpush1.msra.mxu0 0.0
    %113 = vmatprep.subr.mxu0 0.0
    %114 = vmatpush1.msra.mxu0 0.0
    %115 = vmatprep.subr.mxu0 0.0
    %116 = vmatpush1.msra.mxu0 0.0
    %117 = vmatprep.subr.mxu0 0.0
    %118 = vmatpush1.msra.mxu0 0.0
    %119 = vmatprep.subr.mxu0 0.0
    %120 = vmatpush1.msra.mxu0 0.0
    %121 = vmatprep.subr.mxu0 0.0
    %122 = vmatpush1.msra.mxu0 0.0
    %123 = vmatprep.subr.mxu0 0.0
    %124 = vmatpush1.msra.mxu0 0.0
    %125 = vmatprep.subr.mxu0 0.0
    %126 = vmatpush1.msra.mxu0 0.0
    %127 = vmatprep.subr.mxu0 0.0
    %128 = vmatpush1.msra.mxu0 0.0
    %129 = vmatprep.subr.mxu0 0.0
    %130 = vmatpush1.msra.mxu0 0.0
    %131 = vmatprep.subr.mxu0 0.0
    %132 = vmatpush1.msra.mxu0 0.0
    %133 = vmatprep.subr.mxu0 0.0
    %134 = vmatpush1.msra.mxu0 0.0
    %135 = vmatprep.subr.mxu0 0.0
    %136 = vmatpush1.msra.mxu0 0.0
    %137 = vmatprep.subr.mxu0 0.0
    %138 = vmatpush1.msra.mxu0 0.0
    %139 = vmatprep.subr.mxu0 0.0
    %140 = vmatpush1.msra.mxu0 0.0
    %141 = vmatprep.subr.mxu0 0.0
    %142 = vmatpush1.msra.mxu0 0.0
    %143 = vmatprep.subr.mxu0 0.0
    %144 = vmatpush1.msra.mxu0 0.0
    %145 = vmatprep.subr.mxu0 0.0
    %146 = vmatpush1.msra.mxu0 0.0
    %147 = vmatprep.subr.mxu0 0.0
    %148 = vmatpush1.msra.mxu0 0.0
    %149 = vmatprep.subr.mxu0 0.0
    %150 = vmatpush1.msra.mxu0 0.0
    %151 = vmatprep.subr.mxu0 0.0
    %152 = vmatpush1.msra.mxu0 0.0
    %153 = vmatprep.subr.mxu0 0.0
    %154 = vmatpush1.msra.mxu0 0.0
    %155 = vmatprep.mubr.f32.mxu0 0.0
    %156 = vmatmul.mubr.f32.gmra.mrb[0].mxu0 %v86
    %v157 = vpop.f32.mrb[0].mxu0
    %v158 = vadd.f32 %v82, %v157
    %v159 = vpop.f32.mrb[0].mxu0
    %160 = vmatprep.mubr.f32.mxu0 0.0
    %161 = vmatmul.mubr.f32.gmra.mrb[0].mxu0 %v89
    %v162 = vpop.f32.mrb[0].mxu0
    %v163 = vadd.f32 %v82, %v162
    %v164 = vpop.f32.mrb[0].mxu0
    %165 = vdwg.mxu0
    %v166 = vld [vmem:[%s1] sm:$0xff]
    %v167 = vld [vmem:[%s1 + $0x8] sm:$0xff]
    %v168 = vld [vmem:[%s4] sm:$0xff]
    %v169 = vld [vmem:[%s4 + $0x8] sm:$0xff]
    %v170 = vld [vmem:[%s4 + $0x10] sm:$0xff]
    %v171 = vld [vmem:[%s4 + $0x18] sm:$0xff]
    %v172 = vld [vmem:[%s7] sm:$0x1]
    %v174 = vlaneseq
    %v175 = vshrl.u32 %v174, 7
    %v176 = vsub.s32 0, %v175
    %v177 = vrot.slane %v172, %v176
    %vm179 = vcmask 261120
    %v181 = vsel %vm179, %v158, 0
    %v184 = vsel %vm179, %v163, 0
    %186 = vmatprep.subr.mxu0 0.0
    %187 = vmatpush1.msra.mxu0 %v168
    %188 = vmatprep.subr.mxu0 0.0
    %189 = vmatpush1.msra.mxu0 %v169
    %190 = vmatprep.subr.mxu0 0.0
    %191 = vmatpush1.msra.mxu0 %v170
    %192 = vmatprep.subr.mxu0 0.0
    %193 = vmatpush1.msra.mxu0 %v171
    %194 = vmatprep.subr.mxu0 0.0
    %195 = vmatpush1.msra.mxu0 0.0
    %196 = vmatprep.subr.mxu0 0.0
    %197 = vmatpush1.msra.mxu0 0.0
    %198 = vmatprep.subr.mxu0 0.0
    %199 = vmatpush1.msra.mxu0 0.0
    %200 = vmatprep.subr.mxu0 0.0
    %201 = vmatpush1.msra.mxu0 0.0
    %202 = vmatprep.subr.mxu0 0.0
    %203 = vmatpush1.msra.mxu0 0.0
    %204 = vmatprep.subr.mxu0 0.0
    %205 = vmatpush1.msra.mxu0 0.0
    %206 = vmatprep.subr.mxu0 0.0
    %207 = vmatpush1.msra.mxu0 0.0
    %208 = vmatprep.subr.mxu0 0.0
    %209 = vmatpush1.msra.mxu0 0.0
    %210 = vmatprep.subr.mxu0 0.0
    %211 = vmatpush1.msra.mxu0 0.0
    %212 = vmatprep.subr.mxu0 0.0
    %213 = vmatpush1.msra.mxu0 0.0
    %214 = vmatprep.subr.mxu0 0.0
    %215 = vmatpush1.msra.mxu0 0.0
    %216 = vmatprep.subr.mxu0 0.0
    %217 = vmatpush1.msra.mxu0 0.0
    %218 = vmatprep.subr.mxu0 0.0
    %219 = vmatpush1.msra.mxu0 0.0
    %220 = vmatprep.subr.mxu0 0.0
    %221 = vmatpush1.msra.mxu0 0.0
    %222 = vmatprep.subr.mxu0 0.0
    %223 = vmatpush1.msra.mxu0 0.0
    %224 = vmatprep.subr.mxu0 0.0
    %225 = vmatpush1.msra.mxu0 0.0
    %226 = vmatprep.subr.mxu0 0.0
    %227 = vmatpush1.msra.mxu0 0.0
    %228 = vmatprep.subr.mxu0 0.0
    %229 = vmatpush1.msra.mxu0 0.0
    %230 = vmatprep.subr.mxu0 0.0
    %231 = vmatpush1.msra.mxu0 0.0
    %232 = vmatprep.subr.mxu0 0.0
    %233 = vmatpush1.msra.mxu0 0.0
    %234 = vmatprep.subr.mxu0 0.0
    %235 = vmatpush1.msra.mxu0 0.0
    %236 = vmatprep.subr.mxu0 0.0
    %237 = vmatpush1.msra.mxu0 0.0
    %238 = vmatprep.subr.mxu0 0.0
    %239 = vmatpush1.msra.mxu0 0.0
    %240 = vmatprep.subr.mxu0 0.0
    %241 = vmatpush1.msra.mxu0 0.0
    %242 = vmatprep.subr.mxu0 0.0
    %243 = vmatpush1.msra.mxu0 0.0
    %244 = vmatprep.subr.mxu0 0.0
    %245 = vmatpush1.msra.mxu0 0.0
    %246 = vmatprep.subr.mxu0 0.0
    %247 = vmatpush1.msra.mxu0 0.0
    %248 = vmatprep.subr.mxu0 0.0
    %249 = vmatpush1.msra.mxu0 0.0
    %250 = vmatprep.mubr.f32.mxu0 0.0
    %251 = vmatmul.mubr.f32.gmra.mrb[0].mxu0 %v181
    %v252 = vpop.f32.mrb[0].mxu0
    %v253 = vadd.f32 %v177, %v252
    %v254 = vpop.f32.mrb[0].mxu0
    %255 = vmatprep.mubr.f32.mxu0 0.0
    %256 = vmatmul.mubr.f32.gmra.mrb[0].mxu0 %v184
    %v257 = vpop.f32.mrb[0].mxu0
    %v258 = vadd.f32 %v177, %v257
    %v259 = vpop.f32.mrb[0].mxu0
    %260 = vdwg.mxu0
    %v261 = vld [vmem:[%s5] sm:$0xff]
    %v262 = vld [vmem:[%s5 + $0x8] sm:$0xff]
    %v263 = vld [vmem:[%s5 + $0x10] sm:$0xff]
    %v264 = vld [vmem:[%s5 + $0x18] sm:$0xff]
    %v265 = vld [vmem:[%s8] sm:$0x1]
    %v267 = vlaneseq
    %v268 = vshrl.u32 %v267, 7
    %v269 = vsub.s32 0, %v268
    %v270 = vrot.slane %v265, %v269
    %272 = vmatprep.subr.mxu0 0.0
    %273 = vmatpush1.msra.mxu0 %v261
    %274 = vmatprep.subr.mxu0 0.0
    %275 = vmatpush1.msra.mxu0 %v262
    %276 = vmatprep.subr.mxu0 0.0
    %277 = vmatpush1.msra.mxu0 %v263
    %278 = vmatprep.subr.mxu0 0.0
    %279 = vmatpush1.msra.mxu0 %v264
    %280 = vmatprep.subr.mxu0 0.0
    %281 = vmatpush1.msra.mxu0 0.0
    %282 = vmatprep.subr.mxu0 0.0
    %283 = vmatpush1.msra.mxu0 0.0
    %284 = vmatprep.subr.mxu0 0.0
    %285 = vmatpush1.msra.mxu0 0.0
    %286 = vmatprep.subr.mxu0 0.0
    %287 = vmatpush1.msra.mxu0 0.0
    %288 = vmatprep.subr.mxu0 0.0
    %289 = vmatpush1.msra.mxu0 0.0
    %290 = vmatprep.subr.mxu0 0.0
    %291 = vmatpush1.msra.mxu0 0.0
    %292 = vmatprep.subr.mxu0 0.0
    %293 = vmatpush1.msra.mxu0 0.0
    %294 = vmatprep.subr.mxu0 0.0
    %295 = vmatpush1.msra.mxu0 0.0
    %296 = vmatprep.subr.mxu0 0.0
    %297 = vmatpush1.msra.mxu0 0.0
    %298 = vmatprep.subr.mxu0 0.0
    %299 = vmatpush1.msra.mxu0 0.0
    %300 = vmatprep.subr.mxu0 0.0
    %301 = vmatpush1.msra.mxu0 0.0
    %302 = vmatprep.subr.mxu0 0.0
    %303 = vmatpush1.msra.mxu0 0.0
    %304 = vmatprep.subr.mxu0 0.0
    %305 = vmatpush1.msra.mxu0 0.0
    %306 = vmatprep.subr.mxu0 0.0
    %307 = vmatpush1.msra.mxu0 0.0
    %308 = vmatprep.subr.mxu0 0.0
    %309 = vmatpush1.msra.mxu0 0.0
    %310 = vmatprep.subr.mxu0 0.0
    %311 = vmatpush1.msra.mxu0 0.0
    %312 = vmatprep.subr.mxu0 0.0
    %313 = vmatpush1.msra.mxu0 0.0
    %314 = vmatprep.subr.mxu0 0.0
    %315 = vmatpush1.msra.mxu0 0.0
    %316 = vmatprep.subr.mxu0 0.0
    %317 = vmatpush1.msra.mxu0 0.0
    %318 = vmatprep.subr.mxu0 0.0
    %319 = vmatpush1.msra.mxu0 0.0
    %320 = vmatprep.subr.mxu0 0.0
    %321 = vmatpush1.msra.mxu0 0.0
    %322 = vmatprep.subr.mxu0 0.0
    %323 = vmatpush1.msra.mxu0 0.0
    %324 = vmatprep.subr.mxu0 0.0
    %325 = vmatpush1.msra.mxu0 0.0
    %326 = vmatprep.subr.mxu0 0.0
    %327 = vmatpush1.msra.mxu0 0.0
    %328 = vmatprep.subr.mxu0 0.0
    %329 = vmatpush1.msra.mxu0 0.0
    %330 = vmatprep.subr.mxu0 0.0
    %331 = vmatpush1.msra.mxu0 0.0
    %332 = vmatprep.subr.mxu0 0.0
    %333 = vmatpush1.msra.mxu0 0.0
    %334 = vmatprep.subr.mxu0 0.0
    %335 = vmatpush1.msra.mxu0 0.0
    %336 = vmatprep.mubr.f32.mxu0 0.0
    %337 = vmatmul.mubr.f32.gmra.mrb[0].mxu0 %v181
    %v338 = vpop.f32.mrb[0].mxu0
    %v339 = vadd.f32 %v270, %v338
    %v340 = vpop.f32.mrb[0].mxu0
    %341 = vmatprep.mubr.f32.mxu0 0.0
    %342 = vmatmul.mubr.f32.gmra.mrb[0].mxu0 %v184
    %v343 = vpop.f32.mrb[0].mxu0
    %v344 = vadd.f32 %v270, %v343
    %v345 = vpop.f32.mrb[0].mxu0
    %346 = vdwg.mxu0
    %v347 = vld [vmem:[%s6] sm:$0xff]
    %v348 = vld [vmem:[%s6 + $0x8] sm:$0xff]
    %v349 = vld [vmem:[%s6 + $0x10] sm:$0xff]
    %v350 = vld [vmem:[%s6 + $0x18] sm:$0xff]
    %v351 = vld [vmem:[%s9] sm:$0x1]
    %v353 = vlaneseq
    %v354 = vshrl.u32 %v353, 7
    %v355 = vsub.s32 0, %v354
    %v356 = vrot.slane %v351, %v355
    %358 = vmatprep.subr.mxu0 0.0
    %359 = vmatpush1.msra.mxu0 %v347
    %360 = vmatprep.subr.mxu0 0.0
    %361 = vmatpush1.msra.mxu0 %v348
    %362 = vmatprep.subr.mxu0 0.0
    %363 = vmatpush1.msra.mxu0 %v349
    %364 = vmatprep.subr.mxu0 0.0
    %365 = vmatpush1.msra.mxu0 %v350
    %366 = vmatprep.subr.mxu0 0.0
    %367 = vmatpush1.msra.mxu0 0.0
    %368 = vmatprep.subr.mxu0 0.0
    %369 = vmatpush1.msra.mxu0 0.0
    %370 = vmatprep.subr.mxu0 0.0
    %371 = vmatpush1.msra.mxu0 0.0
    %372 = vmatprep.subr.mxu0 0.0
    %373 = vmatpush1.msra.mxu0 0.0
    %374 = vmatprep.subr.mxu0 0.0
    %375 = vmatpush1.msra.mxu0 0.0
    %376 = vmatprep.subr.mxu0 0.0
    %377 = vmatpush1.msra.mxu0 0.0
    %378 = vmatprep.subr.mxu0 0.0
    %379 = vmatpush1.msra.mxu0 0.0
    %380 = vmatprep.subr.mxu0 0.0
    %381 = vmatpush1.msra.mxu0 0.0
    %382 = vmatprep.subr.mxu0 0.0
    %383 = vmatpush1.msra.mxu0 0.0
    %384 = vmatprep.subr.mxu0 0.0
    %385 = vmatpush1.msra.mxu0 0.0
    %386 = vmatprep.subr.mxu0 0.0
    %387 = vmatpush1.msra.mxu0 0.0
    %388 = vmatprep.subr.mxu0 0.0
    %389 = vmatpush1.msra.mxu0 0.0
    %390 = vmatprep.subr.mxu0 0.0
    %391 = vmatpush1.msra.mxu0 0.0
    %392 = vmatprep.subr.mxu0 0.0
    %393 = vmatpush1.msra.mxu0 0.0
    %394 = vmatprep.subr.mxu0 0.0
    %395 = vmatpush1.msra.mxu0 0.0
    %396 = vmatprep.subr.mxu0 0.0
    %397 = vmatpush1.msra.mxu0 0.0
    %398 = vmatprep.subr.mxu0 0.0
    %399 = vmatpush1.msra.mxu0 0.0
    %400 = vmatprep.subr.mxu0 0.0
    %401 = vmatpush1.msra.mxu0 0.0
    %402 = vmatprep.subr.mxu0 0.0
    %403 = vmatpush1.msra.mxu0 0.0
    %404 = vmatprep.subr.mxu0 0.0
    %405 = vmatpush1.msra.mxu0 0.0
    %406 = vmatprep.subr.mxu0 0.0
    %407 = vmatpush1.msra.mxu0 0.0
    %408 = vmatprep.subr.mxu0 0.0
    %409 = vmatpush1.msra.mxu0 0.0
    %410 = vmatprep.subr.mxu0 0.0
    %411 = vmatpush1.msra.mxu0 0.0
    %412 = vmatprep.subr.mxu0 0.0
    %413 = vmatpush1.msra.mxu0 0.0
    %414 = vmatprep.subr.mxu0 0.0
    %415 = vmatpush1.msra.mxu0 0.0
    %416 = vmatprep.subr.mxu0 0.0
    %417 = vmatpush1.msra.mxu0 0.0
    %418 = vmatprep.subr.mxu0 0.0
    %419 = vmatpush1.msra.mxu0 0.0
    %420 = vmatprep.subr.mxu0 0.0
    %421 = vmatpush1.msra.mxu0 0.0
    %422 = vmatprep.mubr.f32.mxu0 0.0
    %423 = vmatmul.mubr.f32.gmra.mrb[0].mxu0 %v181
    %v424 = vpop.f32.mrb[0].mxu0
    %v425 = vadd.f32 %v356, %v424
    %v426 = vpop.f32.mrb[0].mxu0
    %427 = vmatprep.mubr.f32.mxu0 0.0
    %428 = vmatmul.mubr.f32.gmra.mrb[0].mxu0 %v184
    %v429 = vpop.f32.mrb[0].mxu0
    %v430 = vadd.f32 %v356, %v429
    %v431 = vpop.f32.mrb[0].mxu0
    %432 = vdwg.mxu0
    %vm433 = vcmask 64512
    %v435 = vsel %vm433, %v253, 0
    %v438 = vsel %vm433, %v258, 0
    %v441 = vsel %vm433, %v339, 0
    %v444 = vsel %vm433, %v344, 0
    %446 = vmatprep.subr.mxu0 0.0
    %447 = vmatpush1.xpose.msra.mxu0 %v441
    %448 = vmatprep.subr.mxu0 0.0
    %449 = vmatpush1.xpose.msra.mxu0 %v444
    %450 = vmatprep.subr.mxu0 0.0
    %451 = vmatpush1.xpose.msra.mxu0 0.0
    %452 = vmatprep.subr.mxu0 0.0
    %453 = vmatpush1.xpose.msra.mxu0 0.0
    %454 = vmatprep.subr.mxu0 0.0
    %455 = vmatpush1.xpose.msra.mxu0 0.0
    %456 = vmatprep.subr.mxu0 0.0
    %457 = vmatpush1.xpose.msra.mxu0 0.0
    %458 = vmatprep.subr.mxu0 0.0
    %459 = vmatpush1.xpose.msra.mxu0 0.0
    %460 = vmatprep.subr.mxu0 0.0
    %461 = vmatpush1.xpose.msra.mxu0 0.0
    %462 = vmatprep.subr.mxu0 0.0
    %463 = vmatpush1.xpose.msra.mxu0 0.0
    %464 = vmatprep.subr.mxu0 0.0
    %465 = vmatpush1.xpose.msra.mxu0 0.0
    %466 = vmatprep.subr.mxu0 0.0
    %467 = vmatpush1.xpose.msra.mxu0 0.0
    %468 = vmatprep.subr.mxu0 0.0
    %469 = vmatpush1.xpose.msra.mxu0 0.0
    %470 = vmatprep.subr.mxu0 0.0
    %471 = vmatpush1.xpose.msra.mxu0 0.0
    %472 = vmatprep.subr.mxu0 0.0
    %473 = vmatpush1.xpose.msra.mxu0 0.0
    %474 = vmatprep.subr.mxu0 0.0
    %475 = vmatpush1.xpose.msra.mxu0 0.0
    %476 = vmatprep.subr.mxu0 0.0
    %477 = vmatpush1.xpose.msra.mxu0 0.0
    %478 = vmatprep.subr.mxu0 0.0
    %479 = vmatpush1.xpose.msra.mxu0 0.0
    %480 = vmatprep.subr.mxu0 0.0
    %481 = vmatpush1.xpose.msra.mxu0 0.0
    %482 = vmatprep.subr.mxu0 0.0
    %483 = vmatpush1.xpose.msra.mxu0 0.0
    %484 = vmatprep.subr.mxu0 0.0
    %485 = vmatpush1.xpose.msra.mxu0 0.0
    %486 = vmatprep.subr.mxu0 0.0
    %487 = vmatpush1.xpose.msra.mxu0 0.0
    %488 = vmatprep.subr.mxu0 0.0
    %489 = vmatpush1.xpose.msra.mxu0 0.0
    %490 = vmatprep.subr.mxu0 0.0
    %491 = vmatpush1.xpose.msra.mxu0 0.0
    %492 = vmatprep.subr.mxu0 0.0
    %493 = vmatpush1.xpose.msra.mxu0 0.0
    %494 = vmatprep.subr.mxu0 0.0
    %495 = vmatpush1.xpose.msra.mxu0 0.0
    %496 = vmatprep.subr.mxu0 0.0
    %497 = vmatpush1.xpose.msra.mxu0 0.0
    %498 = vmatprep.subr.mxu0 0.0
    %499 = vmatpush1.xpose.msra.mxu0 0.0
    %500 = vmatprep.subr.mxu0 0.0
    %501 = vmatpush1.xpose.msra.mxu0 0.0
    %502 = vmatprep.subr.mxu0 0.0
    %503 = vmatpush1.xpose.msra.mxu0 0.0
    %504 = vmatprep.subr.mxu0 0.0
    %505 = vmatpush1.xpose.msra.mxu0 0.0
    %506 = vmatprep.subr.mxu0 0.0
    %507 = vmatpush1.xpose.msra.mxu0 0.0
    %508 = vmatprep.subr.mxu0 0.0
    %509 = vmatpush1.xpose.msra.mxu0 0.0
    %510 = vmatprep.mubr.f32.mxu0 0.0
    %511 = vmatmul.mubr.f32.gmra.mrb[0].mxu0 %v435
    %v512 = vpop.f32.mrb[0].mxu0
    %v513 = vadd.f32 %v166, %v512
    %v514 = vpop.f32.mrb[0].mxu0
    %515 = vmatprep.mubr.f32.mxu0 0.0
    %516 = vmatmul.mubr.f32.gmra.mrb[0].mxu0 %v438
    %v517 = vpop.f32.mrb[0].mxu0
    %v518 = vadd.f32 %v167, %v517
    %v519 = vpop.f32.mrb[0].mxu0
    %520 = vdwg.mxu0
    %v521 = vsel %vm84, %v513, -inf
    %522 = vmax.xlane.f32.xlu0 %v521
    %v523 = vpop.xlane.xlu0 %522
    %v524 = vsel %vm84, %v518, -inf
    %525 = vmax.xlane.f32.xlu0 %v524
    %v526 = vpop.xlane.xlu0 %525
    %v527 = vsub.f32 %v513, %v523
    %v528 = vsub.f32 %v518, %v526
    %v529 = vmul.f32 %v527, 1.442695
    %v530 = vpow.pop %v529
    %v531 = vmul.f32 %v528, 1.442695
    %v532 = vpow.pop %v531
    %v533 = vsel %vm84, %v530, 0.0
    %534 = vadd.xlane.f32.xlu0 %v533
    %v535 = vpop.xlane.xlu0 %534
    %v536 = vsel %vm84, %v532, 0.0
    %537 = vadd.xlane.f32.xlu0 %v536
    %v538 = vpop.xlane.xlu0 %537
    %v539 = vrcp.pop %v535
    %v540 = vrcp.pop %v538
    %v541 = vmul.f32 %v530, %v539
    %v542 = vmul.f32 %v532, %v540
    %v544 = vsel %vm84, %v541, 0
    %v547 = vsel %vm84, %v542, 0
    %549 = vmatprep.subr.mxu0 0.0
    %550 = vmatpush1.msra.mxu0 %v425
    %551 = vmatprep.subr.mxu0 0.0
    %552 = vmatpush1.msra.mxu0 %v430
    %553 = vmatprep.subr.mxu0 0.0
    %554 = vmatpush1.msra.mxu0 0.0
    %555 = vmatprep.subr.mxu0 0.0
    %556 = vmatpush1.msra.mxu0 0.0
    %557 = vmatprep.subr.mxu0 0.0
    %558 = vmatpush1.msra.mxu0 0.0
    %559 = vmatprep.subr.mxu0 0.0
    %560 = vmatpush1.msra.mxu0 0.0
    %561 = vmatprep.subr.mxu0 0.0
    %562 = vmatpush1.msra.mxu0 0.0
    %563 = vmatprep.subr.mxu0 0.0
    %564 = vmatpush1.msra.mxu0 0.0
    %565 = vmatprep.subr.mxu0 0.0
    %566 = vmatpush1.msra.mxu0 0.0
    %567 = vmatprep.subr.mxu0 0.0
    %568 = vmatpush1.msra.mxu0 0.0
    %569 = vmatprep.subr.mxu0 0.0
    %570 = vmatpush1.msra.mxu0 0.0
    %571 = vmatprep.subr.mxu0 0.0
    %572 = vmatpush1.msra.mxu0 0.0
    %573 = vmatprep.subr.mxu0 0.0
    %574 = vmatpush1.msra.mxu0 0.0
    %575 = vmatprep.subr.mxu0 0.0
    %576 = vmatpush1.msra.mxu0 0.0
    %577 = vmatprep.subr.mxu0 0.0
    %578 = vmatpush1.msra.mxu0 0.0
    %579 = vmatprep.subr.mxu0 0.0
    %580 = vmatpush1.msra.mxu0 0.0
    %581 = vmatprep.subr.mxu0 0.0
    %582 = vmatpush1.msra.mxu0 0.0
    %583 = vmatprep.subr.mxu0 0.0
    %584 = vmatpush1.msra.mxu0 0.0
    %585 = vmatprep.subr.mxu0 0.0
    %586 = vmatpush1.msra.mxu0 0.0
    %587 = vmatprep.subr.mxu0 0.0
    %588 = vmatpush1.msra.mxu0 0.0
    %589 = vmatprep.subr.mxu0 0.0
    %590 = vmatpush1.msra.mxu0 0.0
    %591 = vmatprep.subr.mxu0 0.0
    %592 = vmatpush1.msra.mxu0 0.0
    %593 = vmatprep.subr.mxu0 0.0
    %594 = vmatpush1.msra.mxu0 0.0
    %595 = vmatprep.subr.mxu0 0.0
    %596 = vmatpush1.msra.mxu0 0.0
    %597 = vmatprep.subr.mxu0 0.0
    %598 = vmatpush1.msra.mxu0 0.0
    %599 = vmatprep.subr.mxu0 0.0
    %600 = vmatpush1.msra.mxu0 0.0
    %601 = vmatprep.subr.mxu0 0.0
    %602 = vmatpush1.msra.mxu0 0.0
    %603 = vmatprep.subr.mxu0 0.0
    %604 = vmatpush1.msra.mxu0 0.0
    %605 = vmatprep.subr.mxu0 0.0
    %606 = vmatpush1.msra.mxu0 0.0
    %607 = vmatprep.subr.mxu0 0.0
    %608 = vmatpush1.msra.mxu0 0.0
    %609 = vmatprep.subr.mxu0 0.0
    %610 = vmatpush1.msra.mxu0 0.0
    %611 = vmatprep.subr.mxu0 0.0
    %612 = vmatpush1.msra.mxu0 0.0
    %613 = vmatprep.mubr.f32.mxu0 0.0
    %614 = vmatmul.mubr.f32.gmra.mrb[0].mxu0 %v544
    %v615 = vpop.f32.mrb[0].mxu0
    %v616 = vadd.f32 0.0, %v615
    %v617 = vpop.f32.mrb[0].mxu0
    %618 = vmatprep.mubr.f32.mxu0 0.0
    %619 = vmatmul.mubr.f32.gmra.mrb[0].mxu0 %v547
    %v620 = vpop.f32.mrb[0].mxu0
    %v621 = vadd.f32 0.0, %v620
    %v622 = vpop.f32.mrb[0].mxu0
    %623 = vdwg.mxu0
    %v624 = vld [vmem:[%s10] sm:$0xff]
    %s625 = scalar_lea.vmem %s4, 32
    %v626 = vld [vmem:[%s625] sm:$0xff]
    %v627 = vld [vmem:[%s625 + $0x8] sm:$0xff]
    %v628 = vld [vmem:[%s625 + $0x10] sm:$0xff]
    %v629 = vld [vmem:[%s625 + $0x18] sm:$0xff]
    %s630 = scalar_lea.vmem %s7, 1
    %v631 = vld [vmem:[%s630] sm:$0x1]
    %v633 = vlaneseq
    %v634 = vshrl.u32 %v633, 7
    %v635 = vsub.s32 0, %v634
    %v636 = vrot.slane %v631, %v635
    %638 = vmatprep.subr.mxu0 0.0
    %639 = vmatpush1.msra.mxu0 %v626
    %640 = vmatprep.subr.mxu0 0.0
    %641 = vmatpush1.msra.mxu0 %v627
    %642 = vmatprep.subr.mxu0 0.0
    %643 = vmatpush1.msra.mxu0 %v628
    %644 = vmatprep.subr.mxu0 0.0
    %645 = vmatpush1.msra.mxu0 %v629
    %646 = vmatprep.subr.mxu0 0.0
    %647 = vmatpush1.msra.mxu0 0.0
    %648 = vmatprep.subr.mxu0 0.0
    %649 = vmatpush1.msra.mxu0 0.0
    %650 = vmatprep.subr.mxu0 0.0
    %651 = vmatpush1.msra.mxu0 0.0
    %652 = vmatprep.subr.mxu0 0.0
    %653 = vmatpush1.msra.mxu0 0.0
    %654 = vmatprep.subr.mxu0 0.0
    %655 = vmatpush1.msra.mxu0 0.0
    %656 = vmatprep.subr.mxu0 0.0
    %657 = vmatpush1.msra.mxu0 0.0
    %658 = vmatprep.subr.mxu0 0.0
    %659 = vmatpush1.msra.mxu0 0.0
    %660 = vmatprep.subr.mxu0 0.0
    %661 = vmatpush1.msra.mxu0 0.0
    %662 = vmatprep.subr.mxu0 0.0
    %663 = vmatpush1.msra.mxu0 0.0
    %664 = vmatprep.subr.mxu0 0.0
    %665 = vmatpush1.msra.mxu0 0.0
    %666 = vmatprep.subr.mxu0 0.0
    %667 = vmatpush1.msra.mxu0 0.0
    %668 = vmatprep.subr.mxu0 0.0
    %669 = vmatpush1.msra.mxu0 0.0
    %670 = vmatprep.subr.mxu0 0.0
    %671 = vmatpush1.msra.mxu0 0.0
    %672 = vmatprep.subr.mxu0 0.0
    %673 = vmatpush1.msra.mxu0 0.0
    %674 = vmatprep.subr.mxu0 0.0
    %675 = vmatpush1.msra.mxu0 0.0
    %676 = vmatprep.subr.mxu0 0.0
    %677 = vmatpush1.msra.mxu0 0.0
    %678 = vmatprep.subr.mxu0 0.0
    %679 = vmatpush1.msra.mxu0 0.0
    %680 = vmatprep.subr.mxu0 0.0
    %681 = vmatpush1.msra.mxu0 0.0
    %682 = vmatprep.subr.mxu0 0.0
    %683 = vmatpush1.msra.mxu0 0.0
    %684 = vmatprep.subr.mxu0 0.0
    %685 = vmatpush1.msra.mxu0 0.0
    %686 = vmatprep.subr.mxu0 0.0
    %687 = vmatpush1.msra.mxu0 0.0
    %688 = vmatprep.subr.mxu0 0.0
    %689 = vmatpush1.msra.mxu0 0.0
    %690 = vmatprep.subr.mxu0 0.0
    %691 = vmatpush1.msra.mxu0 0.0
    %692 = vmatprep.subr.mxu0 0.0
    %693 = vmatpush1.msra.mxu0 0.0
    %694 = vmatprep.subr.mxu0 0.0
    %695 = vmatpush1.msra.mxu0 0.0
    %696 = vmatprep.subr.mxu0 0.0
    %697 = vmatpush1.msra.mxu0 0.0
    %698 = vmatprep.subr.mxu0 0.0
    %699 = vmatpush1.msra.mxu0 0.0
    %700 = vmatprep.subr.mxu0 0.0
    %701 = vmatpush1.msra.mxu0 0.0
    %702 = vmatprep.mubr.f32.mxu0 0.0
    %703 = vmatmul.mubr.f32.gmra.mrb[0].mxu0 %v181
    %v704 = vpop.f32.mrb[0].mxu0
    %v705 = vadd.f32 %v636, %v704
    %v706 = vpop.f32.mrb[0].mxu0
    %707 = vmatprep.mubr.f32.mxu0 0.0
    %708 = vmatmul.mubr.f32.gmra.mrb[0].mxu0 %v184
    %v709 = vpop.f32.mrb[0].mxu0
    %v710 = vadd.f32 %v636, %v709
    %v711 = vpop.f32.mrb[0].mxu0
    %712 = vdwg.mxu0
    %s713 = scalar_lea.vmem %s5, 32
    %v714 = vld [vmem:[%s713] sm:$0xff]
    %v715 = vld [vmem:[%s713 + $0x8] sm:$0xff]
    %v716 = vld [vmem:[%s713 + $0x10] sm:$0xff]
    %v717 = vld [vmem:[%s713 + $0x18] sm:$0xff]
    %s718 = scalar_lea.vmem %s8, 1
    %v719 = vld [vmem:[%s718] sm:$0x1]
    %v721 = vlaneseq
    %v722 = vshrl.u32 %v721, 7
    %v723 = vsub.s32 0, %v722
    %v724 = vrot.slane %v719, %v723
    %726 = vmatprep.subr.mxu0 0.0
    %727 = vmatpush1.msra.mxu0 %v714
    %728 = vmatprep.subr.mxu0 0.0
    %729 = vmatpush1.msra.mxu0 %v715
    %730 = vmatprep.subr.mxu0 0.0
    %731 = vmatpush1.msra.mxu0 %v716
    %732 = vmatprep.subr.mxu0 0.0
    %733 = vmatpush1.msra.mxu0 %v717
    %734 = vmatprep.subr.mxu0 0.0
    %735 = vmatpush1.msra.mxu0 0.0
    %736 = vmatprep.subr.mxu0 0.0
    %737 = vmatpush1.msra.mxu0 0.0
    %738 = vmatprep.subr.mxu0 0.0
    %739 = vmatpush1.msra.mxu0 0.0
    %740 = vmatprep.subr.mxu0 0.0
    %741 = vmatpush1.msra.mxu0 0.0
    %742 = vmatprep.subr.mxu0 0.0
    %743 = vmatpush1.msra.mxu0 0.0
    %744 = vmatprep.subr.mxu0 0.0
    %745 = vmatpush1.msra.mxu0 0.0
    %746 = vmatprep.subr.mxu0 0.0
    %747 = vmatpush1.msra.mxu0 0.0
    %748 = vmatprep.subr.mxu0 0.0
    %749 = vmatpush1.msra.mxu0 0.0
    %750 = vmatprep.subr.mxu0 0.0
    %751 = vmatpush1.msra.mxu0 0.0
    %752 = vmatprep.subr.mxu0 0.0
    %753 = vmatpush1.msra.mxu0 0.0
    %754 = vmatprep.subr.mxu0 0.0
    %755 = vmatpush1.msra.mxu0 0.0
    %756 = vmatprep.subr.mxu0 0.0
    %757 = vmatpush1.msra.mxu0 0.0
    %758 = vmatprep.subr.mxu0 0.0
    %759 = vmatpush1.msra.mxu0 0.0
    %760 = vmatprep.subr.mxu0 0.0
    %761 = vmatpush1.msra.mxu0 0.0
    %762 = vmatprep.subr.mxu0 0.0
    %763 = vmatpush1.msra.mxu0 0.0
    %764 = vmatprep.subr.mxu0 0.0
    %765 = vmatpush1.msra.mxu0 0.0
    %766 = vmatprep.subr.mxu0 0.0
    %767 = vmatpush1.msra.mxu0 0.0
    %768 = vmatprep.subr.mxu0 0.0
    %769 = vmatpush1.msra.mxu0 0.0
    %770 = vmatprep.subr.mxu0 0.0
    %771 = vmatpush1.msra.mxu0 0.0
    %772 = vmatprep.subr.mxu0 0.0
    %773 = vmatpush1.msra.mxu0 0.0
    %774 = vmatprep.subr.mxu0 0.0
    %775 = vmatpush1.msra.mxu0 0.0
    %776 = vmatprep.subr.mxu0 0.0
    %777 = vmatpush1.msra.mxu0 0.0
    %778 = vmatprep.subr.mxu0 0.0
    %779 = vmatpush1.msra.mxu0 0.0
    %780 = vmatprep.subr.mxu0 0.0
    %781 = vmatpush1.msra.mxu0 0.0
    %782 = vmatprep.subr.mxu0 0.0
    %783 = vmatpush1.msra.mxu0 0.0
    %784 = vmatprep.subr.mxu0 0.0
    %785 = vmatpush1.msra.mxu0 0.0
    %786 = vmatprep.subr.mxu0 0.0
    %787 = vmatpush1.msra.mxu0 0.0
    %788 = vmatprep.subr.mxu0 0.0
    %789 = vmatpush1.msra.mxu0 0.0
    %790 = vmatprep.mubr.f32.mxu0 0.0
    %791 = vmatmul.mubr.f32.gmra.mrb[0].mxu0 %v181
    %v792 = vpop.f32.mrb[0].mxu0
    %v793 = vadd.f32 %v724, %v792
    %v794 = vpop.f32.mrb[0].mxu0
    %795 = vmatprep.mubr.f32.mxu0 0.0
    %796 = vmatmul.mubr.f32.gmra.mrb[0].mxu0 %v184
    %v797 = vpop.f32.mrb[0].mxu0
    %v798 = vadd.f32 %v724, %v797
    %v799 = vpop.f32.mrb[0].mxu0
    %800 = vdwg.mxu0
    %s801 = scalar_lea.vmem %s6, 32
    %v802 = vld [vmem:[%s801] sm:$0xff]
    %v803 = vld [vmem:[%s801 + $0x8] sm:$0xff]
    %v804 = vld [vmem:[%s801 + $0x10] sm:$0xff]
    %v805 = vld [vmem:[%s801 + $0x18] sm:$0xff]
    %s806 = scalar_lea.vmem %s9, 1
    %v807 = vld [vmem:[%s806] sm:$0x1]
    %v809 = vlaneseq
    %v810 = vshrl.u32 %v809, 7
    %v811 = vsub.s32 0, %v810
    %v812 = vrot.slane %v807, %v811
    %814 = vmatprep.subr.mxu0 0.0
    %815 = vmatpush1.msra.mxu0 %v802
    %816 = vmatprep.subr.mxu0 0.0
    %817 = vmatpush1.msra.mxu0 %v803
    %818 = vmatprep.subr.mxu0 0.0
    %819 = vmatpush1.msra.mxu0 %v804
    %820 = vmatprep.subr.mxu0 0.0
    %821 = vmatpush1.msra.mxu0 %v805
    %822 = vmatprep.subr.mxu0 0.0
    %823 = vmatpush1.msra.mxu0 0.0
    %824 = vmatprep.subr.mxu0 0.0
    %825 = vmatpush1.msra.mxu0 0.0
    %826 = vmatprep.subr.mxu0 0.0
    %827 = vmatpush1.msra.mxu0 0.0
    %828 = vmatprep.subr.mxu0 0.0
    %829 = vmatpush1.msra.mxu0 0.0
    %830 = vmatprep.subr.mxu0 0.0
    %831 = vmatpush1.msra.mxu0 0.0
    %832 = vmatprep.subr.mxu0 0.0
    %833 = vmatpush1.msra.mxu0 0.0
    %834 = vmatprep.subr.mxu0 0.0
    %835 = vmatpush1.msra.mxu0 0.0
    %836 = vmatprep.subr.mxu0 0.0
    %837 = vmatpush1.msra.mxu0 0.0
    %838 = vmatprep.subr.mxu0 0.0
    %839 = vmatpush1.msra.mxu0 0.0
    %840 = vmatprep.subr.mxu0 0.0
    %841 = vmatpush1.msra.mxu0 0.0
    %842 = vmatprep.subr.mxu0 0.0
    %843 = vmatpush1.msra.mxu0 0.0
    %844 = vmatprep.subr.mxu0 0.0
    %845 = vmatpush1.msra.mxu0 0.0
    %846 = vmatprep.subr.mxu0 0.0
    %847 = vmatpush1.msra.mxu0 0.0
    %848 = vmatprep.subr.mxu0 0.0
    %849 = vmatpush1.msra.mxu0 0.0
    %850 = vmatprep.subr.mxu0 0.0
    %851 = vmatpush1.msra.mxu0 0.0
    %852 = vmatprep.subr.mxu0 0.0
    %853 = vmatpush1.msra.mxu0 0.0
    %854 = vmatprep.subr.mxu0 0.0
    %855 = vmatpush1.msra.mxu0 0.0
    %856 = vmatprep.subr.mxu0 0.0
    %857 = vmatpush1.msra.mxu0 0.0
    %858 = vmatprep.subr.mxu0 0.0
    %859 = vmatpush1.msra.mxu0 0.0
    %860 = vmatprep.subr.mxu0 0.0
    %861 = vmatpush1.msra.mxu0 0.0
    %862 = vmatprep.subr.mxu0 0.0
    %863 = vmatpush1.msra.mxu0 0.0
    %864 = vmatprep.subr.mxu0 0.0
    %865 = vmatpush1.msra.mxu0 0.0
    %866 = vmatprep.subr.mxu0 0.0
    %867 = vmatpush1.msra.mxu0 0.0
    %868 = vmatprep.subr.mxu0 0.0
    %869 = vmatpush1.msra.mxu0 0.0
    %870 = vmatprep.subr.mxu0 0.0
    %871 = vmatpush1.msra.mxu0 0.0
    %872 = vmatprep.subr.mxu0 0.0
    %873 = vmatpush1.msra.mxu0 0.0
    %874 = vmatprep.subr.mxu0 0.0
    %875 = vmatpush1.msra.mxu0 0.0
    %876 = vmatprep.subr.mxu0 0.0
    %877 = vmatpush1.msra.mxu0 0.0
    %878 = vmatprep.mubr.f32.mxu0 0.0
    %879 = vmatmul.mubr.f32.gmra.mrb[0].mxu0 %v181
    %v880 = vpop.f32.mrb[0].mxu0
    %v881 = vadd.f32 %v812, %v880
    %v882 = vpop.f32.mrb[0].mxu0
    %883 = vmatprep.mubr.f32.mxu0 0.0
    %884 = vmatmul.mubr.f32.gmra.mrb[0].mxu0 %v184
    %v885 = vpop.f32.mrb[0].mxu0
    %v886 = vadd.f32 %v812, %v885
    %v887 = vpop.f32.mrb[0].mxu0
    %888 = vdwg.mxu0
    %v890 = vsel %vm433, %v705, 0
    %v893 = vsel %vm433, %v710, 0
    %v896 = vsel %vm433, %v793, 0
    %v899 = vsel %vm433, %v798, 0
    %901 = vmatprep.subr.mxu0 0.0
    %902 = vmatpush1.xpose.msra.mxu0 %v896
    %903 = vmatprep.subr.mxu0 0.0
    %904 = vmatpush1.xpose.msra.mxu0 %v899
    %905 = vmatprep.subr.mxu0 0.0
    %906 = vmatpush1.xpose.msra.mxu0 0.0
    %907 = vmatprep.subr.mxu0 0.0
    %908 = vmatpush1.xpose.msra.mxu0 0.0
    %909 = vmatprep.subr.mxu0 0.0
    %910 = vmatpush1.xpose.msra.mxu0 0.0
    %911 = vmatprep.subr.mxu0 0.0
    %912 = vmatpush1.xpose.msra.mxu0 0.0
    %913 = vmatprep.subr.mxu0 0.0
    %914 = vmatpush1.xpose.msra.mxu0 0.0
    %915 = vmatprep.subr.mxu0 0.0
    %916 = vmatpush1.xpose.msra.mxu0 0.0
    %917 = vmatprep.subr.mxu0 0.0
    %918 = vmatpush1.xpose.msra.mxu0 0.0
    %919 = vmatprep.subr.mxu0 0.0
    %920 = vmatpush1.xpose.msra.mxu0 0.0
    %921 = vmatprep.subr.mxu0 0.0
    %922 = vmatpush1.xpose.msra.mxu0 0.0
    %923 = vmatprep.subr.mxu0 0.0
    %924 = vmatpush1.xpose.msra.mxu0 0.0
    %925 = vmatprep.subr.mxu0 0.0
    %926 = vmatpush1.xpose.msra.mxu0 0.0
    %927 = vmatprep.subr.mxu0 0.0
    %928 = vmatpush1.xpose.msra.mxu0 0.0
    %929 = vmatprep.subr.mxu0 0.0
    %930 = vmatpush1.xpose.msra.mxu0 0.0
    %931 = vmatprep.subr.mxu0 0.0
    %932 = vmatpush1.xpose.msra.mxu0 0.0
    %933 = vmatprep.subr.mxu0 0.0
    %934 = vmatpush1.xpose.msra.mxu0 0.0
    %935 = vmatprep.subr.mxu0 0.0
    %936 = vmatpush1.xpose.msra.mxu0 0.0
    %937 = vmatprep.subr.mxu0 0.0
    %938 = vmatpush1.xpose.msra.mxu0 0.0
    %939 = vmatprep.subr.mxu0 0.0
    %940 = vmatpush1.xpose.msra.mxu0 0.0
    %941 = vmatprep.subr.mxu0 0.0
    %942 = vmatpush1.xpose.msra.mxu0 0.0
    %943 = vmatprep.subr.mxu0 0.0
    %944 = vmatpush1.xpose.msra.mxu0 0.0
    %945 = vmatprep.subr.mxu0 0.0
    %946 = vmatpush1.xpose.msra.mxu0 0.0
    %947 = vmatprep.subr.mxu0 0.0
    %948 = vmatpush1.xpose.msra.mxu0 0.0
    %949 = vmatprep.subr.mxu0 0.0
    %950 = vmatpush1.xpose.msra.mxu0 0.0
    %951 = vmatprep.subr.mxu0 0.0
    %952 = vmatpush1.xpose.msra.mxu0 0.0
    %953 = vmatprep.subr.mxu0 0.0
    %954 = vmatpush1.xpose.msra.mxu0 0.0
    %955 = vmatprep.subr.mxu0 0.0
    %956 = vmatpush1.xpose.msra.mxu0 0.0
    %957 = vmatprep.subr.mxu0 0.0
    %958 = vmatpush1.xpose.msra.mxu0 0.0
    %959 = vmatprep.subr.mxu0 0.0
    %960 = vmatpush1.xpose.msra.mxu0 0.0
    %961 = vmatprep.subr.mxu0 0.0
    %962 = vmatpush1.xpose.msra.mxu0 0.0
    %963 = vmatprep.subr.mxu0 0.0
    %964 = vmatpush1.xpose.msra.mxu0 0.0
    %965 = vmatprep.mubr.f32.mxu0 0.0
    %966 = vmatmul.mubr.f32.gmra.mrb[0].mxu0 %v890
    %v967 = vpop.f32.mrb[0].mxu0
    %v968 = vadd.f32 %v166, %v967
    %v969 = vpop.f32.mrb[0].mxu0
    %970 = vmatprep.mubr.f32.mxu0 0.0
    %971 = vmatmul.mubr.f32.gmra.mrb[0].mxu0 %v893
    %v972 = vpop.f32.mrb[0].mxu0
    %v973 = vadd.f32 %v167, %v972
    %v974 = vpop.f32.mrb[0].mxu0
    %975 = vdwg.mxu0
    %v976 = vsel %vm84, %v968, -inf
    %977 = vmax.xlane.f32.xlu0 %v976
    %v978 = vpop.xlane.xlu0 %977
    %v979 = vsel %vm84, %v973, -inf
    %980 = vmax.xlane.f32.xlu0 %v979
    %v981 = vpop.xlane.xlu0 %980
    %v982 = vsub.f32 %v968, %v978
    %v983 = vsub.f32 %v973, %v981
    %v984 = vmul.f32 %v982, 1.442695
    %v985 = vpow.pop %v984
    %v986 = vmul.f32 %v983, 1.442695
    %v987 = vpow.pop %v986
    %v988 = vsel %vm84, %v985, 0.0
    %989 = vadd.xlane.f32.xlu0 %v988
    %v990 = vpop.xlane.xlu0 %989
    %v991 = vsel %vm84, %v987, 0.0
    %992 = vadd.xlane.f32.xlu0 %v991
    %v993 = vpop.xlane.xlu0 %992
    %v994 = vrcp.pop %v990
    %v995 = vrcp.pop %v993
    %v996 = vmul.f32 %v985, %v994
    %v997 = vmul.f32 %v987, %v995
    %v999 = vsel %vm84, %v996, 0
    %v1002 = vsel %vm84, %v997, 0
    %1004 = vmatprep.subr.mxu0 0.0
    %1005 = vmatpush1.msra.mxu0 %v881
    %1006 = vmatprep.subr.mxu0 0.0
    %1007 = vmatpush1.msra.mxu0 %v886
    %1008 = vmatprep.subr.mxu0 0.0
    %1009 = vmatpush1.msra.mxu0 0.0
    %1010 = vmatprep.subr.mxu0 0.0
    %1011 = vmatpush1.msra.mxu0 0.0
    %1012 = vmatprep.subr.mxu0 0.0
    %1013 = vmatpush1.msra.mxu0 0.0
    %1014 = vmatprep.subr.mxu0 0.0
    %1015 = vmatpush1.msra.mxu0 0.0
    %1016 = vmatprep.subr.mxu0 0.0
    %1017 = vmatpush1.msra.mxu0 0.0
    %1018 = vmatprep.subr.mxu0 0.0
    %1019 = vmatpush1.msra.mxu0 0.0
    %1020 = vmatprep.subr.mxu0 0.0
    %1021 = vmatpush1.msra.mxu0 0.0
    %1022 = vmatprep.subr.mxu0 0.0
    %1023 = vmatpush1.msra.mxu0 0.0
    %1024 = vmatprep.subr.mxu0 0.0
    %1025 = vmatpush1.msra.mxu0 0.0
    %1026 = vmatprep.subr.mxu0 0.0
    %1027 = vmatpush1.msra.mxu0 0.0
    %1028 = vmatprep.subr.mxu0 0.0
    %1029 = vmatpush1.msra.mxu0 0.0
    %1030 = vmatprep.subr.mxu0 0.0
    %1031 = vmatpush1.msra.mxu0 0.0
    %1032 = vmatprep.subr.mxu0 0.0
    %1033 = vmatpush1.msra.mxu0 0.0
    %1034 = vmatprep.subr.mxu0 0.0
    %1035 = vmatpush1.msra.mxu0 0.0
    %1036 = vmatprep.subr.mxu0 0.0
    %1037 = vmatpush1.msra.mxu0 0.0
    %1038 = vmatprep.subr.mxu0 0.0
    %1039 = vmatpush1.msra.mxu0 0.0
    %1040 = vmatprep.subr.mxu0 0.0
    %1041 = vmatpush1.msra.mxu0 0.0
    %1042 = vmatprep.subr.mxu0 0.0
    %1043 = vmatpush1.msra.mxu0 0.0
    %1044 = vmatprep.subr.mxu0 0.0
    %1045 = vmatpush1.msra.mxu0 0.0
    %1046 = vmatprep.subr.mxu0 0.0
    %1047 = vmatpush1.msra.mxu0 0.0
    %1048 = vmatprep.subr.mxu0 0.0
    %1049 = vmatpush1.msra.mxu0 0.0
    %1050 = vmatprep.subr.mxu0 0.0
    %1051 = vmatpush1.msra.mxu0 0.0
    %1052 = vmatprep.subr.mxu0 0.0
    %1053 = vmatpush1.msra.mxu0 0.0
    %1054 = vmatprep.subr.mxu0 0.0
    %1055 = vmatpush1.msra.mxu0 0.0
    %1056 = vmatprep.subr.mxu0 0.0
    %1057 = vmatpush1.msra.mxu0 0.0
    %1058 = vmatprep.subr.mxu0 0.0
    %1059 = vmatpush1.msra.mxu0 0.0
    %1060 = vmatprep.subr.mxu0 0.0
    %1061 = vmatpush1.msra.mxu0 0.0
    %1062 = vmatprep.subr.mxu0 0.0
    %1063 = vmatpush1.msra.mxu0 0.0
    %1064 = vmatprep.subr.mxu0 0.0
    %1065 = vmatpush1.msra.mxu0 0.0
    %1066 = vmatprep.subr.mxu0 0.0
    %1067 = vmatpush1.msra.mxu0 0.0
    %1068 = vmatprep.mubr.f32.mxu0 0.0
    %1069 = vmatmul.mubr.f32.gmra.mrb[0].mxu0 %v999
    %v1070 = vpop.f32.mrb[0].mxu0
    %v1071 = vadd.f32 0.0, %v1070
    %v1072 = vpop.f32.mrb[0].mxu0
    %1073 = vmatprep.mubr.f32.mxu0 0.0
    %1074 = vmatmul.mubr.f32.gmra.mrb[0].mxu0 %v1002
    %v1075 = vpop.f32.mrb[0].mxu0
    %v1076 = vadd.f32 0.0, %v1075
    %v1077 = vpop.f32.mrb[0].mxu0
    %1078 = vdwg.mxu0
    %v1079 = vld [vmem:[%s10 + $0x8] sm:$0xff]
    %v1081 = vsel %vm433, %v1071, 0
    %v1084 = vsel %vm433, %v1076, 0
    %1086 = vmatprep.subr.mxu0 0.0
    %1087 = vmatpush1.msra.mxu0 %v1079
    %1088 = vmatprep.subr.mxu0 0.0
    %1089 = vmatpush1.msra.mxu0 0.0
    %1090 = vmatprep.subr.mxu0 0.0
    %1091 = vmatpush1.msra.mxu0 0.0
    %1092 = vmatprep.subr.mxu0 0.0
    %1093 = vmatpush1.msra.mxu0 0.0
    %1094 = vmatprep.subr.mxu0 0.0
    %1095 = vmatpush1.msra.mxu0 0.0
    %1096 = vmatprep.subr.mxu0 0.0
    %1097 = vmatpush1.msra.mxu0 0.0
    %1098 = vmatprep.subr.mxu0 0.0
    %1099 = vmatpush1.msra.mxu0 0.0
    %1100 = vmatprep.subr.mxu0 0.0
    %1101 = vmatpush1.msra.mxu0 0.0
    %1102 = vmatprep.subr.mxu0 0.0
    %1103 = vmatpush1.msra.mxu0 0.0
    %1104 = vmatprep.subr.mxu0 0.0
    %1105 = vmatpush1.msra.mxu0 0.0
    %1106 = vmatprep.subr.mxu0 0.0
    %1107 = vmatpush1.msra.mxu0 0.0
    %1108 = vmatprep.subr.mxu0 0.0
    %1109 = vmatpush1.msra.mxu0 0.0
    %1110 = vmatprep.subr.mxu0 0.0
    %1111 = vmatpush1.msra.mxu0 0.0
    %1112 = vmatprep.subr.mxu0 0.0
    %1113 = vmatpush1.msra.mxu0 0.0
    %1114 = vmatprep.subr.mxu0 0.0
    %1115 = vmatpush1.msra.mxu0 0.0
    %1116 = vmatprep.subr.mxu0 0.0
    %1117 = vmatpush1.msra.mxu0 0.0
    %1118 = vmatprep.subr.mxu0 0.0
    %1119 = vmatpush1.msra.mxu0 0.0
    %1120 = vmatprep.subr.mxu0 0.0
    %1121 = vmatpush1.msra.mxu0 0.0
    %1122 = vmatprep.subr.mxu0 0.0
    %1123 = vmatpush1.msra.mxu0 0.0
    %1124 = vmatprep.subr.mxu0 0.0
    %1125 = vmatpush1.msra.mxu0 0.0
    %1126 = vmatprep.subr.mxu0 0.0
    %1127 = vmatpush1.msra.mxu0 0.0
    %1128 = vmatprep.subr.mxu0 0.0
    %1129 = vmatpush1.msra.mxu0 0.0
    %1130 = vmatprep.subr.mxu0 0.0
    %1131 = vmatpush1.msra.mxu0 0.0
    %1132 = vmatprep.subr.mxu0 0.0
    %1133 = vmatpush1.msra.mxu0 0.0
    %1134 = vmatprep.subr.mxu0 0.0
    %1135 = vmatpush1.msra.mxu0 0.0
    %1136 = vmatprep.subr.mxu0 0.0
    %1137 = vmatpush1.msra.mxu0 0.0
    %1138 = vmatprep.subr.mxu0 0.0
    %1139 = vmatpush1.msra.mxu0 0.0
    %1140 = vmatprep.subr.mxu0 0.0
    %1141 = vmatpush1.msra.mxu0 0.0
    %1142 = vmatprep.subr.mxu0 0.0
    %1143 = vmatpush1.msra.mxu0 0.0
    %1144 = vmatprep.subr.mxu0 0.0
    %1145 = vmatpush1.msra.mxu0 0.0
    %1146 = vmatprep.subr.mxu0 0.0
    %1147 = vmatpush1.msra.mxu0 0.0
    %1148 = vmatprep.subr.mxu0 0.0
    %1149 = vmatpush1.msra.mxu0 0.0
    %1150 = vmatprep.mubr.f32.mxu0 0.0
    %1151 = vmatmul.mubr.f32.gmra.mrb[0].mxu0 %v1081
    %v1152 = vpop.f32.mrb[0].mxu0
    %v1153 = vadd.f32 0.0, %v1152
    %v1154 = vpop.f32.mrb[0].mxu0
    %1155 = vmatprep.mubr.f32.mxu0 0.0
    %1156 = vmatmul.mubr.f32.gmra.mrb[0].mxu0 %v1084
    %v1157 = vpop.f32.mrb[0].mxu0
    %v1158 = vadd.f32 0.0, %v1157
    %v1159 = vpop.f32.mrb[0].mxu0
    %1160 = vdwg.mxu0
    %v1162 = vsel %vm433, %v616, 0
    %v1165 = vsel %vm433, %v621, 0
    %1167 = vmatprep.subr.mxu0 0.0
    %1168 = vmatpush1.msra.mxu0 %v624
    %1169 = vmatprep.subr.mxu0 0.0
    %1170 = vmatpush1.msra.mxu0 0.0
    %1171 = vmatprep.subr.mxu0 0.0
    %1172 = vmatpush1.msra.mxu0 0.0
    %1173 = vmatprep.subr.mxu0 0.0
    %1174 = vmatpush1.msra.mxu0 0.0
    %1175 = vmatprep.subr.mxu0 0.0
    %1176 = vmatpush1.msra.mxu0 0.0
    %1177 = vmatprep.subr.mxu0 0.0
    %1178 = vmatpush1.msra.mxu0 0.0
    %1179 = vmatprep.subr.mxu0 0.0
    %1180 = vmatpush1.msra.mxu0 0.0
    %1181 = vmatprep.subr.mxu0 0.0
    %1182 = vmatpush1.msra.mxu0 0.0
    %1183 = vmatprep.subr.mxu0 0.0
    %1184 = vmatpush1.msra.mxu0 0.0
    %1185 = vmatprep.subr.mxu0 0.0
    %1186 = vmatpush1.msra.mxu0 0.0
    %1187 = vmatprep.subr.mxu0 0.0
    %1188 = vmatpush1.msra.mxu0 0.0
    %1189 = vmatprep.subr.mxu0 0.0
    %1190 = vmatpush1.msra.mxu0 0.0
    %1191 = vmatprep.subr.mxu0 0.0
    %1192 = vmatpush1.msra.mxu0 0.0
    %1193 = vmatprep.subr.mxu0 0.0
    %1194 = vmatpush1.msra.mxu0 0.0
    %1195 = vmatprep.subr.mxu0 0.0
    %1196 = vmatpush1.msra.mxu0 0.0
    %1197 = vmatprep.subr.mxu0 0.0
    %1198 = vmatpush1.msra.mxu0 0.0
    %1199 = vmatprep.subr.mxu0 0.0
    %1200 = vmatpush1.msra.mxu0 0.0
    %1201 = vmatprep.subr.mxu0 0.0
    %1202 = vmatpush1.msra.mxu0 0.0
    %1203 = vmatprep.subr.mxu0 0.0
    %1204 = vmatpush1.msra.mxu0 0.0
    %1205 = vmatprep.subr.mxu0 0.0
    %1206 = vmatpush1.msra.mxu0 0.0
    %1207 = vmatprep.subr.mxu0 0.0
    %1208 = vmatpush1.msra.mxu0 0.0
    %1209 = vmatprep.subr.mxu0 0.0
    %1210 = vmatpush1.msra.mxu0 0.0
    %1211 = vmatprep.subr.mxu0 0.0
    %1212 = vmatpush1.msra.mxu0 0.0
    %1213 = vmatprep.subr.mxu0 0.0
    %1214 = vmatpush1.msra.mxu0 0.0
    %1215 = vmatprep.subr.mxu0 0.0
    %1216 = vmatpush1.msra.mxu0 0.0
    %1217 = vmatprep.subr.mxu0 0.0
    %1218 = vmatpush1.msra.mxu0 0.0
    %1219 = vmatprep.subr.mxu0 0.0
    %1220 = vmatpush1.msra.mxu0 0.0
    %1221 = vmatprep.subr.mxu0 0.0
    %1222 = vmatpush1.msra.mxu0 0.0
    %1223 = vmatprep.subr.mxu0 0.0
    %1224 = vmatpush1.msra.mxu0 0.0
    %1225 = vmatprep.subr.mxu0 0.0
    %1226 = vmatpush1.msra.mxu0 0.0
    %1227 = vmatprep.subr.mxu0 0.0
    %1228 = vmatpush1.msra.mxu0 0.0
    %1229 = vmatprep.subr.mxu0 0.0
    %1230 = vmatpush1.msra.mxu0 0.0
    %1231 = vmatprep.mubr.f32.mxu0 0.0
    %1232 = vmatmul.mubr.f32.gmra.mrb[0].mxu0 %v1162
    %v1233 = vpop.f32.mrb[0].mxu0
    %v1234 = vadd.f32 %v1153, %v1233
    %v1235 = vpop.f32.mrb[0].mxu0
    %1236 = vmatprep.mubr.f32.mxu0 0.0
    %1237 = vmatmul.mubr.f32.gmra.mrb[0].mxu0 %v1165
    %v1238 = vpop.f32.mrb[0].mxu0
    %v1239 = vadd.f32 %v1158, %v1238
    %v1240 = vpop.f32.mrb[0].mxu0
    %1241 = vdwg.mxu0
    %s1242 = scalar_lea.vmem %s4, 64
    %v1243 = vld [vmem:[%s1242] sm:$0xff]
    %v1244 = vld [vmem:[%s1242 + $0x8] sm:$0xff]
    %v1245 = vld [vmem:[%s1242 + $0x10] sm:$0xff]
    %v1246 = vld [vmem:[%s1242 + $0x18] sm:$0xff]
    %s1247 = scalar_lea.vmem %s7, 2
    %v1248 = vld [vmem:[%s1247] sm:$0x1]
    %v1250 = vlaneseq
    %v1251 = vshrl.u32 %v1250, 7
    %v1252 = vsub.s32 0, %v1251
    %v1253 = vrot.slane %v1248, %v1252
    %1255 = vmatprep.subr.mxu0 0.0
    %1256 = vmatpush1.msra.mxu0 %v1243
    %1257 = vmatprep.subr.mxu0 0.0
    %1258 = vmatpush1.msra.mxu0 %v1244
    %1259 = vmatprep.subr.mxu0 0.0
    %1260 = vmatpush1.msra.mxu0 %v1245
    %1261 = vmatprep.subr.mxu0 0.0
    %1262 = vmatpush1.msra.mxu0 %v1246
    %1263 = vmatprep.subr.mxu0 0.0
    %1264 = vmatpush1.msra.mxu0 0.0
    %1265 = vmatprep.subr.mxu0 0.0
    %1266 = vmatpush1.msra.mxu0 0.0
    %1267 = vmatprep.subr.mxu0 0.0
    %1268 = vmatpush1.msra.mxu0 0.0
    %1269 = vmatprep.subr.mxu0 0.0
    %1270 = vmatpush1.msra.mxu0 0.0
    %1271 = vmatprep.subr.mxu0 0.0
    %1272 = vmatpush1.msra.mxu0 0.0
    %1273 = vmatprep.subr.mxu0 0.0
    %1274 = vmatpush1.msra.mxu0 0.0
    %1275 = vmatprep.subr.mxu0 0.0
    %1276 = vmatpush1.msra.mxu0 0.0
    %1277 = vmatprep.subr.mxu0 0.0
    %1278 = vmatpush1.msra.mxu0 0.0
    %1279 = vmatprep.subr.mxu0 0.0
    %1280 = vmatpush1.msra.mxu0 0.0
    %1281 = vmatprep.subr.mxu0 0.0
    %1282 = vmatpush1.msra.mxu0 0.0
    %1283 = vmatprep.subr.mxu0 0.0
    %1284 = vmatpush1.msra.mxu0 0.0
    %1285 = vmatprep.subr.mxu0 0.0
    %1286 = vmatpush1.msra.mxu0 0.0
    %1287 = vmatprep.subr.mxu0 0.0
    %1288 = vmatpush1.msra.mxu0 0.0
    %1289 = vmatprep.subr.mxu0 0.0
    %1290 = vmatpush1.msra.mxu0 0.0
    %1291 = vmatprep.subr.mxu0 0.0
    %1292 = vmatpush1.msra.mxu0 0.0
    %1293 = vmatprep.subr.mxu0 0.0
    %1294 = vmatpush1.msra.mxu0 0.0
    %1295 = vmatprep.subr.mxu0 0.0
    %1296 = vmatpush1.msra.mxu0 0.0
    %1297 = vmatprep.subr.mxu0 0.0
    %1298 = vmatpush1.msra.mxu0 0.0
    %1299 = vmatprep.subr.mxu0 0.0
    %1300 = vmatpush1.msra.mxu0 0.0
    %1301 = vmatprep.subr.mxu0 0.0
    %1302 = vmatpush1.msra.mxu0 0.0
    %1303 = vmatprep.subr.mxu0 0.0
    %1304 = vmatpush1.msra.mxu0 0.0
    %1305 = vmatprep.subr.mxu0 0.0
    %1306 = vmatpush1.msra.mxu0 0.0
    %1307 = vmatprep.subr.mxu0 0.0
    %1308 = vmatpush1.msra.mxu0 0.0
    %1309 = vmatprep.subr.mxu0 0.0
    %1310 = vmatpush1.msra.mxu0 0.0
    %1311 = vmatprep.subr.mxu0 0.0
    %1312 = vmatpush1.msra.mxu0 0.0
    %1313 = vmatprep.subr.mxu0 0.0
    %1314 = vmatpush1.msra.mxu0 0.0
    %1315 = vmatprep.subr.mxu0 0.0
    %1316 = vmatpush1.msra.mxu0 0.0
    %1317 = vmatprep.subr.mxu0 0.0
    %1318 = vmatpush1.msra.mxu0 0.0
    %1319 = vmatprep.mubr.f32.mxu0 0.0
    %1320 = vmatmul.mubr.f32.gmra.mrb[0].mxu0 %v181
    %v1321 = vpop.f32.mrb[0].mxu0
    %v1322 = vadd.f32 %v1253, %v1321
    %v1323 = vpop.f32.mrb[0].mxu0
    %1324 = vmatprep.mubr.f32.mxu0 0.0
    %1325 = vmatmul.mubr.f32.gmra.mrb[0].mxu0 %v184
    %v1326 = vpop.f32.mrb[0].mxu0
    %v1327 = vadd.f32 %v1253, %v1326
    %v1328 = vpop.f32.mrb[0].mxu0
    %1329 = vdwg.mxu0
    %s1330 = scalar_lea.vmem %s5, 64
    %v1331 = vld [vmem:[%s1330] sm:$0xff]
    %v1332 = vld [vmem:[%s1330 + $0x8] sm:$0xff]
    %v1333 = vld [vmem:[%s1330 + $0x10] sm:$0xff]
    %v1334 = vld [vmem:[%s1330 + $0x18] sm:$0xff]
    %s1335 = scalar_lea.vmem %s8, 2
    %v1336 = vld [vmem:[%s1335] sm:$0x1]
    %v1338 = vlaneseq
    %v1339 = vshrl.u32 %v1338, 7
    %v1340 = vsub.s32 0, %v1339
    %v1341 = vrot.slane %v1336, %v1340
    %1343 = vmatprep.subr.mxu0 0.0
    %1344 = vmatpush1.msra.mxu0 %v1331
    %1345 = vmatprep.subr.mxu0 0.0
    %1346 = vmatpush1.msra.mxu0 %v1332
    %1347 = vmatprep.subr.mxu0 0.0
    %1348 = vmatpush1.msra.mxu0 %v1333
    %1349 = vmatprep.subr.mxu0 0.0
    %1350 = vmatpush1.msra.mxu0 %v1334
    %1351 = vmatprep.subr.mxu0 0.0
    %1352 = vmatpush1.msra.mxu0 0.0
    %1353 = vmatprep.subr.mxu0 0.0
    %1354 = vmatpush1.msra.mxu0 0.0
    %1355 = vmatprep.subr.mxu0 0.0
    %1356 = vmatpush1.msra.mxu0 0.0
    %1357 = vmatprep.subr.mxu0 0.0
    %1358 = vmatpush1.msra.mxu0 0.0
    %1359 = vmatprep.subr.mxu0 0.0
    %1360 = vmatpush1.msra.mxu0 0.0
    %1361 = vmatprep.subr.mxu0 0.0
    %1362 = vmatpush1.msra.mxu0 0.0
    %1363 = vmatprep.subr.mxu0 0.0
    %1364 = vmatpush1.msra.mxu0 0.0
    %1365 = vmatprep.subr.mxu0 0.0
    %1366 = vmatpush1.msra.mxu0 0.0
    %1367 = vmatprep.subr.mxu0 0.0
    %1368 = vmatpush1.msra.mxu0 0.0
    %1369 = vmatprep.subr.mxu0 0.0
    %1370 = vmatpush1.msra.mxu0 0.0
    %1371 = vmatprep.subr.mxu0 0.0
    %1372 = vmatpush1.msra.mxu0 0.0
    %1373 = vmatprep.subr.mxu0 0.0
    %1374 = vmatpush1.msra.mxu0 0.0
    %1375 = vmatprep.subr.mxu0 0.0
    %1376 = vmatpush1.msra.mxu0 0.0
    %1377 = vmatprep.subr.mxu0 0.0
    %1378 = vmatpush1.msra.mxu0 0.0
    %1379 = vmatprep.subr.mxu0 0.0
    %1380 = vmatpush1.msra.mxu0 0.0
    %1381 = vmatprep.subr.mxu0 0.0
    %1382 = vmatpush1.msra.mxu0 0.0
    %1383 = vmatprep.subr.mxu0 0.0
    %1384 = vmatpush1.msra.mxu0 0.0
    %1385 = vmatprep.subr.mxu0 0.0
    %1386 = vmatpush1.msra.mxu0 0.0
    %1387 = vmatprep.subr.mxu0 0.0
    %1388 = vmatpush1.msra.mxu0 0.0
    %1389 = vmatprep.subr.mxu0 0.0
    %1390 = vmatpush1.msra.mxu0 0.0
    %1391 = vmatprep.subr.mxu0 0.0
    %1392 = vmatpush1.msra.mxu0 0.0
    %1393 = vmatprep.subr.mxu0 0.0
    %1394 = vmatpush1.msra.mxu0 0.0
    %1395 = vmatprep.subr.mxu0 0.0
    %1396 = vmatpush1.msra.mxu0 0.0
    %1397 = vmatprep.subr.mxu0 0.0
    %1398 = vmatpush1.msra.mxu0 0.0
    %1399 = vmatprep.subr.mxu0 0.0
    %1400 = vmatpush1.msra.mxu0 0.0
    %1401 = vmatprep.subr.mxu0 0.0
    %1402 = vmatpush1.msra.mxu0 0.0
    %1403 = vmatprep.subr.mxu0 0.0
    %1404 = vmatpush1.msra.mxu0 0.0
    %1405 = vmatprep.subr.mxu0 0.0
    %1406 = vmatpush1.msra.mxu0 0.0
    %1407 = vmatprep.mubr.f32.mxu0 0.0
    %1408 = vmatmul.mubr.f32.gmra.mrb[0].mxu0 %v181
    %v1409 = vpop.f32.mrb[0].mxu0
    %v1410 = vadd.f32 %v1341, %v1409
    %v1411 = vpop.f32.mrb[0].mxu0
    %1412 = vmatprep.mubr.f32.mxu0 0.0
    %1413 = vmatmul.mubr.f32.gmra.mrb[0].mxu0 %v184
    %v1414 = vpop.f32.mrb[0].mxu0
    %v1415 = vadd.f32 %v1341, %v1414
    %v1416 = vpop.f32.mrb[0].mxu0
    %1417 = vdwg.mxu0
    %s1418 = scalar_lea.vmem %s6, 64
    %v1419 = vld [vmem:[%s1418] sm:$0xff]
    %v1420 = vld [vmem:[%s1418 + $0x8] sm:$0xff]
    %v1421 = vld [vmem:[%s1418 + $0x10] sm:$0xff]
    %v1422 = vld [vmem:[%s1418 + $0x18] sm:$0xff]
    %s1423 = scalar_lea.vmem %s9, 2
    %v1424 = vld [vmem:[%s1423] sm:$0x1]
    %v1426 = vlaneseq
    %v1427 = vshrl.u32 %v1426, 7
    %v1428 = vsub.s32 0, %v1427
    %v1429 = vrot.slane %v1424, %v1428
    %1431 = vmatprep.subr.mxu0 0.0
    %1432 = vmatpush1.msra.mxu0 %v1419
    %1433 = vmatprep.subr.mxu0 0.0
    %1434 = vmatpush1.msra.mxu0 %v1420
    %1435 = vmatprep.subr.mxu0 0.0
    %1436 = vmatpush1.msra.mxu0 %v1421
    %1437 = vmatprep.subr.mxu0 0.0
    %1438 = vmatpush1.msra.mxu0 %v1422
    %1439 = vmatprep.subr.mxu0 0.0
    %1440 = vmatpush1.msra.mxu0 0.0
    %1441 = vmatprep.subr.mxu0 0.0
    %1442 = vmatpush1.msra.mxu0 0.0
    %1443 = vmatprep.subr.mxu0 0.0
    %1444 = vmatpush1.msra.mxu0 0.0
    %1445 = vmatprep.subr.mxu0 0.0
    %1446 = vmatpush1.msra.mxu0 0.0
    %1447 = vmatprep.subr.mxu0 0.0
    %1448 = vmatpush1.msra.mxu0 0.0
    %1449 = vmatprep.subr.mxu0 0.0
    %1450 = vmatpush1.msra.mxu0 0.0
    %1451 = vmatprep.subr.mxu0 0.0
    %1452 = vmatpush1.msra.mxu0 0.0
    %1453 = vmatprep.subr.mxu0 0.0
    %1454 = vmatpush1.msra.mxu0 0.0
    %1455 = vmatprep.subr.mxu0 0.0
    %1456 = vmatpush1.msra.mxu0 0.0
    %1457 = vmatprep.subr.mxu0 0.0
    %1458 = vmatpush1.msra.mxu0 0.0
    %1459 = vmatprep.subr.mxu0 0.0
    %1460 = vmatpush1.msra.mxu0 0.0
    %1461 = vmatprep.subr.mxu0 0.0
    %1462 = vmatpush1.msra.mxu0 0.0
    %1463 = vmatprep.subr.mxu0 0.0
    %1464 = vmatpush1.msra.mxu0 0.0
    %1465 = vmatprep.subr.mxu0 0.0
    %1466 = vmatpush1.msra.mxu0 0.0
    %1467 = vmatprep.subr.mxu0 0.0
    %1468 = vmatpush1.msra.mxu0 0.0
    %1469 = vmatprep.subr.mxu0 0.0
    %1470 = vmatpush1.msra.mxu0 0.0
    %1471 = vmatprep.subr.mxu0 0.0
    %1472 = vmatpush1.msra.mxu0 0.0
    %1473 = vmatprep.subr.mxu0 0.0
    %1474 = vmatpush1.msra.mxu0 0.0
    %1475 = vmatprep.subr.mxu0 0.0
    %1476 = vmatpush1.msra.mxu0 0.0
    %1477 = vmatprep.subr.mxu0 0.0
    %1478 = vmatpush1.msra.mxu0 0.0
    %1479 = vmatprep.subr.mxu0 0.0
    %1480 = vmatpush1.msra.mxu0 0.0
    %1481 = vmatprep.subr.mxu0 0.0
    %1482 = vmatpush1.msra.mxu0 0.0
    %1483 = vmatprep.subr.mxu0 0.0
    %1484 = vmatpush1.msra.mxu0 0.0
    %1485 = vmatprep.subr.mxu0 0.0
    %1486 = vmatpush1.msra.mxu0 0.0
    %1487 = vmatprep.subr.mxu0 0.0
    %1488 = vmatpush1.msra.mxu0 0.0
    %1489 = vmatprep.subr.mxu0 0.0
    %1490 = vmatpush1.msra.mxu0 0.0
    %1491 = vmatprep.subr.mxu0 0.0
    %1492 = vmatpush1.msra.mxu0 0.0
    %1493 = vmatprep.subr.mxu0 0.0
    %1494 = vmatpush1.msra.mxu0 0.0
    %1495 = vmatprep.mubr.f32.mxu0 0.0
    %1496 = vmatmul.mubr.f32.gmra.mrb[0].mxu0 %v181
    %v1497 = vpop.f32.mrb[0].mxu0
    %v1498 = vadd.f32 %v1429, %v1497
    %v1499 = vpop.f32.mrb[0].mxu0
    %1500 = vmatprep.mubr.f32.mxu0 0.0
    %1501 = vmatmul.mubr.f32.gmra.mrb[0].mxu0 %v184
    %v1502 = vpop.f32.mrb[0].mxu0
    %v1503 = vadd.f32 %v1429, %v1502
    %v1504 = vpop.f32.mrb[0].mxu0
    %1505 = vdwg.mxu0
    %v1507 = vsel %vm433, %v1322, 0
    %v1510 = vsel %vm433, %v1327, 0
    %v1513 = vsel %vm433, %v1410, 0
    %v1516 = vsel %vm433, %v1415, 0
    %1518 = vmatprep.subr.mxu0 0.0
    %1519 = vmatpush1.xpose.msra.mxu0 %v1513
    %1520 = vmatprep.subr.mxu0 0.0
    %1521 = vmatpush1.xpose.msra.mxu0 %v1516
    %1522 = vmatprep.subr.mxu0 0.0
    %1523 = vmatpush1.xpose.msra.mxu0 0.0
    %1524 = vmatprep.subr.mxu0 0.0
    %1525 = vmatpush1.xpose.msra.mxu0 0.0
    %1526 = vmatprep.subr.mxu0 0.0
    %1527 = vmatpush1.xpose.msra.mxu0 0.0
    %1528 = vmatprep.subr.mxu0 0.0
    %1529 = vmatpush1.xpose.msra.mxu0 0.0
    %1530 = vmatprep.subr.mxu0 0.0
    %1531 = vmatpush1.xpose.msra.mxu0 0.0
    %1532 = vmatprep.subr.mxu0 0.0
    %1533 = vmatpush1.xpose.msra.mxu0 0.0
    %1534 = vmatprep.subr.mxu0 0.0
    %1535 = vmatpush1.xpose.msra.mxu0 0.0
    %1536 = vmatprep.subr.mxu0 0.0
    %1537 = vmatpush1.xpose.msra.mxu0 0.0
    %1538 = vmatprep.subr.mxu0 0.0
    %1539 = vmatpush1.xpose.msra.mxu0 0.0
    %1540 = vmatprep.subr.mxu0 0.0
    %1541 = vmatpush1.xpose.msra.mxu0 0.0
    %1542 = vmatprep.subr.mxu0 0.0
    %1543 = vmatpush1.xpose.msra.mxu0 0.0
    %1544 = vmatprep.subr.mxu0 0.0
    %1545 = vmatpush1.xpose.msra.mxu0 0.0
    %1546 = vmatprep.subr.mxu0 0.0
    %1547 = vmatpush1.xpose.msra.mxu0 0.0
    %1548 = vmatprep.subr.mxu0 0.0
    %1549 = vmatpush1.xpose.msra.mxu0 0.0
    %1550 = vmatprep.subr.mxu0 0.0
    %1551 = vmatpush1.xpose.msra.mxu0 0.0
    %1552 = vmatprep.subr.mxu0 0.0
    %1553 = vmatpush1.xpose.msra.mxu0 0.0
    %1554 = vmatprep.subr.mxu0 0.0
    %1555 = vmatpush1.xpose.msra.mxu0 0.0
    %1556 = vmatprep.subr.mxu0 0.0
    %1557 = vmatpush1.xpose.msra.mxu0 0.0
    %1558 = vmatprep.subr.mxu0 0.0
    %1559 = vmatpush1.xpose.msra.mxu0 0.0
    %1560 = vmatprep.subr.mxu0 0.0
    %1561 = vmatpush1.xpose.msra.mxu0 0.0
    %1562 = vmatprep.subr.mxu0 0.0
    %1563 = vmatpush1.xpose.msra.mxu0 0.0
    %1564 = vmatprep.subr.mxu0 0.0
    %1565 = vmatpush1.xpose.msra.mxu0 0.0
    %1566 = vmatprep.subr.mxu0 0.0
    %1567 = vmatpush1.xpose.msra.mxu0 0.0
    %1568 = vmatprep.subr.mxu0 0.0
    %1569 = vmatpush1.xpose.msra.mxu0 0.0
    %1570 = vmatprep.subr.mxu0 0.0
    %1571 = vmatpush1.xpose.msra.mxu0 0.0
    %1572 = vmatprep.subr.mxu0 0.0
    %1573 = vmatpush1.xpose.msra.mxu0 0.0
    %1574 = vmatprep.subr.mxu0 0.0
    %1575 = vmatpush1.xpose.msra.mxu0 0.0
    %1576 = vmatprep.subr.mxu0 0.0
    %1577 = vmatpush1.xpose.msra.mxu0 0.0
    %1578 = vmatprep.subr.mxu0 0.0
    %1579 = vmatpush1.xpose.msra.mxu0 0.0
    %1580 = vmatprep.subr.mxu0 0.0
    %1581 = vmatpush1.xpose.msra.mxu0 0.0
    %1582 = vmatprep.mubr.f32.mxu0 0.0
    %1583 = vmatmul.mubr.f32.gmra.mrb[0].mxu0 %v1507
    %v1584 = vpop.f32.mrb[0].mxu0
    %v1585 = vadd.f32 %v166, %v1584
    %v1586 = vpop.f32.mrb[0].mxu0
    %1587 = vmatprep.mubr.f32.mxu0 0.0
    %1588 = vmatmul.mubr.f32.gmra.mrb[0].mxu0 %v1510
    %v1589 = vpop.f32.mrb[0].mxu0
    %v1590 = vadd.f32 %v167, %v1589
    %v1591 = vpop.f32.mrb[0].mxu0
    %1592 = vdwg.mxu0
    %v1593 = vsel %vm84, %v1585, -inf
    %1594 = vmax.xlane.f32.xlu0 %v1593
    %v1595 = vpop.xlane.xlu0 %1594
    %v1596 = vsel %vm84, %v1590, -inf
    %1597 = vmax.xlane.f32.xlu0 %v1596
    %v1598 = vpop.xlane.xlu0 %1597
    %v1599 = vsub.f32 %v1585, %v1595
    %v1600 = vsub.f32 %v1590, %v1598
    %v1601 = vmul.f32 %v1599, 1.442695
    %v1602 = vpow.pop %v1601
    %v1603 = vmul.f32 %v1600, 1.442695
    %v1604 = vpow.pop %v1603
    %v1605 = vsel %vm84, %v1602, 0.0
    %1606 = vadd.xlane.f32.xlu0 %v1605
    %v1607 = vpop.xlane.xlu0 %1606
    %v1608 = vsel %vm84, %v1604, 0.0
    %1609 = vadd.xlane.f32.xlu0 %v1608
    %v1610 = vpop.xlane.xlu0 %1609
    %v1611 = vrcp.pop %v1607
    %v1612 = vrcp.pop %v1610
    %v1613 = vmul.f32 %v1602, %v1611
    %v1614 = vmul.f32 %v1604, %v1612
    %v1616 = vsel %vm84, %v1613, 0
    %v1619 = vsel %vm84, %v1614, 0
    %1621 = vmatprep.subr.mxu0 0.0
    %1622 = vmatpush1.msra.mxu0 %v1498
    %1623 = vmatprep.subr.mxu0 0.0
    %1624 = vmatpush1.msra.mxu0 %v1503
    %1625 = vmatprep.subr.mxu0 0.0
    %1626 = vmatpush1.msra.mxu0 0.0
    %1627 = vmatprep.subr.mxu0 0.0
    %1628 = vmatpush1.msra.mxu0 0.0
    %1629 = vmatprep.subr.mxu0 0.0
    %1630 = vmatpush1.msra.mxu0 0.0
    %1631 = vmatprep.subr.mxu0 0.0
    %1632 = vmatpush1.msra.mxu0 0.0
    %1633 = vmatprep.subr.mxu0 0.0
    %1634 = vmatpush1.msra.mxu0 0.0
    %1635 = vmatprep.subr.mxu0 0.0
    %1636 = vmatpush1.msra.mxu0 0.0
    %1637 = vmatprep.subr.mxu0 0.0
    %1638 = vmatpush1.msra.mxu0 0.0
    %1639 = vmatprep.subr.mxu0 0.0
    %1640 = vmatpush1.msra.mxu0 0.0
    %1641 = vmatprep.subr.mxu0 0.0
    %1642 = vmatpush1.msra.mxu0 0.0
    %1643 = vmatprep.subr.mxu0 0.0
    %1644 = vmatpush1.msra.mxu0 0.0
    %1645 = vmatprep.subr.mxu0 0.0
    %1646 = vmatpush1.msra.mxu0 0.0
    %1647 = vmatprep.subr.mxu0 0.0
    %1648 = vmatpush1.msra.mxu0 0.0
    %1649 = vmatprep.subr.mxu0 0.0
    %1650 = vmatpush1.msra.mxu0 0.0
    %1651 = vmatprep.subr.mxu0 0.0
    %1652 = vmatpush1.msra.mxu0 0.0
    %1653 = vmatprep.subr.mxu0 0.0
    %1654 = vmatpush1.msra.mxu0 0.0
    %1655 = vmatprep.subr.mxu0 0.0
    %1656 = vmatpush1.msra.mxu0 0.0
    %1657 = vmatprep.subr.mxu0 0.0
    %1658 = vmatpush1.msra.mxu0 0.0
    %1659 = vmatprep.subr.mxu0 0.0
    %1660 = vmatpush1.msra.mxu0 0.0
    %1661 = vmatprep.subr.mxu0 0.0
    %1662 = vmatpush1.msra.mxu0 0.0
    %1663 = vmatprep.subr.mxu0 0.0
    %1664 = vmatpush1.msra.mxu0 0.0
    %1665 = vmatprep.subr.mxu0 0.0
    %1666 = vmatpush1.msra.mxu0 0.0
    %1667 = vmatprep.subr.mxu0 0.0
    %1668 = vmatpush1.msra.mxu0 0.0
    %1669 = vmatprep.subr.mxu0 0.0
    %1670 = vmatpush1.msra.mxu0 0.0
    %1671 = vmatprep.subr.mxu0 0.0
    %1672 = vmatpush1.msra.mxu0 0.0
    %1673 = vmatprep.subr.mxu0 0.0
    %1674 = vmatpush1.msra.mxu0 0.0
    %1675 = vmatprep.subr.mxu0 0.0
    %1676 = vmatpush1.msra.mxu0 0.0
    %1677 = vmatprep.subr.mxu0 0.0
    %1678 = vmatpush1.msra.mxu0 0.0
    %1679 = vmatprep.subr.mxu0 0.0
    %1680 = vmatpush1.msra.mxu0 0.0
    %1681 = vmatprep.subr.mxu0 0.0
    %1682 = vmatpush1.msra.mxu0 0.0
    %1683 = vmatprep.subr.mxu0 0.0
    %1684 = vmatpush1.msra.mxu0 0.0
    %1685 = vmatprep.mubr.f32.mxu0 0.0
    %1686 = vmatmul.mubr.f32.gmra.mrb[0].mxu0 %v1616
    %v1687 = vpop.f32.mrb[0].mxu0
    %v1688 = vadd.f32 0.0, %v1687
    %v1689 = vpop.f32.mrb[0].mxu0
    %1690 = vmatprep.mubr.f32.mxu0 0.0
    %1691 = vmatmul.mubr.f32.gmra.mrb[0].mxu0 %v1619
    %v1692 = vpop.f32.mrb[0].mxu0
    %v1693 = vadd.f32 0.0, %v1692
    %v1694 = vpop.f32.mrb[0].mxu0
    %1695 = vdwg.mxu0
    %v1696 = vld [vmem:[%s10 + $0x10] sm:$0xff]
    %v1698 = vsel %vm433, %v1688, 0
    %v1701 = vsel %vm433, %v1693, 0
    %1703 = vmatprep.subr.mxu0 0.0
    %1704 = vmatpush1.msra.mxu0 %v1696
    %1705 = vmatprep.subr.mxu0 0.0
    %1706 = vmatpush1.msra.mxu0 0.0
    %1707 = vmatprep.subr.mxu0 0.0
    %1708 = vmatpush1.msra.mxu0 0.0
    %1709 = vmatprep.subr.mxu0 0.0
    %1710 = vmatpush1.msra.mxu0 0.0
    %1711 = vmatprep.subr.mxu0 0.0
    %1712 = vmatpush1.msra.mxu0 0.0
    %1713 = vmatprep.subr.mxu0 0.0
    %1714 = vmatpush1.msra.mxu0 0.0
    %1715 = vmatprep.subr.mxu0 0.0
    %1716 = vmatpush1.msra.mxu0 0.0
    %1717 = vmatprep.subr.mxu0 0.0
    %1718 = vmatpush1.msra.mxu0 0.0
    %1719 = vmatprep.subr.mxu0 0.0
    %1720 = vmatpush1.msra.mxu0 0.0
    %1721 = vmatprep.subr.mxu0 0.0
    %1722 = vmatpush1.msra.mxu0 0.0
    %1723 = vmatprep.subr.mxu0 0.0
    %1724 = vmatpush1.msra.mxu0 0.0
    %1725 = vmatprep.subr.mxu0 0.0
    %1726 = vmatpush1.msra.mxu0 0.0
    %1727 = vmatprep.subr.mxu0 0.0
    %1728 = vmatpush1.msra.mxu0 0.0
    %1729 = vmatprep.subr.mxu0 0.0
    %1730 = vmatpush1.msra.mxu0 0.0
    %1731 = vmatprep.subr.mxu0 0.0
    %1732 = vmatpush1.msra.mxu0 0.0
    %1733 = vmatprep.subr.mxu0 0.0
    %1734 = vmatpush1.msra.mxu0 0.0
    %1735 = vmatprep.subr.mxu0 0.0
    %1736 = vmatpush1.msra.mxu0 0.0
    %1737 = vmatprep.subr.mxu0 0.0
    %1738 = vmatpush1.msra.mxu0 0.0
    %1739 = vmatprep.subr.mxu0 0.0
    %1740 = vmatpush1.msra.mxu0 0.0
    %1741 = vmatprep.subr.mxu0 0.0
    %1742 = vmatpush1.msra.mxu0 0.0
    %1743 = vmatprep.subr.mxu0 0.0
    %1744 = vmatpush1.msra.mxu0 0.0
    %1745 = vmatprep.subr.mxu0 0.0
    %1746 = vmatpush1.msra.mxu0 0.0
    %1747 = vmatprep.subr.mxu0 0.0
    %1748 = vmatpush1.msra.mxu0 0.0
    %1749 = vmatprep.subr.mxu0 0.0
    %1750 = vmatpush1.msra.mxu0 0.0
    %1751 = vmatprep.subr.mxu0 0.0
    %1752 = vmatpush1.msra.mxu0 0.0
    %1753 = vmatprep.subr.mxu0 0.0
    %1754 = vmatpush1.msra.mxu0 0.0
    %1755 = vmatprep.subr.mxu0 0.0
    %1756 = vmatpush1.msra.mxu0 0.0
    %1757 = vmatprep.subr.mxu0 0.0
    %1758 = vmatpush1.msra.mxu0 0.0
    %1759 = vmatprep.subr.mxu0 0.0
    %1760 = vmatpush1.msra.mxu0 0.0
    %1761 = vmatprep.subr.mxu0 0.0
    %1762 = vmatpush1.msra.mxu0 0.0
    %1763 = vmatprep.subr.mxu0 0.0
    %1764 = vmatpush1.msra.mxu0 0.0
    %1765 = vmatprep.subr.mxu0 0.0
    %1766 = vmatpush1.msra.mxu0 0.0
    %1767 = vmatprep.mubr.f32.mxu0 0.0
    %1768 = vmatmul.mubr.f32.gmra.mrb[0].mxu0 %v1698
    %v1769 = vpop.f32.mrb[0].mxu0
    %v1770 = vadd.f32 0.0, %v1769
    %v1771 = vpop.f32.mrb[0].mxu0
    %1772 = vmatprep.mubr.f32.mxu0 0.0
    %1773 = vmatmul.mubr.f32.gmra.mrb[0].mxu0 %v1701
    %v1774 = vpop.f32.mrb[0].mxu0
    %v1775 = vadd.f32 0.0, %v1774
    %v1776 = vpop.f32.mrb[0].mxu0
    %1777 = vdwg.mxu0
    %v1778 = vadd.f32 %v1234, %v1770
    %v1779 = vadd.f32 %v1239, %v1775
    %s1780 = scalar_lea.vmem %s4, 96
    %v1781 = vld [vmem:[%s1780] sm:$0xff]
    %v1782 = vld [vmem:[%s1780 + $0x8] sm:$0xff]
    %v1783 = vld [vmem:[%s1780 + $0x10] sm:$0xff]
    %v1784 = vld [vmem:[%s1780 + $0x18] sm:$0xff]
    %s1785 = scalar_lea.vmem %s7, 3
    %v1786 = vld [vmem:[%s1785] sm:$0x1]
    %v1788 = vlaneseq
    %v1789 = vshrl.u32 %v1788, 7
    %v1790 = vsub.s32 0, %v1789
    %v1791 = vrot.slane %v1786, %v1790
    %1793 = vmatprep.subr.mxu0 0.0
    %1794 = vmatpush1.msra.mxu0 %v1781
    %1795 = vmatprep.subr.mxu0 0.0
    %1796 = vmatpush1.msra.mxu0 %v1782
    %1797 = vmatprep.subr.mxu0 0.0
    %1798 = vmatpush1.msra.mxu0 %v1783
    %1799 = vmatprep.subr.mxu0 0.0
    %1800 = vmatpush1.msra.mxu0 %v1784
    %1801 = vmatprep.subr.mxu0 0.0
    %1802 = vmatpush1.msra.mxu0 0.0
    %1803 = vmatprep.subr.mxu0 0.0
    %1804 = vmatpush1.msra.mxu0 0.0
    %1805 = vmatprep.subr.mxu0 0.0
    %1806 = vmatpush1.msra.mxu0 0.0
    %1807 = vmatprep.subr.mxu0 0.0
    %1808 = vmatpush1.msra.mxu0 0.0
    %1809 = vmatprep.subr.mxu0 0.0
    %1810 = vmatpush1.msra.mxu0 0.0
    %1811 = vmatprep.subr.mxu0 0.0
    %1812 = vmatpush1.msra.mxu0 0.0
    %1813 = vmatprep.subr.mxu0 0.0
    %1814 = vmatpush1.msra.mxu0 0.0
    %1815 = vmatprep.subr.mxu0 0.0
    %1816 = vmatpush1.msra.mxu0 0.0
    %1817 = vmatprep.subr.mxu0 0.0
    %1818 = vmatpush1.msra.mxu0 0.0
    %1819 = vmatprep.subr.mxu0 0.0
    %1820 = vmatpush1.msra.mxu0 0.0
    %1821 = vmatprep.subr.mxu0 0.0
    %1822 = vmatpush1.msra.mxu0 0.0
    %1823 = vmatprep.subr.mxu0 0.0
    %1824 = vmatpush1.msra.mxu0 0.0
    %1825 = vmatprep.subr.mxu0 0.0
    %1826 = vmatpush1.msra.mxu0 0.0
    %1827 = vmatprep.subr.mxu0 0.0
    %1828 = vmatpush1.msra.mxu0 0.0
    %1829 = vmatprep.subr.mxu0 0.0
    %1830 = vmatpush1.msra.mxu0 0.0
    %1831 = vmatprep.subr.mxu0 0.0
    %1832 = vmatpush1.msra.mxu0 0.0
    %1833 = vmatprep.subr.mxu0 0.0
    %1834 = vmatpush1.msra.mxu0 0.0
    %1835 = vmatprep.subr.mxu0 0.0
    %1836 = vmatpush1.msra.mxu0 0.0
    %1837 = vmatprep.subr.mxu0 0.0
    %1838 = vmatpush1.msra.mxu0 0.0
    %1839 = vmatprep.subr.mxu0 0.0
    %1840 = vmatpush1.msra.mxu0 0.0
    %1841 = vmatprep.subr.mxu0 0.0
    %1842 = vmatpush1.msra.mxu0 0.0
    %1843 = vmatprep.subr.mxu0 0.0
    %1844 = vmatpush1.msra.mxu0 0.0
    %1845 = vmatprep.subr.mxu0 0.0
    %1846 = vmatpush1.msra.mxu0 0.0
    %1847 = vmatprep.subr.mxu0 0.0
    %1848 = vmatpush1.msra.mxu0 0.0
    %1849 = vmatprep.subr.mxu0 0.0
    %1850 = vmatpush1.msra.mxu0 0.0
    %1851 = vmatprep.subr.mxu0 0.0
    %1852 = vmatpush1.msra.mxu0 0.0
    %1853 = vmatprep.subr.mxu0 0.0
    %1854 = vmatpush1.msra.mxu0 0.0
    %1855 = vmatprep.subr.mxu0 0.0
    %1856 = vmatpush1.msra.mxu0 0.0
    %1857 = vmatprep.mubr.f32.mxu0 0.0
    %1858 = vmatmul.mubr.f32.gmra.mrb[0].mxu0 %v181
    %v1859 = vpop.f32.mrb[0].mxu0
    %v1860 = vadd.f32 %v1791, %v1859
    %v1861 = vpop.f32.mrb[0].mxu0
    %1862 = vmatprep.mubr.f32.mxu0 0.0
    %1863 = vmatmul.mubr.f32.gmra.mrb[0].mxu0 %v184
    %v1864 = vpop.f32.mrb[0].mxu0
    %v1865 = vadd.f32 %v1791, %v1864
    %v1866 = vpop.f32.mrb[0].mxu0
    %1867 = vdwg.mxu0
    %s1868 = scalar_lea.vmem %s5, 96
    %v1869 = vld [vmem:[%s1868] sm:$0xff]
    %v1870 = vld [vmem:[%s1868 + $0x8] sm:$0xff]
    %v1871 = vld [vmem:[%s1868 + $0x10] sm:$0xff]
    %v1872 = vld [vmem:[%s1868 + $0x18] sm:$0xff]
    %s1873 = scalar_lea.vmem %s8, 3
    %v1874 = vld [vmem:[%s1873] sm:$0x1]
    %v1876 = vlaneseq
    %v1877 = vshrl.u32 %v1876, 7
    %v1878 = vsub.s32 0, %v1877
    %v1879 = vrot.slane %v1874, %v1878
    %1881 = vmatprep.subr.mxu0 0.0
    %1882 = vmatpush1.msra.mxu0 %v1869
    %1883 = vmatprep.subr.mxu0 0.0
    %1884 = vmatpush1.msra.mxu0 %v1870
    %1885 = vmatprep.subr.mxu0 0.0
    %1886 = vmatpush1.msra.mxu0 %v1871
    %1887 = vmatprep.subr.mxu0 0.0
    %1888 = vmatpush1.msra.mxu0 %v1872
    %1889 = vmatprep.subr.mxu0 0.0
    %1890 = vmatpush1.msra.mxu0 0.0
    %1891 = vmatprep.subr.mxu0 0.0
    %1892 = vmatpush1.msra.mxu0 0.0
    %1893 = vmatprep.subr.mxu0 0.0
    %1894 = vmatpush1.msra.mxu0 0.0
    %1895 = vmatprep.subr.mxu0 0.0
    %1896 = vmatpush1.msra.mxu0 0.0
    %1897 = vmatprep.subr.mxu0 0.0
    %1898 = vmatpush1.msra.mxu0 0.0
    %1899 = vmatprep.subr.mxu0 0.0
    %1900 = vmatpush1.msra.mxu0 0.0
    %1901 = vmatprep.subr.mxu0 0.0
    %1902 = vmatpush1.msra.mxu0 0.0
    %1903 = vmatprep.subr.mxu0 0.0
    %1904 = vmatpush1.msra.mxu0 0.0
    %1905 = vmatprep.subr.mxu0 0.0
    %1906 = vmatpush1.msra.mxu0 0.0
    %1907 = vmatprep.subr.mxu0 0.0
    %1908 = vmatpush1.msra.mxu0 0.0
    %1909 = vmatprep.subr.mxu0 0.0
    %1910 = vmatpush1.msra.mxu0 0.0
    %1911 = vmatprep.subr.mxu0 0.0
    %1912 = vmatpush1.msra.mxu0 0.0
    %1913 = vmatprep.subr.mxu0 0.0
    %1914 = vmatpush1.msra.mxu0 0.0
    %1915 = vmatprep.subr.mxu0 0.0
    %1916 = vmatpush1.msra.mxu0 0.0
    %1917 = vmatprep.subr.mxu0 0.0
    %1918 = vmatpush1.msra.mxu0 0.0
    %1919 = vmatprep.subr.mxu0 0.0
    %1920 = vmatpush1.msra.mxu0 0.0
    %1921 = vmatprep.subr.mxu0 0.0
    %1922 = vmatpush1.msra.mxu0 0.0
    %1923 = vmatprep.subr.mxu0 0.0
    %1924 = vmatpush1.msra.mxu0 0.0
    %1925 = vmatprep.subr.mxu0 0.0
    %1926 = vmatpush1.msra.mxu0 0.0
    %1927 = vmatprep.subr.mxu0 0.0
    %1928 = vmatpush1.msra.mxu0 0.0
    %1929 = vmatprep.subr.mxu0 0.0
    %1930 = vmatpush1.msra.mxu0 0.0
    %1931 = vmatprep.subr.mxu0 0.0
    %1932 = vmatpush1.msra.mxu0 0.0
    %1933 = vmatprep.subr.mxu0 0.0
    %1934 = vmatpush1.msra.mxu0 0.0
    %1935 = vmatprep.subr.mxu0 0.0
    %1936 = vmatpush1.msra.mxu0 0.0
    %1937 = vmatprep.subr.mxu0 0.0
    %1938 = vmatpush1.msra.mxu0 0.0
    %1939 = vmatprep.subr.mxu0 0.0
    %1940 = vmatpush1.msra.mxu0 0.0
    %1941 = vmatprep.subr.mxu0 0.0
    %1942 = vmatpush1.msra.mxu0 0.0
    %1943 = vmatprep.subr.mxu0 0.0
    %1944 = vmatpush1.msra.mxu0 0.0
    %1945 = vmatprep.mubr.f32.mxu0 0.0
    %1946 = vmatmul.mubr.f32.gmra.mrb[0].mxu0 %v181
    %v1947 = vpop.f32.mrb[0].mxu0
    %v1948 = vadd.f32 %v1879, %v1947
    %v1949 = vpop.f32.mrb[0].mxu0
    %1950 = vmatprep.mubr.f32.mxu0 0.0
    %1951 = vmatmul.mubr.f32.gmra.mrb[0].mxu0 %v184
    %v1952 = vpop.f32.mrb[0].mxu0
    %v1953 = vadd.f32 %v1879, %v1952
    %v1954 = vpop.f32.mrb[0].mxu0
    %1955 = vdwg.mxu0
    %s1956 = scalar_lea.vmem %s6, 96
    %v1957 = vld [vmem:[%s1956] sm:$0xff]
    %v1958 = vld [vmem:[%s1956 + $0x8] sm:$0xff]
    %v1959 = vld [vmem:[%s1956 + $0x10] sm:$0xff]
    %v1960 = vld [vmem:[%s1956 + $0x18] sm:$0xff]
    %s1961 = scalar_lea.vmem %s9, 3
    %v1962 = vld [vmem:[%s1961] sm:$0x1]
    %v1964 = vlaneseq
    %v1965 = vshrl.u32 %v1964, 7
    %v1966 = vsub.s32 0, %v1965
    %v1967 = vrot.slane %v1962, %v1966
    %1969 = vmatprep.subr.mxu0 0.0
    %1970 = vmatpush1.msra.mxu0 %v1957
    %1971 = vmatprep.subr.mxu0 0.0
    %1972 = vmatpush1.msra.mxu0 %v1958
    %1973 = vmatprep.subr.mxu0 0.0
    %1974 = vmatpush1.msra.mxu0 %v1959
    %1975 = vmatprep.subr.mxu0 0.0
    %1976 = vmatpush1.msra.mxu0 %v1960
    %1977 = vmatprep.subr.mxu0 0.0
    %1978 = vmatpush1.msra.mxu0 0.0
    %1979 = vmatprep.subr.mxu0 0.0
    %1980 = vmatpush1.msra.mxu0 0.0
    %1981 = vmatprep.subr.mxu0 0.0
    %1982 = vmatpush1.msra.mxu0 0.0
    %1983 = vmatprep.subr.mxu0 0.0
    %1984 = vmatpush1.msra.mxu0 0.0
    %1985 = vmatprep.subr.mxu0 0.0
    %1986 = vmatpush1.msra.mxu0 0.0
    %1987 = vmatprep.subr.mxu0 0.0
    %1988 = vmatpush1.msra.mxu0 0.0
    %1989 = vmatprep.subr.mxu0 0.0
    %1990 = vmatpush1.msra.mxu0 0.0
    %1991 = vmatprep.subr.mxu0 0.0
    %1992 = vmatpush1.msra.mxu0 0.0
    %1993 = vmatprep.subr.mxu0 0.0
    %1994 = vmatpush1.msra.mxu0 0.0
    %1995 = vmatprep.subr.mxu0 0.0
    %1996 = vmatpush1.msra.mxu0 0.0
    %1997 = vmatprep.subr.mxu0 0.0
    %1998 = vmatpush1.msra.mxu0 0.0
    %1999 = vmatprep.subr.mxu0 0.0
    %2000 = vmatpush1.msra.mxu0 0.0
    %2001 = vmatprep.subr.mxu0 0.0
    %2002 = vmatpush1.msra.mxu0 0.0
    %2003 = vmatprep.subr.mxu0 0.0
    %2004 = vmatpush1.msra.mxu0 0.0
    %2005 = vmatprep.subr.mxu0 0.0
    %2006 = vmatpush1.msra.mxu0 0.0
    %2007 = vmatprep.subr.mxu0 0.0
    %2008 = vmatpush1.msra.mxu0 0.0
    %2009 = vmatprep.subr.mxu0 0.0
    %2010 = vmatpush1.msra.mxu0 0.0
    %2011 = vmatprep.subr.mxu0 0.0
    %2012 = vmatpush1.msra.mxu0 0.0
    %2013 = vmatprep.subr.mxu0 0.0
    %2014 = vmatpush1.msra.mxu0 0.0
    %2015 = vmatprep.subr.mxu0 0.0
    %2016 = vmatpush1.msra.mxu0 0.0
    %2017 = vmatprep.subr.mxu0 0.0
    %2018 = vmatpush1.msra.mxu0 0.0
    %2019 = vmatprep.subr.mxu0 0.0
    %2020 = vmatpush1.msra.mxu0 0.0
    %2021 = vmatprep.subr.mxu0 0.0
    %2022 = vmatpush1.msra.mxu0 0.0
    %2023 = vmatprep.subr.mxu0 0.0
    %2024 = vmatpush1.msra.mxu0 0.0
    %2025 = vmatprep.subr.mxu0 0.0
    %2026 = vmatpush1.msra.mxu0 0.0
    %2027 = vmatprep.subr.mxu0 0.0
    %2028 = vmatpush1.msra.mxu0 0.0
    %2029 = vmatprep.subr.mxu0 0.0
    %2030 = vmatpush1.msra.mxu0 0.0
    %2031 = vmatprep.subr.mxu0 0.0
    %2032 = vmatpush1.msra.mxu0 0.0
    %2033 = vmatprep.mubr.f32.mxu0 0.0
    %2034 = vmatmul.mubr.f32.gmra.mrb[0].mxu0 %v181
    %v2035 = vpop.f32.mrb[0].mxu0
    %v2036 = vadd.f32 %v1967, %v2035
    %v2037 = vpop.f32.mrb[0].mxu0
    %2038 = vmatprep.mubr.f32.mxu0 0.0
    %2039 = vmatmul.mubr.f32.gmra.mrb[0].mxu0 %v184
    %v2040 = vpop.f32.mrb[0].mxu0
    %v2041 = vadd.f32 %v1967, %v2040
    %v2042 = vpop.f32.mrb[0].mxu0
    %2043 = vdwg.mxu0
    %v2045 = vsel %vm433, %v1860, 0
    %v2048 = vsel %vm433, %v1865, 0
    %v2051 = vsel %vm433, %v1948, 0
    %v2054 = vsel %vm433, %v1953, 0
    %2056 = vmatprep.subr.mxu0 0.0
    %2057 = vmatpush1.xpose.msra.mxu0 %v2051
    %2058 = vmatprep.subr.mxu0 0.0
    %2059 = vmatpush1.xpose.msra.mxu0 %v2054
    %2060 = vmatprep.subr.mxu0 0.0
    %2061 = vmatpush1.xpose.msra.mxu0 0.0
    %2062 = vmatprep.subr.mxu0 0.0
    %2063 = vmatpush1.xpose.msra.mxu0 0.0
    %2064 = vmatprep.subr.mxu0 0.0
    %2065 = vmatpush1.xpose.msra.mxu0 0.0
    %2066 = vmatprep.subr.mxu0 0.0
    %2067 = vmatpush1.xpose.msra.mxu0 0.0
    %2068 = vmatprep.subr.mxu0 0.0
    %2069 = vmatpush1.xpose.msra.mxu0 0.0
    %2070 = vmatprep.subr.mxu0 0.0
    %2071 = vmatpush1.xpose.msra.mxu0 0.0
    %2072 = vmatprep.subr.mxu0 0.0
    %2073 = vmatpush1.xpose.msra.mxu0 0.0
    %2074 = vmatprep.subr.mxu0 0.0
    %2075 = vmatpush1.xpose.msra.mxu0 0.0
    %2076 = vmatprep.subr.mxu0 0.0
    %2077 = vmatpush1.xpose.msra.mxu0 0.0
    %2078 = vmatprep.subr.mxu0 0.0
    %2079 = vmatpush1.xpose.msra.mxu0 0.0
    %2080 = vmatprep.subr.mxu0 0.0
    %2081 = vmatpush1.xpose.msra.mxu0 0.0
    %2082 = vmatprep.subr.mxu0 0.0
    %2083 = vmatpush1.xpose.msra.mxu0 0.0
    %2084 = vmatprep.subr.mxu0 0.0
    %2085 = vmatpush1.xpose.msra.mxu0 0.0
    %2086 = vmatprep.subr.mxu0 0.0
    %2087 = vmatpush1.xpose.msra.mxu0 0.0
    %2088 = vmatprep.subr.mxu0 0.0
    %2089 = vmatpush1.xpose.msra.mxu0 0.0
    %2090 = vmatprep.subr.mxu0 0.0
    %2091 = vmatpush1.xpose.msra.mxu0 0.0
    %2092 = vmatprep.subr.mxu0 0.0
    %2093 = vmatpush1.xpose.msra.mxu0 0.0
    %2094 = vmatprep.subr.mxu0 0.0
    %2095 = vmatpush1.xpose.msra.mxu0 0.0
    %2096 = vmatprep.subr.mxu0 0.0
    %2097 = vmatpush1.xpose.msra.mxu0 0.0
    %2098 = vmatprep.subr.mxu0 0.0
    %2099 = vmatpush1.xpose.msra.mxu0 0.0
    %2100 = vmatprep.subr.mxu0 0.0
    %2101 = vmatpush1.xpose.msra.mxu0 0.0
    %2102 = vmatprep.subr.mxu0 0.0
    %2103 = vmatpush1.xpose.msra.mxu0 0.0
    %2104 = vmatprep.subr.mxu0 0.0
    %2105 = vmatpush1.xpose.msra.mxu0 0.0
    %2106 = vmatprep.subr.mxu0 0.0
    %2107 = vmatpush1.xpose.msra.mxu0 0.0
    %2108 = vmatprep.subr.mxu0 0.0
    %2109 = vmatpush1.xpose.msra.mxu0 0.0
    %2110 = vmatprep.subr.mxu0 0.0
    %2111 = vmatpush1.xpose.msra.mxu0 0.0
    %2112 = vmatprep.subr.mxu0 0.0
    %2113 = vmatpush1.xpose.msra.mxu0 0.0
    %2114 = vmatprep.subr.mxu0 0.0
    %2115 = vmatpush1.xpose.msra.mxu0 0.0
    %2116 = vmatprep.subr.mxu0 0.0
    %2117 = vmatpush1.xpose.msra.mxu0 0.0
    %2118 = vmatprep.subr.mxu0 0.0
    %2119 = vmatpush1.xpose.msra.mxu0 0.0
    %2120 = vmatprep.mubr.f32.mxu0 0.0
    %2121 = vmatmul.mubr.f32.gmra.mrb[0].mxu0 %v2045
    %v2122 = vpop.f32.mrb[0].mxu0
    %v2123 = vadd.f32 %v166, %v2122
    %v2124 = vpop.f32.mrb[0].mxu0
    %2125 = vmatprep.mubr.f32.mxu0 0.0
    %2126 = vmatmul.mubr.f32.gmra.mrb[0].mxu0 %v2048
    %v2127 = vpop.f32.mrb[0].mxu0
    %v2128 = vadd.f32 %v167, %v2127
    %v2129 = vpop.f32.mrb[0].mxu0
    %2130 = vdwg.mxu0
    %v2131 = vsel %vm84, %v2123, -inf
    %2132 = vmax.xlane.f32.xlu0 %v2131
    %v2133 = vpop.xlane.xlu0 %2132
    %v2134 = vsel %vm84, %v2128, -inf
    %2135 = vmax.xlane.f32.xlu0 %v2134
    %v2136 = vpop.xlane.xlu0 %2135
    %v2137 = vsub.f32 %v2123, %v2133
    %v2138 = vsub.f32 %v2128, %v2136
    %v2139 = vmul.f32 %v2137, 1.442695
    %v2140 = vpow.pop %v2139
    %v2141 = vmul.f32 %v2138, 1.442695
    %v2142 = vpow.pop %v2141
    %v2143 = vsel %vm84, %v2140, 0.0
    %2144 = vadd.xlane.f32.xlu0 %v2143
    %v2145 = vpop.xlane.xlu0 %2144
    %v2146 = vsel %vm84, %v2142, 0.0
    %2147 = vadd.xlane.f32.xlu0 %v2146
    %v2148 = vpop.xlane.xlu0 %2147
    %v2149 = vrcp.pop %v2145
    %v2150 = vrcp.pop %v2148
    %v2151 = vmul.f32 %v2140, %v2149
    %v2152 = vmul.f32 %v2142, %v2150
    %v2154 = vsel %vm84, %v2151, 0
    %v2157 = vsel %vm84, %v2152, 0
    %2159 = vmatprep.subr.mxu0 0.0
    %2160 = vmatpush1.msra.mxu0 %v2036
    %2161 = vmatprep.subr.mxu0 0.0
    %2162 = vmatpush1.msra.mxu0 %v2041
    %2163 = vmatprep.subr.mxu0 0.0
    %2164 = vmatpush1.msra.mxu0 0.0
    %2165 = vmatprep.subr.mxu0 0.0
    %2166 = vmatpush1.msra.mxu0 0.0
    %2167 = vmatprep.subr.mxu0 0.0
    %2168 = vmatpush1.msra.mxu0 0.0
    %2169 = vmatprep.subr.mxu0 0.0
    %2170 = vmatpush1.msra.mxu0 0.0
    %2171 = vmatprep.subr.mxu0 0.0
    %2172 = vmatpush1.msra.mxu0 0.0
    %2173 = vmatprep.subr.mxu0 0.0
    %2174 = vmatpush1.msra.mxu0 0.0
    %2175 = vmatprep.subr.mxu0 0.0
    %2176 = vmatpush1.msra.mxu0 0.0
    %2177 = vmatprep.subr.mxu0 0.0
    %2178 = vmatpush1.msra.mxu0 0.0
    %2179 = vmatprep.subr.mxu0 0.0
    %2180 = vmatpush1.msra.mxu0 0.0
    %2181 = vmatprep.subr.mxu0 0.0
    %2182 = vmatpush1.msra.mxu0 0.0
    %2183 = vmatprep.subr.mxu0 0.0
    %2184 = vmatpush1.msra.mxu0 0.0
    %2185 = vmatprep.subr.mxu0 0.0
    %2186 = vmatpush1.msra.mxu0 0.0
    %2187 = vmatprep.subr.mxu0 0.0
    %2188 = vmatpush1.msra.mxu0 0.0
    %2189 = vmatprep.subr.mxu0 0.0
    %2190 = vmatpush1.msra.mxu0 0.0
    %2191 = vmatprep.subr.mxu0 0.0
    %2192 = vmatpush1.msra.mxu0 0.0
    %2193 = vmatprep.subr.mxu0 0.0
    %2194 = vmatpush1.msra.mxu0 0.0
    %2195 = vmatprep.subr.mxu0 0.0
    %2196 = vmatpush1.msra.mxu0 0.0
    %2197 = vmatprep.subr.mxu0 0.0
    %2198 = vmatpush1.msra.mxu0 0.0
    %2199 = vmatprep.subr.mxu0 0.0
    %2200 = vmatpush1.msra.mxu0 0.0
    %2201 = vmatprep.subr.mxu0 0.0
    %2202 = vmatpush1.msra.mxu0 0.0
    %2203 = vmatprep.subr.mxu0 0.0
    %2204 = vmatpush1.msra.mxu0 0.0
    %2205 = vmatprep.subr.mxu0 0.0
    %2206 = vmatpush1.msra.mxu0 0.0
    %2207 = vmatprep.subr.mxu0 0.0
    %2208 = vmatpush1.msra.mxu0 0.0
    %2209 = vmatprep.subr.mxu0 0.0
    %2210 = vmatpush1.msra.mxu0 0.0
    %2211 = vmatprep.subr.mxu0 0.0
    %2212 = vmatpush1.msra.mxu0 0.0
    %2213 = vmatprep.subr.mxu0 0.0
    %2214 = vmatpush1.msra.mxu0 0.0
    %2215 = vmatprep.subr.mxu0 0.0
    %2216 = vmatpush1.msra.mxu0 0.0
    %2217 = vmatprep.subr.mxu0 0.0
    %2218 = vmatpush1.msra.mxu0 0.0
    %2219 = vmatprep.subr.mxu0 0.0
    %2220 = vmatpush1.msra.mxu0 0.0
    %2221 = vmatprep.subr.mxu0 0.0
    %2222 = vmatpush1.msra.mxu0 0.0
    %2223 = vmatprep.mubr.f32.mxu0 0.0
    %2224 = vmatmul.mubr.f32.gmra.mrb[0].mxu0 %v2154
    %v2225 = vpop.f32.mrb[0].mxu0
    %v2226 = vadd.f32 0.0, %v2225
    %v2227 = vpop.f32.mrb[0].mxu0
    %2228 = vmatprep.mubr.f32.mxu0 0.0
    %2229 = vmatmul.mubr.f32.gmra.mrb[0].mxu0 %v2157
    %v2230 = vpop.f32.mrb[0].mxu0
    %v2231 = vadd.f32 0.0, %v2230
    %v2232 = vpop.f32.mrb[0].mxu0
    %2233 = vdwg.mxu0
    %v2234 = vld [vmem:[%s10 + $0x18] sm:$0xff]
    %v2236 = vsel %vm433, %v2226, 0
    %v2239 = vsel %vm433, %v2231, 0
    %2241 = vmatprep.subr.mxu0 0.0
    %2242 = vmatpush1.msra.mxu0 %v2234
    %2243 = vmatprep.subr.mxu0 0.0
    %2244 = vmatpush1.msra.mxu0 0.0
    %2245 = vmatprep.subr.mxu0 0.0
    %2246 = vmatpush1.msra.mxu0 0.0
    %2247 = vmatprep.subr.mxu0 0.0
    %2248 = vmatpush1.msra.mxu0 0.0
    %2249 = vmatprep.subr.mxu0 0.0
    %2250 = vmatpush1.msra.mxu0 0.0
    %2251 = vmatprep.subr.mxu0 0.0
    %2252 = vmatpush1.msra.mxu0 0.0
    %2253 = vmatprep.subr.mxu0 0.0
    %2254 = vmatpush1.msra.mxu0 0.0
    %2255 = vmatprep.subr.mxu0 0.0
    %2256 = vmatpush1.msra.mxu0 0.0
    %2257 = vmatprep.subr.mxu0 0.0
    %2258 = vmatpush1.msra.mxu0 0.0
    %2259 = vmatprep.subr.mxu0 0.0
    %2260 = vmatpush1.msra.mxu0 0.0
    %2261 = vmatprep.subr.mxu0 0.0
    %2262 = vmatpush1.msra.mxu0 0.0
    %2263 = vmatprep.subr.mxu0 0.0
    %2264 = vmatpush1.msra.mxu0 0.0
    %2265 = vmatprep.subr.mxu0 0.0
    %2266 = vmatpush1.msra.mxu0 0.0
    %2267 = vmatprep.subr.mxu0 0.0
    %2268 = vmatpush1.msra.mxu0 0.0
    %2269 = vmatprep.subr.mxu0 0.0
    %2270 = vmatpush1.msra.mxu0 0.0
    %2271 = vmatprep.subr.mxu0 0.0
    %2272 = vmatpush1.msra.mxu0 0.0
    %2273 = vmatprep.subr.mxu0 0.0
    %2274 = vmatpush1.msra.mxu0 0.0
    %2275 = vmatprep.subr.mxu0 0.0
    %2276 = vmatpush1.msra.mxu0 0.0
    %2277 = vmatprep.subr.mxu0 0.0
    %2278 = vmatpush1.msra.mxu0 0.0
    %2279 = vmatprep.subr.mxu0 0.0
    %2280 = vmatpush1.msra.mxu0 0.0
    %2281 = vmatprep.subr.mxu0 0.0
    %2282 = vmatpush1.msra.mxu0 0.0
    %2283 = vmatprep.subr.mxu0 0.0
    %2284 = vmatpush1.msra.mxu0 0.0
    %2285 = vmatprep.subr.mxu0 0.0
    %2286 = vmatpush1.msra.mxu0 0.0
    %2287 = vmatprep.subr.mxu0 0.0
    %2288 = vmatpush1.msra.mxu0 0.0
    %2289 = vmatprep.subr.mxu0 0.0
    %2290 = vmatpush1.msra.mxu0 0.0
    %2291 = vmatprep.subr.mxu0 0.0
    %2292 = vmatpush1.msra.mxu0 0.0
    %2293 = vmatprep.subr.mxu0 0.0
    %2294 = vmatpush1.msra.mxu0 0.0
    %2295 = vmatprep.subr.mxu0 0.0
    %2296 = vmatpush1.msra.mxu0 0.0
    %2297 = vmatprep.subr.mxu0 0.0
    %2298 = vmatpush1.msra.mxu0 0.0
    %2299 = vmatprep.subr.mxu0 0.0
    %2300 = vmatpush1.msra.mxu0 0.0
    %2301 = vmatprep.subr.mxu0 0.0
    %2302 = vmatpush1.msra.mxu0 0.0
    %2303 = vmatprep.subr.mxu0 0.0
    %2304 = vmatpush1.msra.mxu0 0.0
    %2305 = vmatprep.mubr.f32.mxu0 0.0
    %2306 = vmatmul.mubr.f32.gmra.mrb[0].mxu0 %v2236
    %v2307 = vpop.f32.mrb[0].mxu0
    %v2308 = vadd.f32 0.0, %v2307
    %v2309 = vpop.f32.mrb[0].mxu0
    %2310 = vmatprep.mubr.f32.mxu0 0.0
    %2311 = vmatmul.mubr.f32.gmra.mrb[0].mxu0 %v2239
    %v2312 = vpop.f32.mrb[0].mxu0
    %v2313 = vadd.f32 0.0, %v2312
    %v2314 = vpop.f32.mrb[0].mxu0
    %2315 = vdwg.mxu0
    %v2316 = vadd.f32 %v1778, %v2308
    %v2317 = vadd.f32 %v1779, %v2313
    %v2318 = vld [vmem:[%s11] sm:$0x1]
    %v2320 = vlaneseq
    %v2321 = vshrl.u32 %v2320, 7
    %v2322 = vsub.s32 0, %v2321
    %v2323 = vrot.slane %v2318, %v2322
    %v2325 = vadd.f32 %v2316, %v2323
    %v2326 = vadd.f32 %v2317, %v2323
    %v2327 = vadd.f32 %v158, %v2325
    %v2328 = vadd.f32 %v163, %v2326
    %v2329 = vsel %vm179, %v2327, 0.0
    %2330 = vadd.xlane.f32.xlu0 %v2329
    %v2331 = vpop.xlane.xlu0 %2330
    %v2332 = vsel %vm179, %v2328, 0.0
    %2333 = vadd.xlane.f32.xlu0 %v2332
    %v2334 = vpop.xlane.xlu0 %2333
    %v2335 = vrcp.pop 32.0
    %v2336 = vmul.f32 %v2331, %v2335
    %v2337 = vmul.f32 %v2334, %v2335
    %v2338 = vsub.f32 %v2327, %v2336
    %v2339 = vsub.f32 %v2328, %v2337
    %v2340 = vmul.f32 %v2338, %v2338
    %v2341 = vmul.f32 %v2339, %v2339
    %v2342 = vsel %vm179, %v2340, 0.0
    %2343 = vadd.xlane.f32.xlu0 %v2342
    %v2344 = vpop.xlane.xlu0 %2343
    %v2345 = vsel %vm179, %v2341, 0.0
    %2346 = vadd.xlane.f32.xlu0 %v2345
    %v2347 = vpop.xlane.xlu0 %2346
    %v2348 = vmul.f32 %v2344, %v2335
    %v2349 = vmul.f32 %v2347, %v2335
    %v2350 = vadd.f32 %v2348, 1e-05
    %v2351 = vadd.f32 %v2349, 1e-05
    %v2352 = vrsqrt.pop %v2350
    %v2353 = vrsqrt.pop %v2351
    %v2354 = vmul.f32 %v2338, %v2352
    %v2355 = vmul.f32 %v2339, %v2353
    %v2356 = vld [vmem:[%s12] sm:$0x1]
    %v2358 = vlaneseq
    %v2359 = vshrl.u32 %v2358, 7
    %v2360 = vsub.s32 0, %v2359
    %v2361 = vrot.slane %v2356, %v2360
    %v2363 = vmul.f32 %v2354, %v2361
    %v2364 = vmul.f32 %v2355, %v2361
    %v2365 = vld [vmem:[%s13] sm:$0x1]
    %v2367 = vlaneseq
    %v2368 = vshrl.u32 %v2367, 7
    %v2369 = vsub.s32 0, %v2368
    %v2370 = vrot.slane %v2365, %v2369
    %v2372 = vadd.f32 %v2363, %v2370
    %v2373 = vadd.f32 %v2364, %v2370
    %v2374 = vpack.c.bf16 %v2373, %v2372
    %v2375 = vld [vmem:[%s14] sm:$0xff]
    %v2376 = vld [vmem:[%s14 + $0x8] sm:$0xff]
    %v2377 = vld [vmem:[%s14 + $0x10] sm:$0xff]
    %v2378 = vld [vmem:[%s14 + $0x18] sm:$0xff]
    %v2379 = vld [vmem:[%s14 + $0x20] sm:$0xff]
    %v2380 = vld [vmem:[%s14 + $0x28] sm:$0xff]
    %v2381 = vld [vmem:[%s14 + $0x30] sm:$0xff]
    %v2382 = vld [vmem:[%s14 + $0x38] sm:$0xff]
    %v2383 = vld [vmem:[%s14 + $0x40] sm:$0xff]
    %v2384 = vld [vmem:[%s14 + $0x48] sm:$0xff]
    %v2385 = vld [vmem:[%s14 + $0x50] sm:$0xff]
    %v2386 = vld [vmem:[%s14 + $0x58] sm:$0xff]
    %v2387 = vld [vmem:[%s14 + $0x60] sm:$0xff]
    %v2388 = vld [vmem:[%s14 + $0x68] sm:$0xff]
    %v2389 = vld [vmem:[%s14 + $0x70] sm:$0xff]
    %v2390 = vld [vmem:[%s14 + $0x78] sm:$0xff]
    %v2391 = vld [vmem:[%s14 + $0x80] sm:$0xff]
    %v2392 = vld [vmem:[%s14 + $0x88] sm:$0xff]
    %v2393 = vld [vmem:[%s14 + $0x90] sm:$0xff]
    %v2394 = vld [vmem:[%s14 + $0x98] sm:$0xff]
    %v2395 = vld [vmem:[%s14 + $0xa0] sm:$0xff]
    %v2396 = vld [vmem:[%s14 + $0xa8] sm:$0xff]
    %v2397 = vld [vmem:[%s14 + $0xb0] sm:$0xff]
    %v2398 = vld [vmem:[%s14 + $0xb8] sm:$0xff]
    %v2399 = vld [vmem:[%s14 + $0xc0] sm:$0xff]
    %v2400 = vld [vmem:[%s14 + $0xc8] sm:$0xff]
    %v2401 = vld [vmem:[%s14 + $0xd0] sm:$0xff]
    %v2402 = vld [vmem:[%s14 + $0xd8] sm:$0xff]
    %v2403 = vld [vmem:[%s14 + $0xe0] sm:$0xff]
    %v2404 = vld [vmem:[%s14 + $0xe8] sm:$0xff]
    %v2405 = vld [vmem:[%s14 + $0xf0] sm:$0xff]
    %v2406 = vld [vmem:[%s14 + $0xf8] sm:$0xff]
    %v2407 = vld [vmem:[%s15] sm:$0xff]
    %v2408 = vld [vmem:[%s15 + $0x8] sm:$0xff]
    %v2411 = vlaneseq
    %v2412 = vshrl.u32 %v2411, 7
    %v2413 = vsub.s32 0, %v2412
    %v2414 = vrot.slane %v2407, %v2413
    %v2415 = vlaneseq
    %v2416 = vshrl.u32 %v2415, 7
    %v2417 = vsub.s32 1, %v2416
    %v2418 = vrot.slane %v2407, %v2417
    %v2419 = vlaneseq
    %v2420 = vshrl.u32 %v2419, 7
    %v2421 = vsub.s32 2, %v2420
    %v2422 = vrot.slane %v2407, %v2421
    %v2423 = vlaneseq
    %v2424 = vshrl.u32 %v2423, 7
    %v2425 = vsub.s32 3, %v2424
    %v2426 = vrot.slane %v2407, %v2425
    %v2427 = vlaneseq
    %v2428 = vshrl.u32 %v2427, 7
    %v2429 = vsub.s32 4, %v2428
    %v2430 = vrot.slane %v2407, %v2429
    %v2431 = vlaneseq
    %v2432 = vshrl.u32 %v2431, 7
    %v2433 = vsub.s32 5, %v2432
    %v2434 = vrot.slane %v2407, %v2433
    %v2435 = vlaneseq
    %v2436 = vshrl.u32 %v2435, 7
    %v2437 = vsub.s32 6, %v2436
    %v2438 = vrot.slane %v2407, %v2437
    %v2439 = vlaneseq
    %v2440 = vshrl.u32 %v2439, 7
    %v2441 = vsub.s32 7, %v2440
    %v2442 = vrot.slane %v2407, %v2441
    %v2443 = vlaneseq
    %v2444 = vshrl.u32 %v2443, 7
    %v2445 = vsub.s32 0, %v2444
    %v2446 = vrot.slane %v2408, %v2445
    %v2447 = vlaneseq
    %v2448 = vshrl.u32 %v2447, 7
    %v2449 = vsub.s32 1, %v2448
    %v2450 = vrot.slane %v2408, %v2449
    %v2451 = vlaneseq
    %v2452 = vshrl.u32 %v2451, 7
    %v2453 = vsub.s32 2, %v2452
    %v2454 = vrot.slane %v2408, %v2453
    %v2455 = vlaneseq
    %v2456 = vshrl.u32 %v2455, 7
    %v2457 = vsub.s32 3, %v2456
    %v2458 = vrot.slane %v2408, %v2457
    %v2459 = vlaneseq
    %v2460 = vshrl.u32 %v2459, 7
    %v2461 = vsub.s32 4, %v2460
    %v2462 = vrot.slane %v2408, %v2461
    %v2463 = vlaneseq
    %v2464 = vshrl.u32 %v2463, 7
    %v2465 = vsub.s32 5, %v2464
    %v2466 = vrot.slane %v2408, %v2465
    %v2467 = vlaneseq
    %v2468 = vshrl.u32 %v2467, 7
    %v2469 = vsub.s32 6, %v2468
    %v2470 = vrot.slane %v2408, %v2469
    %v2471 = vlaneseq
    %v2472 = vshrl.u32 %v2471, 7
    %v2473 = vsub.s32 7, %v2472
    %v2474 = vrot.slane %v2408, %v2473
    %v2523 = vunpack.c.l.b16 %v2375
    %v2524 = vunpack.c.h.b16 %v2375
    %v2525 = vunpack.c.l.b16 %v2376
    %v2526 = vunpack.c.h.b16 %v2376
    %v2527 = vunpack.c.l.b16 %v2377
    %v2528 = vunpack.c.h.b16 %v2377
    %v2529 = vunpack.c.l.b16 %v2378
    %v2530 = vunpack.c.h.b16 %v2378
    %v2531 = vunpack.c.l.b16 %v2379
    %v2532 = vunpack.c.h.b16 %v2379
    %v2533 = vunpack.c.l.b16 %v2380
    %v2534 = vunpack.c.h.b16 %v2380
    %v2535 = vunpack.c.l.b16 %v2381
    %v2536 = vunpack.c.h.b16 %v2381
    %v2537 = vunpack.c.l.b16 %v2382
    %v2538 = vunpack.c.h.b16 %v2382
    %v2539 = vunpack.c.l.b16 %v2383
    %v2540 = vunpack.c.h.b16 %v2383
    %v2541 = vunpack.c.l.b16 %v2384
    %v2542 = vunpack.c.h.b16 %v2384
    %v2543 = vunpack.c.l.b16 %v2385
    %v2544 = vunpack.c.h.b16 %v2385
    %v2545 = vunpack.c.l.b16 %v2386
    %v2546 = vunpack.c.h.b16 %v2386
    %v2547 = vunpack.c.l.b16 %v2387
    %v2548 = vunpack.c.h.b16 %v2387
    %v2549 = vunpack.c.l.b16 %v2388
    %v2550 = vunpack.c.h.b16 %v2388
    %v2551 = vunpack.c.l.b16 %v2389
    %v2552 = vunpack.c.h.b16 %v2389
    %v2553 = vunpack.c.l.b16 %v2390
    %v2554 = vunpack.c.h.b16 %v2390
    %v2555 = vunpack.c.l.b16 %v2391
    %v2556 = vunpack.c.h.b16 %v2391
    %v2557 = vunpack.c.l.b16 %v2392
    %v2558 = vunpack.c.h.b16 %v2392
    %v2559 = vunpack.c.l.b16 %v2393
    %v2560 = vunpack.c.h.b16 %v2393
    %v2561 = vunpack.c.l.b16 %v2394
    %v2562 = vunpack.c.h.b16 %v2394
    %v2563 = vunpack.c.l.b16 %v2395
    %v2564 = vunpack.c.h.b16 %v2395
    %v2565 = vunpack.c.l.b16 %v2396
    %v2566 = vunpack.c.h.b16 %v2396
    %v2567 = vunpack.c.l.b16 %v2397
    %v2568 = vunpack.c.h.b16 %v2397
    %v2569 = vunpack.c.l.b16 %v2398
    %v2570 = vunpack.c.h.b16 %v2398
    %v2571 = vunpack.c.l.b16 %v2399
    %v2572 = vunpack.c.h.b16 %v2399
    %v2573 = vunpack.c.l.b16 %v2400
    %v2574 = vunpack.c.h.b16 %v2400
    %v2575 = vunpack.c.l.b16 %v2401
    %v2576 = vunpack.c.h.b16 %v2401
    %v2577 = vunpack.c.l.b16 %v2402
    %v2578 = vunpack.c.h.b16 %v2402
    %v2579 = vunpack.c.l.b16 %v2403
    %v2580 = vunpack.c.h.b16 %v2403
    %v2581 = vunpack.c.l.b16 %v2404
    %v2582 = vunpack.c.h.b16 %v2404
    %v2583 = vunpack.c.l.b16 %v2405
    %v2584 = vunpack.c.h.b16 %v2405
    %v2585 = vunpack.c.l.b16 %v2406
    %v2586 = vunpack.c.h.b16 %v2406
    %v2587 = vpack.c.b16 %v2539, %v2523
    %v2588 = vpack.c.b16 %v2540, %v2524
    %v2589 = vpack.c.b16 %v2541, %v2525
    %v2590 = vpack.c.b16 %v2542, %v2526
    %v2591 = vpack.c.b16 %v2543, %v2527
    %v2592 = vpack.c.b16 %v2544, %v2528
    %v2593 = vpack.c.b16 %v2545, %v2529
    %v2594 = vpack.c.b16 %v2546, %v2530
    %v2595 = vpack.c.b16 %v2547, %v2531
    %v2596 = vpack.c.b16 %v2548, %v2532
    %v2597 = vpack.c.b16 %v2549, %v2533
    %v2598 = vpack.c.b16 %v2550, %v2534
    %v2599 = vpack.c.b16 %v2551, %v2535
    %v2600 = vpack.c.b16 %v2552, %v2536
    %v2601 = vpack.c.b16 %v2553, %v2537
    %v2602 = vpack.c.b16 %v2554, %v2538
    %v2603 = vpack.c.b16 %v2571, %v2555
    %v2604 = vpack.c.b16 %v2572, %v2556
    %v2605 = vpack.c.b16 %v2573, %v2557
    %v2606 = vpack.c.b16 %v2574, %v2558
    %v2607 = vpack.c.b16 %v2575, %v2559
    %v2608 = vpack.c.b16 %v2576, %v2560
    %v2609 = vpack.c.b16 %v2577, %v2561
    %v2610 = vpack.c.b16 %v2578, %v2562
    %v2611 = vpack.c.b16 %v2579, %v2563
    %v2612 = vpack.c.b16 %v2580, %v2564
    %v2613 = vpack.c.b16 %v2581, %v2565
    %v2614 = vpack.c.b16 %v2582, %v2566
    %v2615 = vpack.c.b16 %v2583, %v2567
    %v2616 = vpack.c.b16 %v2584, %v2568
    %v2617 = vpack.c.b16 %v2585, %v2569
    %v2618 = vpack.c.b16 %v2586, %v2570
    %v2652 = vsel %vm179, %v2374, 0
    %2654 = vmatprep.subr.bf16.mxu0 %v2588
    %2655 = vmatpush1.bf16.msra.mxu0 %v2587
    %2656 = vmatprep.subr.bf16.mxu0 %v2604
    %2657 = vmatpush1.bf16.msra.mxu0 %v2603
    %2658 = vmatprep.subr.bf16.mxu0 0
    %2659 = vmatpush1.bf16.msra.mxu0 0
    %2660 = vmatprep.subr.bf16.mxu0 0
    %2661 = vmatpush1.bf16.msra.mxu0 0
    %2662 = vmatprep.subr.bf16.mxu0 0
    %2663 = vmatpush1.bf16.msra.mxu0 0
    %2664 = vmatprep.subr.bf16.mxu0 0
    %2665 = vmatpush1.bf16.msra.mxu0 0
    %2666 = vmatprep.subr.bf16.mxu0 0
    %2667 = vmatpush1.bf16.msra.mxu0 0
    %2668 = vmatprep.subr.bf16.mxu0 0
    %2669 = vmatpush1.bf16.msra.mxu0 0
    %2670 = vmatprep.subr.bf16.mxu0 0
    %2671 = vmatpush1.bf16.msra.mxu0 0
    %2672 = vmatprep.subr.bf16.mxu0 0
    %2673 = vmatpush1.bf16.msra.mxu0 0
    %2674 = vmatprep.subr.bf16.mxu0 0
    %2675 = vmatpush1.bf16.msra.mxu0 0
    %2676 = vmatprep.subr.bf16.mxu0 0
    %2677 = vmatpush1.bf16.msra.mxu0 0
    %2678 = vmatprep.subr.bf16.mxu0 0
    %2679 = vmatpush1.bf16.msra.mxu0 0
    %2680 = vmatprep.subr.bf16.mxu0 0
    %2681 = vmatpush1.bf16.msra.mxu0 0
    %2682 = vmatprep.subr.bf16.mxu0 0
    %2683 = vmatpush1.bf16.msra.mxu0 0
    %2684 = vmatprep.subr.bf16.mxu0 0
    %2685 = vmatpush1.bf16.msra.mxu0 0
    %2686 = vmatprep.mubr.bf16.mxu0 0
    %2687 = vmatmul.mubr.bf16.gmra.mrb[0].mxu0 %v2652
    %v2688 = vpop.f32.mrb[0].mxu0
    %v2689 = vadd.f32 %v2414, %v2688
    %v2690 = vpop.f32.mrb[0].mxu0
    %v2691 = vadd.f32 %v2418, %v2690
    %v2692 = vpop.f32.mrb[0].mxu0
    %v2693 = vadd.f32 %v2414, %v2692
    %v2694 = vpop.f32.mrb[0].mxu0
    %v2695 = vadd.f32 %v2418, %v2694
    %2696 = vdwg.mxu0
    %2697 = vmatprep.subr.bf16.mxu0 %v2590
    %2698 = vmatpush1.bf16.msra.mxu0 %v2589
    %2699 = vmatprep.subr.bf16.mxu0 %v2606
    %2700 = vmatpush1.bf16.msra.mxu0 %v2605
    %2701 = vmatprep.subr.bf16.mxu0 0
    %2702 = vmatpush1.bf16.msra.mxu0 0
    %2703 = vmatprep.subr.bf16.mxu0 0
    %2704 = vmatpush1.bf16.msra.mxu0 0
    %2705 = vmatprep.subr.bf16.mxu0 0
    %2706 = vmatpush1.bf16.msra.mxu0 0
    %2707 = vmatprep.subr.bf16.mxu0 0
    %2708 = vmatpush1.bf16.msra.mxu0 0
    %2709 = vmatprep.subr.bf16.mxu0 0
    %2710 = vmatpush1.bf16.msra.mxu0 0
    %2711 = vmatprep.subr.bf16.mxu0 0
    %2712 = vmatpush1.bf16.msra.mxu0 0
    %2713 = vmatprep.subr.bf16.mxu0 0
    %2714 = vmatpush1.bf16.msra.mxu0 0
    %2715 = vmatprep.subr.bf16.mxu0 0
    %2716 = vmatpush1.bf16.msra.mxu0 0
    %2717 = vmatprep.subr.bf16.mxu0 0
    %2718 = vmatpush1.bf16.msra.mxu0 0
    %2719 = vmatprep.subr.bf16.mxu0 0
    %2720 = vmatpush1.bf16.msra.mxu0 0
    %2721 = vmatprep.subr.bf16.mxu0 0
    %2722 = vmatpush1.bf16.msra.mxu0 0
    %2723 = vmatprep.subr.bf16.mxu0 0
    %2724 = vmatpush1.bf16.msra.mxu0 0
    %2725 = vmatprep.subr.bf16.mxu0 0
    %2726 = vmatpush1.bf16.msra.mxu0 0
    %2727 = vmatprep.subr.bf16.mxu0 0
    %2728 = vmatpush1.bf16.msra.mxu0 0
    %2729 = vmatprep.mubr.bf16.mxu0 0
    %2730 = vmatmul.mubr.bf16.gmra.mrb[0].mxu0 %v2652
    %v2731 = vpop.f32.mrb[0].mxu0
    %v2732 = vadd.f32 %v2422, %v2731
    %v2733 = vpop.f32.mrb[0].mxu0
    %v2734 = vadd.f32 %v2426, %v2733
    %v2735 = vpop.f32.mrb[0].mxu0
    %v2736 = vadd.f32 %v2422, %v2735
    %v2737 = vpop.f32.mrb[0].mxu0
    %v2738 = vadd.f32 %v2426, %v2737
    %2739 = vdwg.mxu0
    %2740 = vmatprep.subr.bf16.mxu0 %v2592
    %2741 = vmatpush1.bf16.msra.mxu0 %v2591
    %2742 = vmatprep.subr.bf16.mxu0 %v2608
    %2743 = vmatpush1.bf16.msra.mxu0 %v2607
    %2744 = vmatprep.subr.bf16.mxu0 0
    %2745 = vmatpush1.bf16.msra.mxu0 0
    %2746 = vmatprep.subr.bf16.mxu0 0
    %2747 = vmatpush1.bf16.msra.mxu0 0
    %2748 = vmatprep.subr.bf16.mxu0 0
    %2749 = vmatpush1.bf16.msra.mxu0 0
    %2750 = vmatprep.subr.bf16.mxu0 0
    %2751 = vmatpush1.bf16.msra.mxu0 0
    %2752 = vmatprep.subr.bf16.mxu0 0
    %2753 = vmatpush1.bf16.msra.mxu0 0
    %2754 = vmatprep.subr.bf16.mxu0 0
    %2755 = vmatpush1.bf16.msra.mxu0 0
    %2756 = vmatprep.subr.bf16.mxu0 0
    %2757 = vmatpush1.bf16.msra.mxu0 0
    %2758 = vmatprep.subr.bf16.mxu0 0
    %2759 = vmatpush1.bf16.msra.mxu0 0
    %2760 = vmatprep.subr.bf16.mxu0 0
    %2761 = vmatpush1.bf16.msra.mxu0 0
    %2762 = vmatprep.subr.bf16.mxu0 0
    %2763 = vmatpush1.bf16.msra.mxu0 0
    %2764 = vmatprep.subr.bf16.mxu0 0
    %2765 = vmatpush1.bf16.msra.mxu0 0
    %2766 = vmatprep.subr.bf16.mxu0 0
    %2767 = vmatpush1.bf16.msra.mxu0 0
    %2768 = vmatprep.subr.bf16.mxu0 0
    %2769 = vmatpush1.bf16.msra.mxu0 0
    %2770 = vmatprep.subr.bf16.mxu0 0
    %2771 = vmatpush1.bf16.msra.mxu0 0
    %2772 = vmatprep.mubr.bf16.mxu0 0
    %2773 = vmatmul.mubr.bf16.gmra.mrb[0].mxu0 %v2652
    %v2774 = vpop.f32.mrb[0].mxu0
    %v2775 = vadd.f32 %v2430, %v2774
    %v2776 = vpop.f32.mrb[0].mxu0
    %v2777 = vadd.f32 %v2434, %v2776
    %v2778 = vpop.f32.mrb[0].mxu0
    %v2779 = vadd.f32 %v2430, %v2778
    %v2780 = vpop.f32.mrb[0].mxu0
    %v2781 = vadd.f32 %v2434, %v2780
    %2782 = vdwg.mxu0
    %2783 = vmatprep.subr.bf16.mxu0 %v2594
    %2784 = vmatpush1.bf16.msra.mxu0 %v2593
    %2785 = vmatprep.subr.bf16.mxu0 %v2610
    %2786 = vmatpush1.bf16.msra.mxu0 %v2609
    %2787 = vmatprep.subr.bf16.mxu0 0
    %2788 = vmatpush1.bf16.msra.mxu0 0
    %2789 = vmatprep.subr.bf16.mxu0 0
    %2790 = vmatpush1.bf16.msra.mxu0 0
    %2791 = vmatprep.subr.bf16.mxu0 0
    %2792 = vmatpush1.bf16.msra.mxu0 0
    %2793 = vmatprep.subr.bf16.mxu0 0
    %2794 = vmatpush1.bf16.msra.mxu0 0
    %2795 = vmatprep.subr.bf16.mxu0 0
    %2796 = vmatpush1.bf16.msra.mxu0 0
    %2797 = vmatprep.subr.bf16.mxu0 0
    %2798 = vmatpush1.bf16.msra.mxu0 0
    %2799 = vmatprep.subr.bf16.mxu0 0
    %2800 = vmatpush1.bf16.msra.mxu0 0
    %2801 = vmatprep.subr.bf16.mxu0 0
    %2802 = vmatpush1.bf16.msra.mxu0 0
    %2803 = vmatprep.subr.bf16.mxu0 0
    %2804 = vmatpush1.bf16.msra.mxu0 0
    %2805 = vmatprep.subr.bf16.mxu0 0
    %2806 = vmatpush1.bf16.msra.mxu0 0
    %2807 = vmatprep.subr.bf16.mxu0 0
    %2808 = vmatpush1.bf16.msra.mxu0 0
    %2809 = vmatprep.subr.bf16.mxu0 0
    %2810 = vmatpush1.bf16.msra.mxu0 0
    %2811 = vmatprep.subr.bf16.mxu0 0
    %2812 = vmatpush1.bf16.msra.mxu0 0
    %2813 = vmatprep.subr.bf16.mxu0 0
    %2814 = vmatpush1.bf16.msra.mxu0 0
    %2815 = vmatprep.mubr.bf16.mxu0 0
    %2816 = vmatmul.mubr.bf16.gmra.mrb[0].mxu0 %v2652
    %v2817 = vpop.f32.mrb[0].mxu0
    %v2818 = vadd.f32 %v2438, %v2817
    %v2819 = vpop.f32.mrb[0].mxu0
    %v2820 = vadd.f32 %v2442, %v2819
    %v2821 = vpop.f32.mrb[0].mxu0
    %v2822 = vadd.f32 %v2438, %v2821
    %v2823 = vpop.f32.mrb[0].mxu0
    %v2824 = vadd.f32 %v2442, %v2823
    %2825 = vdwg.mxu0
    %2826 = vmatprep.subr.bf16.mxu0 %v2596
    %2827 = vmatpush1.bf16.msra.mxu0 %v2595
    %2828 = vmatprep.subr.bf16.mxu0 %v2612
    %2829 = vmatpush1.bf16.msra.mxu0 %v2611
    %2830 = vmatprep.subr.bf16.mxu0 0
    %2831 = vmatpush1.bf16.msra.mxu0 0
    %2832 = vmatprep.subr.bf16.mxu0 0
    %2833 = vmatpush1.bf16.msra.mxu0 0
    %2834 = vmatprep.subr.bf16.mxu0 0
    %2835 = vmatpush1.bf16.msra.mxu0 0
    %2836 = vmatprep.subr.bf16.mxu0 0
    %2837 = vmatpush1.bf16.msra.mxu0 0
    %2838 = vmatprep.subr.bf16.mxu0 0
    %2839 = vmatpush1.bf16.msra.mxu0 0
    %2840 = vmatprep.subr.bf16.mxu0 0
    %2841 = vmatpush1.bf16.msra.mxu0 0
    %2842 = vmatprep.subr.bf16.mxu0 0
    %2843 = vmatpush1.bf16.msra.mxu0 0
    %2844 = vmatprep.subr.bf16.mxu0 0
    %2845 = vmatpush1.bf16.msra.mxu0 0
    %2846 = vmatprep.subr.bf16.mxu0 0
    %2847 = vmatpush1.bf16.msra.mxu0 0
    %2848 = vmatprep.subr.bf16.mxu0 0
    %2849 = vmatpush1.bf16.msra.mxu0 0
    %2850 = vmatprep.subr.bf16.mxu0 0
    %2851 = vmatpush1.bf16.msra.mxu0 0
    %2852 = vmatprep.subr.bf16.mxu0 0
    %2853 = vmatpush1.bf16.msra.mxu0 0
    %2854 = vmatprep.subr.bf16.mxu0 0
    %2855 = vmatpush1.bf16.msra.mxu0 0
    %2856 = vmatprep.subr.bf16.mxu0 0
    %2857 = vmatpush1.bf16.msra.mxu0 0
    %2858 = vmatprep.mubr.bf16.mxu0 0
    %2859 = vmatmul.mubr.bf16.gmra.mrb[0].mxu0 %v2652
    %v2860 = vpop.f32.mrb[0].mxu0
    %v2861 = vadd.f32 %v2446, %v2860
    %v2862 = vpop.f32.mrb[0].mxu0
    %v2863 = vadd.f32 %v2450, %v2862
    %v2864 = vpop.f32.mrb[0].mxu0
    %v2865 = vadd.f32 %v2446, %v2864
    %v2866 = vpop.f32.mrb[0].mxu0
    %v2867 = vadd.f32 %v2450, %v2866
    %2868 = vdwg.mxu0
    %2869 = vmatprep.subr.bf16.mxu0 %v2598
    %2870 = vmatpush1.bf16.msra.mxu0 %v2597
    %2871 = vmatprep.subr.bf16.mxu0 %v2614
    %2872 = vmatpush1.bf16.msra.mxu0 %v2613
    %2873 = vmatprep.subr.bf16.mxu0 0
    %2874 = vmatpush1.bf16.msra.mxu0 0
    %2875 = vmatprep.subr.bf16.mxu0 0
    %2876 = vmatpush1.bf16.msra.mxu0 0
    %2877 = vmatprep.subr.bf16.mxu0 0
    %2878 = vmatpush1.bf16.msra.mxu0 0
    %2879 = vmatprep.subr.bf16.mxu0 0
    %2880 = vmatpush1.bf16.msra.mxu0 0
    %2881 = vmatprep.subr.bf16.mxu0 0
    %2882 = vmatpush1.bf16.msra.mxu0 0
    %2883 = vmatprep.subr.bf16.mxu0 0
    %2884 = vmatpush1.bf16.msra.mxu0 0
    %2885 = vmatprep.subr.bf16.mxu0 0
    %2886 = vmatpush1.bf16.msra.mxu0 0
    %2887 = vmatprep.subr.bf16.mxu0 0
    %2888 = vmatpush1.bf16.msra.mxu0 0
    %2889 = vmatprep.subr.bf16.mxu0 0
    %2890 = vmatpush1.bf16.msra.mxu0 0
    %2891 = vmatprep.subr.bf16.mxu0 0
    %2892 = vmatpush1.bf16.msra.mxu0 0
    %2893 = vmatprep.subr.bf16.mxu0 0
    %2894 = vmatpush1.bf16.msra.mxu0 0
    %2895 = vmatprep.subr.bf16.mxu0 0
    %2896 = vmatpush1.bf16.msra.mxu0 0
    %2897 = vmatprep.subr.bf16.mxu0 0
    %2898 = vmatpush1.bf16.msra.mxu0 0
    %2899 = vmatprep.subr.bf16.mxu0 0
    %2900 = vmatpush1.bf16.msra.mxu0 0
    %2901 = vmatprep.mubr.bf16.mxu0 0
    %2902 = vmatmul.mubr.bf16.gmra.mrb[0].mxu0 %v2652
    %v2903 = vpop.f32.mrb[0].mxu0
    %v2904 = vadd.f32 %v2454, %v2903
    %v2905 = vpop.f32.mrb[0].mxu0
    %v2906 = vadd.f32 %v2458, %v2905
    %v2907 = vpop.f32.mrb[0].mxu0
    %v2908 = vadd.f32 %v2454, %v2907
    %v2909 = vpop.f32.mrb[0].mxu0
    %v2910 = vadd.f32 %v2458, %v2909
    %2911 = vdwg.mxu0
    %2912 = vmatprep.subr.bf16.mxu0 %v2600
    %2913 = vmatpush1.bf16.msra.mxu0 %v2599
    %2914 = vmatprep.subr.bf16.mxu0 %v2616
    %2915 = vmatpush1.bf16.msra.mxu0 %v2615
    %2916 = vmatprep.subr.bf16.mxu0 0
    %2917 = vmatpush1.bf16.msra.mxu0 0
    %2918 = vmatprep.subr.bf16.mxu0 0
    %2919 = vmatpush1.bf16.msra.mxu0 0
    %2920 = vmatprep.subr.bf16.mxu0 0
    %2921 = vmatpush1.bf16.msra.mxu0 0
    %2922 = vmatprep.subr.bf16.mxu0 0
    %2923 = vmatpush1.bf16.msra.mxu0 0
    %2924 = vmatprep.subr.bf16.mxu0 0
    %2925 = vmatpush1.bf16.msra.mxu0 0
    %2926 = vmatprep.subr.bf16.mxu0 0
    %2927 = vmatpush1.bf16.msra.mxu0 0
    %2928 = vmatprep.subr.bf16.mxu0 0
    %2929 = vmatpush1.bf16.msra.mxu0 0
    %2930 = vmatprep.subr.bf16.mxu0 0
    %2931 = vmatpush1.bf16.msra.mxu0 0
    %2932 = vmatprep.subr.bf16.mxu0 0
    %2933 = vmatpush1.bf16.msra.mxu0 0
    %2934 = vmatprep.subr.bf16.mxu0 0
    %2935 = vmatpush1.bf16.msra.mxu0 0
    %2936 = vmatprep.subr.bf16.mxu0 0
    %2937 = vmatpush1.bf16.msra.mxu0 0
    %2938 = vmatprep.subr.bf16.mxu0 0
    %2939 = vmatpush1.bf16.msra.mxu0 0
    %2940 = vmatprep.subr.bf16.mxu0 0
    %2941 = vmatpush1.bf16.msra.mxu0 0
    %2942 = vmatprep.subr.bf16.mxu0 0
    %2943 = vmatpush1.bf16.msra.mxu0 0
    %2944 = vmatprep.mubr.bf16.mxu0 0
    %2945 = vmatmul.mubr.bf16.gmra.mrb[0].mxu0 %v2652
    %v2946 = vpop.f32.mrb[0].mxu0
    %v2947 = vadd.f32 %v2462, %v2946
    %v2948 = vpop.f32.mrb[0].mxu0
    %v2949 = vadd.f32 %v2466, %v2948
    %v2950 = vpop.f32.mrb[0].mxu0
    %v2951 = vadd.f32 %v2462, %v2950
    %v2952 = vpop.f32.mrb[0].mxu0
    %v2953 = vadd.f32 %v2466, %v2952
    %2954 = vdwg.mxu0
    %2955 = vmatprep.subr.bf16.mxu0 %v2602
    %2956 = vmatpush1.bf16.msra.mxu0 %v2601
    %2957 = vmatprep.subr.bf16.mxu0 %v2618
    %2958 = vmatpush1.bf16.msra.mxu0 %v2617
    %2959 = vmatprep.subr.bf16.mxu0 0
    %2960 = vmatpush1.bf16.msra.mxu0 0
    %2961 = vmatprep.subr.bf16.mxu0 0
    %2962 = vmatpush1.bf16.msra.mxu0 0
    %2963 = vmatprep.subr.bf16.mxu0 0
    %2964 = vmatpush1.bf16.msra.mxu0 0
    %2965 = vmatprep.subr.bf16.mxu0 0
    %2966 = vmatpush1.bf16.msra.mxu0 0
    %2967 = vmatprep.subr.bf16.mxu0 0
    %2968 = vmatpush1.bf16.msra.mxu0 0
    %2969 = vmatprep.subr.bf16.mxu0 0
    %2970 = vmatpush1.bf16.msra.mxu0 0
    %2971 = vmatprep.subr.bf16.mxu0 0
    %2972 = vmatpush1.bf16.msra.mxu0 0
    %2973 = vmatprep.subr.bf16.mxu0 0
    %2974 = vmatpush1.bf16.msra.mxu0 0
    %2975 = vmatprep.subr.bf16.mxu0 0
    %2976 = vmatpush1.bf16.msra.mxu0 0
    %2977 = vmatprep.subr.bf16.mxu0 0
    %2978 = vmatpush1.bf16.msra.mxu0 0
    %2979 = vmatprep.subr.bf16.mxu0 0
    %2980 = vmatpush1.bf16.msra.mxu0 0
    %2981 = vmatprep.subr.bf16.mxu0 0
    %2982 = vmatpush1.bf16.msra.mxu0 0
    %2983 = vmatprep.subr.bf16.mxu0 0
    %2984 = vmatpush1.bf16.msra.mxu0 0
    %2985 = vmatprep.subr.bf16.mxu0 0
    %2986 = vmatpush1.bf16.msra.mxu0 0
    %2987 = vmatprep.mubr.bf16.mxu0 0
    %2988 = vmatmul.mubr.bf16.gmra.mrb[0].mxu0 %v2652
    %v2989 = vpop.f32.mrb[0].mxu0
    %v2990 = vadd.f32 %v2470, %v2989
    %v2991 = vpop.f32.mrb[0].mxu0
    %v2992 = vadd.f32 %v2474, %v2991
    %v2993 = vpop.f32.mrb[0].mxu0
    %v2994 = vadd.f32 %v2470, %v2993
    %v2995 = vpop.f32.mrb[0].mxu0
    %v2996 = vadd.f32 %v2474, %v2995
    %2997 = vdwg.mxu0
    %v2998 = vmax.f32 %v2689, 0.0
    %v2999 = vmax.f32 %v2691, 0.0
    %v3000 = vmax.f32 %v2732, 0.0
    %v3001 = vmax.f32 %v2734, 0.0
    %v3002 = vmax.f32 %v2775, 0.0
    %v3003 = vmax.f32 %v2777, 0.0
    %v3004 = vmax.f32 %v2818, 0.0
    %v3005 = vmax.f32 %v2820, 0.0
    %v3006 = vmax.f32 %v2861, 0.0
    %v3007 = vmax.f32 %v2863, 0.0
    %v3008 = vmax.f32 %v2904, 0.0
    %v3009 = vmax.f32 %v2906, 0.0
    %v3010 = vmax.f32 %v2947, 0.0
    %v3011 = vmax.f32 %v2949, 0.0
    %v3012 = vmax.f32 %v2990, 0.0
    %v3013 = vmax.f32 %v2992, 0.0
    %v3014 = vmax.f32 %v2693, 0.0
    %v3015 = vmax.f32 %v2695, 0.0
    %v3016 = vmax.f32 %v2736, 0.0
    %v3017 = vmax.f32 %v2738, 0.0
    %v3018 = vmax.f32 %v2779, 0.0
    %v3019 = vmax.f32 %v2781, 0.0
    %v3020 = vmax.f32 %v2822, 0.0
    %v3021 = vmax.f32 %v2824, 0.0
    %v3022 = vmax.f32 %v2865, 0.0
    %v3023 = vmax.f32 %v2867, 0.0
    %v3024 = vmax.f32 %v2908, 0.0
    %v3025 = vmax.f32 %v2910, 0.0
    %v3026 = vmax.f32 %v2951, 0.0
    %v3027 = vmax.f32 %v2953, 0.0
    %v3028 = vmax.f32 %v2994, 0.0
    %v3029 = vmax.f32 %v2996, 0.0
    %v3030 = vpack.c.bf16 %v3014, %v2998
    %v3031 = vpack.c.bf16 %v3015, %v2999
    %v3032 = vpack.c.bf16 %v3016, %v3000
    %v3033 = vpack.c.bf16 %v3017, %v3001
    %v3034 = vpack.c.bf16 %v3018, %v3002
    %v3035 = vpack.c.bf16 %v3019, %v3003
    %v3036 = vpack.c.bf16 %v3020, %v3004
    %v3037 = vpack.c.bf16 %v3021, %v3005
    %v3038 = vpack.c.bf16 %v3022, %v3006
    %v3039 = vpack.c.bf16 %v3023, %v3007
    %v3040 = vpack.c.bf16 %v3024, %v3008
    %v3041 = vpack.c.bf16 %v3025, %v3009
    %v3042 = vpack.c.bf16 %v3026, %v3010
    %v3043 = vpack.c.bf16 %v3027, %v3011
    %v3044 = vpack.c.bf16 %v3028, %v3012
    %v3045 = vpack.c.bf16 %v3029, %v3013
    %v3046 = vld [vmem:[%s16] sm:$0xf]
    %v3047 = vld [vmem:[%s16 + $0x4] sm:$0xf]
    %v3048 = vld [vmem:[%s16 + $0x8] sm:$0xf]
    %v3049 = vld [vmem:[%s16 + $0xc] sm:$0xf]
    %v3050 = vld [vmem:[%s16 + $0x10] sm:$0xf]
    %v3051 = vld [vmem:[%s16 + $0x14] sm:$0xf]
    %v3052 = vld [vmem:[%s16 + $0x18] sm:$0xf]
    %v3053 = vld [vmem:[%s16 + $0x1c] sm:$0xf]
    %v3054 = vld [vmem:[%s16 + $0x20] sm:$0xf]
    %v3055 = vld [vmem:[%s16 + $0x24] sm:$0xf]
    %v3056 = vld [vmem:[%s16 + $0x28] sm:$0xf]
    %v3057 = vld [vmem:[%s16 + $0x2c] sm:$0xf]
    %v3058 = vld [vmem:[%s16 + $0x30] sm:$0xf]
    %v3059 = vld [vmem:[%s16 + $0x34] sm:$0xf]
    %v3060 = vld [vmem:[%s16 + $0x38] sm:$0xf]
    %v3061 = vld [vmem:[%s16 + $0x3c] sm:$0xf]
    %v3062 = vld [vmem:[%s16 + $0x40] sm:$0xf]
    %v3063 = vld [vmem:[%s16 + $0x44] sm:$0xf]
    %v3064 = vld [vmem:[%s16 + $0x48] sm:$0xf]
    %v3065 = vld [vmem:[%s16 + $0x4c] sm:$0xf]
    %v3066 = vld [vmem:[%s16 + $0x50] sm:$0xf]
    %v3067 = vld [vmem:[%s16 + $0x54] sm:$0xf]
    %v3068 = vld [vmem:[%s16 + $0x58] sm:$0xf]
    %v3069 = vld [vmem:[%s16 + $0x5c] sm:$0xf]
    %v3070 = vld [vmem:[%s16 + $0x60] sm:$0xf]
    %v3071 = vld [vmem:[%s16 + $0x64] sm:$0xf]
    %v3072 = vld [vmem:[%s16 + $0x68] sm:$0xf]
    %v3073 = vld [vmem:[%s16 + $0x6c] sm:$0xf]
    %v3074 = vld [vmem:[%s16 + $0x70] sm:$0xf]
    %v3075 = vld [vmem:[%s16 + $0x74] sm:$0xf]
    %v3076 = vld [vmem:[%s16 + $0x78] sm:$0xf]
    %v3077 = vld [vmem:[%s16 + $0x7c] sm:$0xf]
    %v3078 = vld [vmem:[%s16 + $0x80] sm:$0xf]
    %v3079 = vld [vmem:[%s16 + $0x84] sm:$0xf]
    %v3080 = vld [vmem:[%s16 + $0x88] sm:$0xf]
    %v3081 = vld [vmem:[%s16 + $0x8c] sm:$0xf]
    %v3082 = vld [vmem:[%s16 + $0x90] sm:$0xf]
    %v3083 = vld [vmem:[%s16 + $0x94] sm:$0xf]
    %v3084 = vld [vmem:[%s16 + $0x98] sm:$0xf]
    %v3085 = vld [vmem:[%s16 + $0x9c] sm:$0xf]
    %v3086 = vld [vmem:[%s16 + $0xa0] sm:$0xf]
    %v3087 = vld [vmem:[%s16 + $0xa4] sm:$0xf]
    %v3088 = vld [vmem:[%s16 + $0xa8] sm:$0xf]
    %v3089 = vld [vmem:[%s16 + $0xac] sm:$0xf]
    %v3090 = vld [vmem:[%s16 + $0xb0] sm:$0xf]
    %v3091 = vld [vmem:[%s16 + $0xb4] sm:$0xf]
    %v3092 = vld [vmem:[%s16 + $0xb8] sm:$0xf]
    %v3093 = vld [vmem:[%s16 + $0xbc] sm:$0xf]
    %v3094 = vld [vmem:[%s16 + $0xc0] sm:$0xf]
    %v3095 = vld [vmem:[%s16 + $0xc4] sm:$0xf]
    %v3096 = vld [vmem:[%s16 + $0xc8] sm:$0xf]
    %v3097 = vld [vmem:[%s16 + $0xcc] sm:$0xf]
    %v3098 = vld [vmem:[%s16 + $0xd0] sm:$0xf]
    %v3099 = vld [vmem:[%s16 + $0xd4] sm:$0xf]
    %v3100 = vld [vmem:[%s16 + $0xd8] sm:$0xf]
    %v3101 = vld [vmem:[%s16 + $0xdc] sm:$0xf]
    %v3102 = vld [vmem:[%s16 + $0xe0] sm:$0xf]
    %v3103 = vld [vmem:[%s16 + $0xe4] sm:$0xf]
    %v3104 = vld [vmem:[%s16 + $0xe8] sm:$0xf]
    %v3105 = vld [vmem:[%s16 + $0xec] sm:$0xf]
    %v3106 = vld [vmem:[%s16 + $0xf0] sm:$0xf]
    %v3107 = vld [vmem:[%s16 + $0xf4] sm:$0xf]
    %v3108 = vld [vmem:[%s16 + $0xf8] sm:$0xf]
    %v3109 = vld [vmem:[%s16 + $0xfc] sm:$0xf]
    %v3110 = vld [vmem:[%s16 + $0x100] sm:$0xf]
    %v3111 = vld [vmem:[%s16 + $0x104] sm:$0xf]
    %v3112 = vld [vmem:[%s16 + $0x108] sm:$0xf]
    %v3113 = vld [vmem:[%s16 + $0x10c] sm:$0xf]
    %v3114 = vld [vmem:[%s16 + $0x110] sm:$0xf]
    %v3115 = vld [vmem:[%s16 + $0x114] sm:$0xf]
    %v3116 = vld [vmem:[%s16 + $0x118] sm:$0xf]
    %v3117 = vld [vmem:[%s16 + $0x11c] sm:$0xf]
    %v3118 = vld [vmem:[%s16 + $0x120] sm:$0xf]
    %v3119 = vld [vmem:[%s16 + $0x124] sm:$0xf]
    %v3120 = vld [vmem:[%s16 + $0x128] sm:$0xf]
    %v3121 = vld [vmem:[%s16 + $0x12c] sm:$0xf]
    %v3122 = vld [vmem:[%s16 + $0x130] sm:$0xf]
    %v3123 = vld [vmem:[%s16 + $0x134] sm:$0xf]
    %v3124 = vld [vmem:[%s16 + $0x138] sm:$0xf]
    %v3125 = vld [vmem:[%s16 + $0x13c] sm:$0xf]
    %v3126 = vld [vmem:[%s16 + $0x140] sm:$0xf]
    %v3127 = vld [vmem:[%s16 + $0x144] sm:$0xf]
    %v3128 = vld [vmem:[%s16 + $0x148] sm:$0xf]
    %v3129 = vld [vmem:[%s16 + $0x14c] sm:$0xf]
    %v3130 = vld [vmem:[%s16 + $0x150] sm:$0xf]
    %v3131 = vld [vmem:[%s16 + $0x154] sm:$0xf]
    %v3132 = vld [vmem:[%s16 + $0x158] sm:$0xf]
    %v3133 = vld [vmem:[%s16 + $0x15c] sm:$0xf]
    %v3134 = vld [vmem:[%s16 + $0x160] sm:$0xf]
    %v3135 = vld [vmem:[%s16 + $0x164] sm:$0xf]
    %v3136 = vld [vmem:[%s16 + $0x168] sm:$0xf]
    %v3137 = vld [vmem:[%s16 + $0x16c] sm:$0xf]
    %v3138 = vld [vmem:[%s16 + $0x170] sm:$0xf]
    %v3139 = vld [vmem:[%s16 + $0x174] sm:$0xf]
    %v3140 = vld [vmem:[%s16 + $0x178] sm:$0xf]
    %v3141 = vld [vmem:[%s16 + $0x17c] sm:$0xf]
    %v3142 = vld [vmem:[%s16 + $0x180] sm:$0xf]
    %v3143 = vld [vmem:[%s16 + $0x184] sm:$0xf]
    %v3144 = vld [vmem:[%s16 + $0x188] sm:$0xf]
    %v3145 = vld [vmem:[%s16 + $0x18c] sm:$0xf]
    %v3146 = vld [vmem:[%s16 + $0x190] sm:$0xf]
    %v3147 = vld [vmem:[%s16 + $0x194] sm:$0xf]
    %v3148 = vld [vmem:[%s16 + $0x198] sm:$0xf]
    %v3149 = vld [vmem:[%s16 + $0x19c] sm:$0xf]
    %v3150 = vld [vmem:[%s16 + $0x1a0] sm:$0xf]
    %v3151 = vld [vmem:[%s16 + $0x1a4] sm:$0xf]
    %v3152 = vld [vmem:[%s16 + $0x1a8] sm:$0xf]
    %v3153 = vld [vmem:[%s16 + $0x1ac] sm:$0xf]
    %v3154 = vld [vmem:[%s16 + $0x1b0] sm:$0xf]
    %v3155 = vld [vmem:[%s16 + $0x1b4] sm:$0xf]
    %v3156 = vld [vmem:[%s16 + $0x1b8] sm:$0xf]
    %v3157 = vld [vmem:[%s16 + $0x1bc] sm:$0xf]
    %v3158 = vld [vmem:[%s16 + $0x1c0] sm:$0xf]
    %v3159 = vld [vmem:[%s16 + $0x1c4] sm:$0xf]
    %v3160 = vld [vmem:[%s16 + $0x1c8] sm:$0xf]
    %v3161 = vld [vmem:[%s16 + $0x1cc] sm:$0xf]
    %v3162 = vld [vmem:[%s16 + $0x1d0] sm:$0xf]
    %v3163 = vld [vmem:[%s16 + $0x1d4] sm:$0xf]
    %v3164 = vld [vmem:[%s16 + $0x1d8] sm:$0xf]
    %v3165 = vld [vmem:[%s16 + $0x1dc] sm:$0xf]
    %v3166 = vld [vmem:[%s16 + $0x1e0] sm:$0xf]
    %v3167 = vld [vmem:[%s16 + $0x1e4] sm:$0xf]
    %v3168 = vld [vmem:[%s16 + $0x1e8] sm:$0xf]
    %v3169 = vld [vmem:[%s16 + $0x1ec] sm:$0xf]
    %v3170 = vld [vmem:[%s16 + $0x1f0] sm:$0xf]
    %v3171 = vld [vmem:[%s16 + $0x1f4] sm:$0xf]
    %v3172 = vld [vmem:[%s16 + $0x1f8] sm:$0xf]
    %v3173 = vld [vmem:[%s16 + $0x1fc] sm:$0xf]
    %v3174 = vld [vmem:[%s16 + $0x200] sm:$0xf]
    %v3175 = vld [vmem:[%s16 + $0x204] sm:$0xf]
    %v3176 = vld [vmem:[%s16 + $0x208] sm:$0xf]
    %v3177 = vld [vmem:[%s16 + $0x20c] sm:$0xf]
    %v3178 = vld [vmem:[%s16 + $0x210] sm:$0xf]
    %v3179 = vld [vmem:[%s16 + $0x214] sm:$0xf]
    %v3180 = vld [vmem:[%s16 + $0x218] sm:$0xf]
    %v3181 = vld [vmem:[%s16 + $0x21c] sm:$0xf]
    %v3182 = vld [vmem:[%s16 + $0x220] sm:$0xf]
    %v3183 = vld [vmem:[%s16 + $0x224] sm:$0xf]
    %v3184 = vld [vmem:[%s16 + $0x228] sm:$0xf]
    %v3185 = vld [vmem:[%s16 + $0x22c] sm:$0xf]
    %v3186 = vld [vmem:[%s16 + $0x230] sm:$0xf]
    %v3187 = vld [vmem:[%s16 + $0x234] sm:$0xf]
    %v3188 = vld [vmem:[%s16 + $0x238] sm:$0xf]
    %v3189 = vld [vmem:[%s16 + $0x23c] sm:$0xf]
    %v3190 = vld [vmem:[%s16 + $0x240] sm:$0xf]
    %v3191 = vld [vmem:[%s16 + $0x244] sm:$0xf]
    %v3192 = vld [vmem:[%s16 + $0x248] sm:$0xf]
    %v3193 = vld [vmem:[%s16 + $0x24c] sm:$0xf]
    %v3194 = vld [vmem:[%s16 + $0x250] sm:$0xf]
    %v3195 = vld [vmem:[%s16 + $0x254] sm:$0xf]
    %v3196 = vld [vmem:[%s16 + $0x258] sm:$0xf]
    %v3197 = vld [vmem:[%s16 + $0x25c] sm:$0xf]
    %v3198 = vld [vmem:[%s16 + $0x260] sm:$0xf]
    %v3199 = vld [vmem:[%s16 + $0x264] sm:$0xf]
    %v3200 = vld [vmem:[%s16 + $0x268] sm:$0xf]
    %v3201 = vld [vmem:[%s16 + $0x26c] sm:$0xf]
    %v3202 = vld [vmem:[%s16 + $0x270] sm:$0xf]
    %v3203 = vld [vmem:[%s16 + $0x274] sm:$0xf]
    %v3204 = vld [vmem:[%s16 + $0x278] sm:$0xf]
    %v3205 = vld [vmem:[%s16 + $0x27c] sm:$0xf]
    %v3206 = vld [vmem:[%s16 + $0x280] sm:$0xf]
    %v3207 = vld [vmem:[%s16 + $0x284] sm:$0xf]
    %v3208 = vld [vmem:[%s16 + $0x288] sm:$0xf]
    %v3209 = vld [vmem:[%s16 + $0x28c] sm:$0xf]
    %v3210 = vld [vmem:[%s16 + $0x290] sm:$0xf]
    %v3211 = vld [vmem:[%s16 + $0x294] sm:$0xf]
    %v3212 = vld [vmem:[%s16 + $0x298] sm:$0xf]
    %v3213 = vld [vmem:[%s16 + $0x29c] sm:$0xf]
    %v3214 = vld [vmem:[%s16 + $0x2a0] sm:$0xf]
    %v3215 = vld [vmem:[%s16 + $0x2a4] sm:$0xf]
    %v3216 = vld [vmem:[%s16 + $0x2a8] sm:$0xf]
    %v3217 = vld [vmem:[%s16 + $0x2ac] sm:$0xf]
    %v3218 = vld [vmem:[%s16 + $0x2b0] sm:$0xf]
    %v3219 = vld [vmem:[%s16 + $0x2b4] sm:$0xf]
    %v3220 = vld [vmem:[%s16 + $0x2b8] sm:$0xf]
    %v3221 = vld [vmem:[%s16 + $0x2bc] sm:$0xf]
    %v3222 = vld [vmem:[%s16 + $0x2c0] sm:$0xf]
    %v3223 = vld [vmem:[%s16 + $0x2c4] sm:$0xf]
    %v3224 = vld [vmem:[%s16 + $0x2c8] sm:$0xf]
    %v3225 = vld [vmem:[%s16 + $0x2cc] sm:$0xf]
    %v3226 = vld [vmem:[%s16 + $0x2d0] sm:$0xf]
    %v3227 = vld [vmem:[%s16 + $0x2d4] sm:$0xf]
    %v3228 = vld [vmem:[%s16 + $0x2d8] sm:$0xf]
    %v3229 = vld [vmem:[%s16 + $0x2dc] sm:$0xf]
    %v3230 = vld [vmem:[%s16 + $0x2e0] sm:$0xf]
    %v3231 = vld [vmem:[%s16 + $0x2e4] sm:$0xf]
    %v3232 = vld [vmem:[%s16 + $0x2e8] sm:$0xf]
    %v3233 = vld [vmem:[%s16 + $0x2ec] sm:$0xf]
    %v3234 = vld [vmem:[%s16 + $0x2f0] sm:$0xf]
    %v3235 = vld [vmem:[%s16 + $0x2f4] sm:$0xf]
    %v3236 = vld [vmem:[%s16 + $0x2f8] sm:$0xf]
    %v3237 = vld [vmem:[%s16 + $0x2fc] sm:$0xf]
    %v3238 = vld [vmem:[%s16 + $0x300] sm:$0xf]
    %v3239 = vld [vmem:[%s16 + $0x304] sm:$0xf]
    %v3240 = vld [vmem:[%s16 + $0x308] sm:$0xf]
    %v3241 = vld [vmem:[%s16 + $0x30c] sm:$0xf]
    %v3242 = vld [vmem:[%s16 + $0x310] sm:$0xf]
    %v3243 = vld [vmem:[%s16 + $0x314] sm:$0xf]
    %v3244 = vld [vmem:[%s16 + $0x318] sm:$0xf]
    %v3245 = vld [vmem:[%s16 + $0x31c] sm:$0xf]
    %v3246 = vld [vmem:[%s16 + $0x320] sm:$0xf]
    %v3247 = vld [vmem:[%s16 + $0x324] sm:$0xf]
    %v3248 = vld [vmem:[%s16 + $0x328] sm:$0xf]
    %v3249 = vld [vmem:[%s16 + $0x32c] sm:$0xf]
    %v3250 = vld [vmem:[%s16 + $0x330] sm:$0xf]
    %v3251 = vld [vmem:[%s16 + $0x334] sm:$0xf]
    %v3252 = vld [vmem:[%s16 + $0x338] sm:$0xf]
    %v3253 = vld [vmem:[%s16 + $0x33c] sm:$0xf]
    %v3254 = vld [vmem:[%s16 + $0x340] sm:$0xf]
    %v3255 = vld [vmem:[%s16 + $0x344] sm:$0xf]
    %v3256 = vld [vmem:[%s16 + $0x348] sm:$0xf]
    %v3257 = vld [vmem:[%s16 + $0x34c] sm:$0xf]
    %v3258 = vld [vmem:[%s16 + $0x350] sm:$0xf]
    %v3259 = vld [vmem:[%s16 + $0x354] sm:$0xf]
    %v3260 = vld [vmem:[%s16 + $0x358] sm:$0xf]
    %v3261 = vld [vmem:[%s16 + $0x35c] sm:$0xf]
    %v3262 = vld [vmem:[%s16 + $0x360] sm:$0xf]
    %v3263 = vld [vmem:[%s16 + $0x364] sm:$0xf]
    %v3264 = vld [vmem:[%s16 + $0x368] sm:$0xf]
    %v3265 = vld [vmem:[%s16 + $0x36c] sm:$0xf]
    %v3266 = vld [vmem:[%s16 + $0x370] sm:$0xf]
    %v3267 = vld [vmem:[%s16 + $0x374] sm:$0xf]
    %v3268 = vld [vmem:[%s16 + $0x378] sm:$0xf]
    %v3269 = vld [vmem:[%s16 + $0x37c] sm:$0xf]
    %v3270 = vld [vmem:[%s16 + $0x380] sm:$0xf]
    %v3271 = vld [vmem:[%s16 + $0x384] sm:$0xf]
    %v3272 = vld [vmem:[%s16 + $0x388] sm:$0xf]
    %v3273 = vld [vmem:[%s16 + $0x38c] sm:$0xf]
    %v3274 = vld [vmem:[%s16 + $0x390] sm:$0xf]
    %v3275 = vld [vmem:[%s16 + $0x394] sm:$0xf]
    %v3276 = vld [vmem:[%s16 + $0x398] sm:$0xf]
    %v3277 = vld [vmem:[%s16 + $0x39c] sm:$0xf]
    %v3278 = vld [vmem:[%s16 + $0x3a0] sm:$0xf]
    %v3279 = vld [vmem:[%s16 + $0x3a4] sm:$0xf]
    %v3280 = vld [vmem:[%s16 + $0x3a8] sm:$0xf]
    %v3281 = vld [vmem:[%s16 + $0x3ac] sm:$0xf]
    %v3282 = vld [vmem:[%s16 + $0x3b0] sm:$0xf]
    %v3283 = vld [vmem:[%s16 + $0x3b4] sm:$0xf]
    %v3284 = vld [vmem:[%s16 + $0x3b8] sm:$0xf]
    %v3285 = vld [vmem:[%s16 + $0x3bc] sm:$0xf]
    %v3286 = vld [vmem:[%s16 + $0x3c0] sm:$0xf]
    %v3287 = vld [vmem:[%s16 + $0x3c4] sm:$0xf]
    %v3288 = vld [vmem:[%s16 + $0x3c8] sm:$0xf]
    %v3289 = vld [vmem:[%s16 + $0x3cc] sm:$0xf]
    %v3290 = vld [vmem:[%s16 + $0x3d0] sm:$0xf]
    %v3291 = vld [vmem:[%s16 + $0x3d4] sm:$0xf]
    %v3292 = vld [vmem:[%s16 + $0x3d8] sm:$0xf]
    %v3293 = vld [vmem:[%s16 + $0x3dc] sm:$0xf]
    %v3294 = vld [vmem:[%s16 + $0x3e0] sm:$0xf]
    %v3295 = vld [vmem:[%s16 + $0x3e4] sm:$0xf]
    %v3296 = vld [vmem:[%s16 + $0x3e8] sm:$0xf]
    %v3297 = vld [vmem:[%s16 + $0x3ec] sm:$0xf]
    %v3298 = vld [vmem:[%s16 + $0x3f0] sm:$0xf]
    %v3299 = vld [vmem:[%s16 + $0x3f4] sm:$0xf]
    %v3300 = vld [vmem:[%s16 + $0x3f8] sm:$0xf]
    %v3301 = vld [vmem:[%s16 + $0x3fc] sm:$0xf]
    %v3302 = vld [vmem:[%s17] sm:$0x1]
    %v3304 = vlaneseq
    %v3305 = vshrl.u32 %v3304, 7
    %v3306 = vsub.s32 0, %v3305
    %v3307 = vrot.slane %v3302, %v3306
    %v3565 = vunpack.c.l.b16 %v3046
    %v3566 = vunpack.c.l.b16 %v3047
    %v3567 = vunpack.c.l.b16 %v3048
    %v3568 = vunpack.c.l.b16 %v3049
    %v3569 = vunpack.c.l.b16 %v3050
    %v3570 = vunpack.c.l.b16 %v3051
    %v3571 = vunpack.c.l.b16 %v3052
    %v3572 = vunpack.c.l.b16 %v3053
    %v3573 = vunpack.c.l.b16 %v3054
    %v3574 = vunpack.c.l.b16 %v3055
    %v3575 = vunpack.c.l.b16 %v3056
    %v3576 = vunpack.c.l.b16 %v3057
    %v3577 = vunpack.c.l.b16 %v3058
    %v3578 = vunpack.c.l.b16 %v3059
    %v3579 = vunpack.c.l.b16 %v3060
    %v3580 = vunpack.c.l.b16 %v3061
    %v3581 = vunpack.c.l.b16 %v3062
    %v3582 = vunpack.c.l.b16 %v3063
    %v3583 = vunpack.c.l.b16 %v3064
    %v3584 = vunpack.c.l.b16 %v3065
    %v3585 = vunpack.c.l.b16 %v3066
    %v3586 = vunpack.c.l.b16 %v3067
    %v3587 = vunpack.c.l.b16 %v3068
    %v3588 = vunpack.c.l.b16 %v3069
    %v3589 = vunpack.c.l.b16 %v3070
    %v3590 = vunpack.c.l.b16 %v3071
    %v3591 = vunpack.c.l.b16 %v3072
    %v3592 = vunpack.c.l.b16 %v3073
    %v3593 = vunpack.c.l.b16 %v3074
    %v3594 = vunpack.c.l.b16 %v3075
    %v3595 = vunpack.c.l.b16 %v3076
    %v3596 = vunpack.c.l.b16 %v3077
    %v3597 = vunpack.c.l.b16 %v3078
    %v3598 = vunpack.c.l.b16 %v3079
    %v3599 = vunpack.c.l.b16 %v3080
    %v3600 = vunpack.c.l.b16 %v3081
    %v3601 = vunpack.c.l.b16 %v3082
    %v3602 = vunpack.c.l.b16 %v3083
    %v3603 = vunpack.c.l.b16 %v3084
    %v3604 = vunpack.c.l.b16 %v3085
    %v3605 = vunpack.c.l.b16 %v3086
    %v3606 = vunpack.c.l.b16 %v3087
    %v3607 = vunpack.c.l.b16 %v3088
    %v3608 = vunpack.c.l.b16 %v3089
    %v3609 = vunpack.c.l.b16 %v3090
    %v3610 = vunpack.c.l.b16 %v3091
    %v3611 = vunpack.c.l.b16 %v3092
    %v3612 = vunpack.c.l.b16 %v3093
    %v3613 = vunpack.c.l.b16 %v3094
    %v3614 = vunpack.c.l.b16 %v3095
    %v3615 = vunpack.c.l.b16 %v3096
    %v3616 = vunpack.c.l.b16 %v3097
    %v3617 = vunpack.c.l.b16 %v3098
    %v3618 = vunpack.c.l.b16 %v3099
    %v3619 = vunpack.c.l.b16 %v3100
    %v3620 = vunpack.c.l.b16 %v3101
    %v3621 = vunpack.c.l.b16 %v3102
    %v3622 = vunpack.c.l.b16 %v3103
    %v3623 = vunpack.c.l.b16 %v3104
    %v3624 = vunpack.c.l.b16 %v3105
    %v3625 = vunpack.c.l.b16 %v3106
    %v3626 = vunpack.c.l.b16 %v3107
    %v3627 = vunpack.c.l.b16 %v3108
    %v3628 = vunpack.c.l.b16 %v3109
    %v3629 = vunpack.c.l.b16 %v3110
    %v3630 = vunpack.c.l.b16 %v3111
    %v3631 = vunpack.c.l.b16 %v3112
    %v3632 = vunpack.c.l.b16 %v3113
    %v3633 = vunpack.c.l.b16 %v3114
    %v3634 = vunpack.c.l.b16 %v3115
    %v3635 = vunpack.c.l.b16 %v3116
    %v3636 = vunpack.c.l.b16 %v3117
    %v3637 = vunpack.c.l.b16 %v3118
    %v3638 = vunpack.c.l.b16 %v3119
    %v3639 = vunpack.c.l.b16 %v3120
    %v3640 = vunpack.c.l.b16 %v3121
    %v3641 = vunpack.c.l.b16 %v3122
    %v3642 = vunpack.c.l.b16 %v3123
    %v3643 = vunpack.c.l.b16 %v3124
    %v3644 = vunpack.c.l.b16 %v3125
    %v3645 = vunpack.c.l.b16 %v3126
    %v3646 = vunpack.c.l.b16 %v3127
    %v3647 = vunpack.c.l.b16 %v3128
    %v3648 = vunpack.c.l.b16 %v3129
    %v3649 = vunpack.c.l.b16 %v3130
    %v3650 = vunpack.c.l.b16 %v3131
    %v3651 = vunpack.c.l.b16 %v3132
    %v3652 = vunpack.c.l.b16 %v3133
    %v3653 = vunpack.c.l.b16 %v3134
    %v3654 = vunpack.c.l.b16 %v3135
    %v3655 = vunpack.c.l.b16 %v3136
    %v3656 = vunpack.c.l.b16 %v3137
    %v3657 = vunpack.c.l.b16 %v3138
    %v3658 = vunpack.c.l.b16 %v3139
    %v3659 = vunpack.c.l.b16 %v3140
    %v3660 = vunpack.c.l.b16 %v3141
    %v3661 = vunpack.c.l.b16 %v3142
    %v3662 = vunpack.c.l.b16 %v3143
    %v3663 = vunpack.c.l.b16 %v3144
    %v3664 = vunpack.c.l.b16 %v3145
    %v3665 = vunpack.c.l.b16 %v3146
    %v3666 = vunpack.c.l.b16 %v3147
    %v3667 = vunpack.c.l.b16 %v3148
    %v3668 = vunpack.c.l.b16 %v3149
    %v3669 = vunpack.c.l.b16 %v3150
    %v3670 = vunpack.c.l.b16 %v3151
    %v3671 = vunpack.c.l.b16 %v3152
    %v3672 = vunpack.c.l.b16 %v3153
    %v3673 = vunpack.c.l.b16 %v3154
    %v3674 = vunpack.c.l.b16 %v3155
    %v3675 = vunpack.c.l.b16 %v3156
    %v3676 = vunpack.c.l.b16 %v3157
    %v3677 = vunpack.c.l.b16 %v3158
    %v3678 = vunpack.c.l.b16 %v3159
    %v3679 = vunpack.c.l.b16 %v3160
    %v3680 = vunpack.c.l.b16 %v3161
    %v3681 = vunpack.c.l.b16 %v3162
    %v3682 = vunpack.c.l.b16 %v3163
    %v3683 = vunpack.c.l.b16 %v3164
    %v3684 = vunpack.c.l.b16 %v3165
    %v3685 = vunpack.c.l.b16 %v3166
    %v3686 = vunpack.c.l.b16 %v3167
    %v3687 = vunpack.c.l.b16 %v3168
    %v3688 = vunpack.c.l.b16 %v3169
    %v3689 = vunpack.c.l.b16 %v3170
    %v3690 = vunpack.c.l.b16 %v3171
    %v3691 = vunpack.c.l.b16 %v3172
    %v3692 = vunpack.c.l.b16 %v3173
    %v3693 = vunpack.c.l.b16 %v3174
    %v3694 = vunpack.c.l.b16 %v3175
    %v3695 = vunpack.c.l.b16 %v3176
    %v3696 = vunpack.c.l.b16 %v3177
    %v3697 = vunpack.c.l.b16 %v3178
    %v3698 = vunpack.c.l.b16 %v3179
    %v3699 = vunpack.c.l.b16 %v3180
    %v3700 = vunpack.c.l.b16 %v3181
    %v3701 = vunpack.c.l.b16 %v3182
    %v3702 = vunpack.c.l.b16 %v3183
    %v3703 = vunpack.c.l.b16 %v3184
    %v3704 = vunpack.c.l.b16 %v3185
    %v3705 = vunpack.c.l.b16 %v3186
    %v3706 = vunpack.c.l.b16 %v3187
    %v3707 = vunpack.c.l.b16 %v3188
    %v3708 = vunpack.c.l.b16 %v3189
    %v3709 = vunpack.c.l.b16 %v3190
    %v3710 = vunpack.c.l.b16 %v3191
    %v3711 = vunpack.c.l.b16 %v3192
    %v3712 = vunpack.c.l.b16 %v3193
    %v3713 = vunpack.c.l.b16 %v3194
    %v3714 = vunpack.c.l.b16 %v3195
    %v3715 = vunpack.c.l.b16 %v3196
    %v3716 = vunpack.c.l.b16 %v3197
    %v3717 = vunpack.c.l.b16 %v3198
    %v3718 = vunpack.c.l.b16 %v3199
    %v3719 = vunpack.c.l.b16 %v3200
    %v3720 = vunpack.c.l.b16 %v3201
    %v3721 = vunpack.c.l.b16 %v3202
    %v3722 = vunpack.c.l.b16 %v3203
    %v3723 = vunpack.c.l.b16 %v3204
    %v3724 = vunpack.c.l.b16 %v3205
    %v3725 = vunpack.c.l.b16 %v3206
    %v3726 = vunpack.c.l.b16 %v3207
    %v3727 = vunpack.c.l.b16 %v3208
    %v3728 = vunpack.c.l.b16 %v3209
    %v3729 = vunpack.c.l.b16 %v3210
    %v3730 = vunpack.c.l.b16 %v3211
    %v3731 = vunpack.c.l.b16 %v3212
    %v3732 = vunpack.c.l.b16 %v3213
    %v3733 = vunpack.c.l.b16 %v3214
    %v3734 = vunpack.c.l.b16 %v3215
    %v3735 = vunpack.c.l.b16 %v3216
    %v3736 = vunpack.c.l.b16 %v3217
    %v3737 = vunpack.c.l.b16 %v3218
    %v3738 = vunpack.c.l.b16 %v3219
    %v3739 = vunpack.c.l.b16 %v3220
    %v3740 = vunpack.c.l.b16 %v3221
    %v3741 = vunpack.c.l.b16 %v3222
    %v3742 = vunpack.c.l.b16 %v3223
    %v3743 = vunpack.c.l.b16 %v3224
    %v3744 = vunpack.c.l.b16 %v3225
    %v3745 = vunpack.c.l.b16 %v3226
    %v3746 = vunpack.c.l.b16 %v3227
    %v3747 = vunpack.c.l.b16 %v3228
    %v3748 = vunpack.c.l.b16 %v3229
    %v3749 = vunpack.c.l.b16 %v3230
    %v3750 = vunpack.c.l.b16 %v3231
    %v3751 = vunpack.c.l.b16 %v3232
    %v3752 = vunpack.c.l.b16 %v3233
    %v3753 = vunpack.c.l.b16 %v3234
    %v3754 = vunpack.c.l.b16 %v3235
    %v3755 = vunpack.c.l.b16 %v3236
    %v3756 = vunpack.c.l.b16 %v3237
    %v3757 = vunpack.c.l.b16 %v3238
    %v3758 = vunpack.c.l.b16 %v3239
    %v3759 = vunpack.c.l.b16 %v3240
    %v3760 = vunpack.c.l.b16 %v3241
    %v3761 = vunpack.c.l.b16 %v3242
    %v3762 = vunpack.c.l.b16 %v3243
    %v3763 = vunpack.c.l.b16 %v3244
    %v3764 = vunpack.c.l.b16 %v3245
    %v3765 = vunpack.c.l.b16 %v3246
    %v3766 = vunpack.c.l.b16 %v3247
    %v3767 = vunpack.c.l.b16 %v3248
    %v3768 = vunpack.c.l.b16 %v3249
    %v3769 = vunpack.c.l.b16 %v3250
    %v3770 = vunpack.c.l.b16 %v3251
    %v3771 = vunpack.c.l.b16 %v3252
    %v3772 = vunpack.c.l.b16 %v3253
    %v3773 = vunpack.c.l.b16 %v3254
    %v3774 = vunpack.c.l.b16 %v3255
    %v3775 = vunpack.c.l.b16 %v3256
    %v3776 = vunpack.c.l.b16 %v3257
    %v3777 = vunpack.c.l.b16 %v3258
    %v3778 = vunpack.c.l.b16 %v3259
    %v3779 = vunpack.c.l.b16 %v3260
    %v3780 = vunpack.c.l.b16 %v3261
    %v3781 = vunpack.c.l.b16 %v3262
    %v3782 = vunpack.c.l.b16 %v3263
    %v3783 = vunpack.c.l.b16 %v3264
    %v3784 = vunpack.c.l.b16 %v3265
    %v3785 = vunpack.c.l.b16 %v3266
    %v3786 = vunpack.c.l.b16 %v3267
    %v3787 = vunpack.c.l.b16 %v3268
    %v3788 = vunpack.c.l.b16 %v3269
    %v3789 = vunpack.c.l.b16 %v3270
    %v3790 = vunpack.c.l.b16 %v3271
    %v3791 = vunpack.c.l.b16 %v3272
    %v3792 = vunpack.c.l.b16 %v3273
    %v3793 = vunpack.c.l.b16 %v3274
    %v3794 = vunpack.c.l.b16 %v3275
    %v3795 = vunpack.c.l.b16 %v3276
    %v3796 = vunpack.c.l.b16 %v3277
    %v3797 = vunpack.c.l.b16 %v3278
    %v3798 = vunpack.c.l.b16 %v3279
    %v3799 = vunpack.c.l.b16 %v3280
    %v3800 = vunpack.c.l.b16 %v3281
    %v3801 = vunpack.c.l.b16 %v3282
    %v3802 = vunpack.c.l.b16 %v3283
    %v3803 = vunpack.c.l.b16 %v3284
    %v3804 = vunpack.c.l.b16 %v3285
    %v3805 = vunpack.c.l.b16 %v3286
    %v3806 = vunpack.c.l.b16 %v3287
    %v3807 = vunpack.c.l.b16 %v3288
    %v3808 = vunpack.c.l.b16 %v3289
    %v3809 = vunpack.c.l.b16 %v3290
    %v3810 = vunpack.c.l.b16 %v3291
    %v3811 = vunpack.c.l.b16 %v3292
    %v3812 = vunpack.c.l.b16 %v3293
    %v3813 = vunpack.c.l.b16 %v3294
    %v3814 = vunpack.c.l.b16 %v3295
    %v3815 = vunpack.c.l.b16 %v3296
    %v3816 = vunpack.c.l.b16 %v3297
    %v3817 = vunpack.c.l.b16 %v3298
    %v3818 = vunpack.c.l.b16 %v3299
    %v3819 = vunpack.c.l.b16 %v3300
    %v3820 = vunpack.c.l.b16 %v3301
    %v3821 = vpack.c.b16 %v3566, %v3565
    %v3822 = vpack.c.b16 %v3568, %v3567
    %v3823 = vpack.c.b16 %v3570, %v3569
    %v3824 = vpack.c.b16 %v3572, %v3571
    %v3825 = vpack.c.b16 %v3574, %v3573
    %v3826 = vpack.c.b16 %v3576, %v3575
    %v3827 = vpack.c.b16 %v3578, %v3577
    %v3828 = vpack.c.b16 %v3580, %v3579
    %v3829 = vpack.c.b16 %v3582, %v3581
    %v3830 = vpack.c.b16 %v3584, %v3583
    %v3831 = vpack.c.b16 %v3586, %v3585
    %v3832 = vpack.c.b16 %v3588, %v3587
    %v3833 = vpack.c.b16 %v3590, %v3589
    %v3834 = vpack.c.b16 %v3592, %v3591
    %v3835 = vpack.c.b16 %v3594, %v3593
    %v3836 = vpack.c.b16 %v3596, %v3595
    %v3837 = vpack.c.b16 %v3598, %v3597
    %v3838 = vpack.c.b16 %v3600, %v3599
    %v3839 = vpack.c.b16 %v3602, %v3601
    %v3840 = vpack.c.b16 %v3604, %v3603
    %v3841 = vpack.c.b16 %v3606, %v3605
    %v3842 = vpack.c.b16 %v3608, %v3607
    %v3843 = vpack.c.b16 %v3610, %v3609
    %v3844 = vpack.c.b16 %v3612, %v3611
    %v3845 = vpack.c.b16 %v3614, %v3613
    %v3846 = vpack.c.b16 %v3616, %v3615
    %v3847 = vpack.c.b16 %v3618, %v3617
    %v3848 = vpack.c.b16 %v3620, %v3619
    %v3849 = vpack.c.b16 %v3622, %v3621
    %v3850 = vpack.c.b16 %v3624, %v3623
    %v3851 = vpack.c.b16 %v3626, %v3625
    %v3852 = vpack.c.b16 %v3628, %v3627
    %v3853 = vpack.c.b16 %v3630, %v3629
    %v3854 = vpack.c.b16 %v3632, %v3631
    %v3855 = vpack.c.b16 %v3634, %v3633
    %v3856 = vpack.c.b16 %v3636, %v3635
    %v3857 = vpack.c.b16 %v3638, %v3637
    %v3858 = vpack.c.b16 %v3640, %v3639
    %v3859 = vpack.c.b16 %v3642, %v3641
    %v3860 = vpack.c.b16 %v3644, %v3643
    %v3861 = vpack.c.b16 %v3646, %v3645
    %v3862 = vpack.c.b16 %v3648, %v3647
    %v3863 = vpack.c.b16 %v3650, %v3649
    %v3864 = vpack.c.b16 %v3652, %v3651
    %v3865 = vpack.c.b16 %v3654, %v3653
    %v3866 = vpack.c.b16 %v3656, %v3655
    %v3867 = vpack.c.b16 %v3658, %v3657
    %v3868 = vpack.c.b16 %v3660, %v3659
    %v3869 = vpack.c.b16 %v3662, %v3661
    %v3870 = vpack.c.b16 %v3664, %v3663
    %v3871 = vpack.c.b16 %v3666, %v3665
    %v3872 = vpack.c.b16 %v3668, %v3667
    %v3873 = vpack.c.b16 %v3670, %v3669
    %v3874 = vpack.c.b16 %v3672, %v3671
    %v3875 = vpack.c.b16 %v3674, %v3673
    %v3876 = vpack.c.b16 %v3676, %v3675
    %v3877 = vpack.c.b16 %v3678, %v3677
    %v3878 = vpack.c.b16 %v3680, %v3679
    %v3879 = vpack.c.b16 %v3682, %v3681
    %v3880 = vpack.c.b16 %v3684, %v3683
    %v3881 = vpack.c.b16 %v3686, %v3685
    %v3882 = vpack.c.b16 %v3688, %v3687
    %v3883 = vpack.c.b16 %v3690, %v3689
    %v3884 = vpack.c.b16 %v3692, %v3691
    %v3885 = vpack.c.b16 %v3694, %v3693
    %v3886 = vpack.c.b16 %v3696, %v3695
    %v3887 = vpack.c.b16 %v3698, %v3697
    %v3888 = vpack.c.b16 %v3700, %v3699
    %v3889 = vpack.c.b16 %v3702, %v3701
    %v3890 = vpack.c.b16 %v3704, %v3703
    %v3891 = vpack.c.b16 %v3706, %v3705
    %v3892 = vpack.c.b16 %v3708, %v3707
    %v3893 = vpack.c.b16 %v3710, %v3709
    %v3894 = vpack.c.b16 %v3712, %v3711
    %v3895 = vpack.c.b16 %v3714, %v3713
    %v3896 = vpack.c.b16 %v3716, %v3715
    %v3897 = vpack.c.b16 %v3718, %v3717
    %v3898 = vpack.c.b16 %v3720, %v3719
    %v3899 = vpack.c.b16 %v3722, %v3721
    %v3900 = vpack.c.b16 %v3724, %v3723
    %v3901 = vpack.c.b16 %v3726, %v3725
    %v3902 = vpack.c.b16 %v3728, %v3727
    %v3903 = vpack.c.b16 %v3730, %v3729
    %v3904 = vpack.c.b16 %v3732, %v3731
    %v3905 = vpack.c.b16 %v3734, %v3733
    %v3906 = vpack.c.b16 %v3736, %v3735
    %v3907 = vpack.c.b16 %v3738, %v3737
    %v3908 = vpack.c.b16 %v3740, %v3739
    %v3909 = vpack.c.b16 %v3742, %v3741
    %v3910 = vpack.c.b16 %v3744, %v3743
    %v3911 = vpack.c.b16 %v3746, %v3745
    %v3912 = vpack.c.b16 %v3748, %v3747
    %v3913 = vpack.c.b16 %v3750, %v3749
    %v3914 = vpack.c.b16 %v3752, %v3751
    %v3915 = vpack.c.b16 %v3754, %v3753
    %v3916 = vpack.c.b16 %v3756, %v3755
    %v3917 = vpack.c.b16 %v3758, %v3757
    %v3918 = vpack.c.b16 %v3760, %v3759
    %v3919 = vpack.c.b16 %v3762, %v3761
    %v3920 = vpack.c.b16 %v3764, %v3763
    %v3921 = vpack.c.b16 %v3766, %v3765
    %v3922 = vpack.c.b16 %v3768, %v3767
    %v3923 = vpack.c.b16 %v3770, %v3769
    %v3924 = vpack.c.b16 %v3772, %v3771
    %v3925 = vpack.c.b16 %v3774, %v3773
    %v3926 = vpack.c.b16 %v3776, %v3775
    %v3927 = vpack.c.b16 %v3778, %v3777
    %v3928 = vpack.c.b16 %v3780, %v3779
    %v3929 = vpack.c.b16 %v3782, %v3781
    %v3930 = vpack.c.b16 %v3784, %v3783
    %v3931 = vpack.c.b16 %v3786, %v3785
    %v3932 = vpack.c.b16 %v3788, %v3787
    %v3933 = vpack.c.b16 %v3790, %v3789
    %v3934 = vpack.c.b16 %v3792, %v3791
    %v3935 = vpack.c.b16 %v3794, %v3793
    %v3936 = vpack.c.b16 %v3796, %v3795
    %v3937 = vpack.c.b16 %v3798, %v3797
    %v3938 = vpack.c.b16 %v3800, %v3799
    %v3939 = vpack.c.b16 %v3802, %v3801
    %v3940 = vpack.c.b16 %v3804, %v3803
    %v3941 = vpack.c.b16 %v3806, %v3805
    %v3942 = vpack.c.b16 %v3808, %v3807
    %v3943 = vpack.c.b16 %v3810, %v3809
    %v3944 = vpack.c.b16 %v3812, %v3811
    %v3945 = vpack.c.b16 %v3814, %v3813
    %v3946 = vpack.c.b16 %v3816, %v3815
    %v3947 = vpack.c.b16 %v3818, %v3817
    %v3948 = vpack.c.b16 %v3820, %v3819
    %4077 = vmatprep.subr.bf16.mxu0 0
    %4078 = vmatpush1.bf16.msra.mxu0 %v3821
    %4079 = vmatprep.subr.bf16.mxu0 0
    %4080 = vmatpush1.bf16.msra.mxu0 %v3822
    %4081 = vmatprep.subr.bf16.mxu0 0
    %4082 = vmatpush1.bf16.msra.mxu0 %v3823
    %4083 = vmatprep.subr.bf16.mxu0 0
    %4084 = vmatpush1.bf16.msra.mxu0 %v3824
    %4085 = vmatprep.subr.bf16.mxu0 0
    %4086 = vmatpush1.bf16.msra.mxu0 %v3825
    %4087 = vmatprep.subr.bf16.mxu0 0
    %4088 = vmatpush1.bf16.msra.mxu0 %v3826
    %4089 = vmatprep.subr.bf16.mxu0 0
    %4090 = vmatpush1.bf16.msra.mxu0 %v3827
    %4091 = vmatprep.subr.bf16.mxu0 0
    %4092 = vmatpush1.bf16.msra.mxu0 %v3828
    %4093 = vmatprep.subr.bf16.mxu0 0
    %4094 = vmatpush1.bf16.msra.mxu0 %v3829
    %4095 = vmatprep.subr.bf16.mxu0 0
    %4096 = vmatpush1.bf16.msra.mxu0 %v3830
    %4097 = vmatprep.subr.bf16.mxu0 0
    %4098 = vmatpush1.bf16.msra.mxu0 %v3831
    %4099 = vmatprep.subr.bf16.mxu0 0
    %4100 = vmatpush1.bf16.msra.mxu0 %v3832
    %4101 = vmatprep.subr.bf16.mxu0 0
    %4102 = vmatpush1.bf16.msra.mxu0 %v3833
    %4103 = vmatprep.subr.bf16.mxu0 0
    %4104 = vmatpush1.bf16.msra.mxu0 %v3834
    %4105 = vmatprep.subr.bf16.mxu0 0
    %4106 = vmatpush1.bf16.msra.mxu0 %v3835
    %4107 = vmatprep.subr.bf16.mxu0 0
    %4108 = vmatpush1.bf16.msra.mxu0 %v3836
    %4109 = vmatprep.mubr.bf16.mxu0 %v3031
    %4110 = vmatmul.mubr.bf16.gmra.mrb[0].mxu0 %v3030
    %v4111 = vpop.f32.mrb[0].mxu0
    %v4112 = vadd.f32 %v3307, %v4111
    %v4113 = vpop.f32.mrb[0].mxu0
    %v4114 = vpop.f32.mrb[0].mxu0
    %v4115 = vadd.f32 %v3307, %v4114
    %v4116 = vpop.f32.mrb[0].mxu0
    %4117 = vdwg.mxu0
    %4118 = vmatprep.subr.bf16.mxu0 0
    %4119 = vmatpush1.bf16.msra.mxu0 %v3837
    %4120 = vmatprep.subr.bf16.mxu0 0
    %4121 = vmatpush1.bf16.msra.mxu0 %v3838
    %4122 = vmatprep.subr.bf16.mxu0 0
    %4123 = vmatpush1.bf16.msra.mxu0 %v3839
    %4124 = vmatprep.subr.bf16.mxu0 0
    %4125 = vmatpush1.bf16.msra.mxu0 %v3840
    %4126 = vmatprep.subr.bf16.mxu0 0
    %4127 = vmatpush1.bf16.msra.mxu0 %v3841
    %4128 = vmatprep.subr.bf16.mxu0 0
    %4129 = vmatpush1.bf16.msra.mxu0 %v3842
    %4130 = vmatprep.subr.bf16.mxu0 0
    %4131 = vmatpush1.bf16.msra.mxu0 %v3843
    %4132 = vmatprep.subr.bf16.mxu0 0
    %4133 = vmatpush1.bf16.msra.mxu0 %v3844
    %4134 = vmatprep.subr.bf16.mxu0 0
    %4135 = vmatpush1.bf16.msra.mxu0 %v3845
    %4136 = vmatprep.subr.bf16.mxu0 0
    %4137 = vmatpush1.bf16.msra.mxu0 %v3846
    %4138 = vmatprep.subr.bf16.mxu0 0
    %4139 = vmatpush1.bf16.msra.mxu0 %v3847
    %4140 = vmatprep.subr.bf16.mxu0 0
    %4141 = vmatpush1.bf16.msra.mxu0 %v3848
    %4142 = vmatprep.subr.bf16.mxu0 0
    %4143 = vmatpush1.bf16.msra.mxu0 %v3849
    %4144 = vmatprep.subr.bf16.mxu0 0
    %4145 = vmatpush1.bf16.msra.mxu0 %v3850
    %4146 = vmatprep.subr.bf16.mxu0 0
    %4147 = vmatpush1.bf16.msra.mxu0 %v3851
    %4148 = vmatprep.subr.bf16.mxu0 0
    %4149 = vmatpush1.bf16.msra.mxu0 %v3852
    %4150 = vmatprep.mubr.bf16.mxu0 %v3033
    %4151 = vmatmul.mubr.bf16.gmra.mrb[0].mxu0 %v3032
    %v4152 = vpop.f32.mrb[0].mxu0
    %v4153 = vadd.f32 %v4112, %v4152
    %v4154 = vpop.f32.mrb[0].mxu0
    %v4155 = vpop.f32.mrb[0].mxu0
    %v4156 = vadd.f32 %v4115, %v4155
    %v4157 = vpop.f32.mrb[0].mxu0
    %4158 = vdwg.mxu0
    %4159 = vmatprep.subr.bf16.mxu0 0
    %4160 = vmatpush1.bf16.msra.mxu0 %v3853
    %4161 = vmatprep.subr.bf16.mxu0 0
    %4162 = vmatpush1.bf16.msra.mxu0 %v3854
    %4163 = vmatprep.subr.bf16.mxu0 0
    %4164 = vmatpush1.bf16.msra.mxu0 %v3855
    %4165 = vmatprep.subr.bf16.mxu0 0
    %4166 = vmatpush1.bf16.msra.mxu0 %v3856
    %4167 = vmatprep.subr.bf16.mxu0 0
    %4168 = vmatpush1.bf16.msra.mxu0 %v3857
    %4169 = vmatprep.subr.bf16.mxu0 0
    %4170 = vmatpush1.bf16.msra.mxu0 %v3858
    %4171 = vmatprep.subr.bf16.mxu0 0
    %4172 = vmatpush1.bf16.msra.mxu0 %v3859
    %4173 = vmatprep.subr.bf16.mxu0 0
    %4174 = vmatpush1.bf16.msra.mxu0 %v3860
    %4175 = vmatprep.subr.bf16.mxu0 0
    %4176 = vmatpush1.bf16.msra.mxu0 %v3861
    %4177 = vmatprep.subr.bf16.mxu0 0
    %4178 = vmatpush1.bf16.msra.mxu0 %v3862
    %4179 = vmatprep.subr.bf16.mxu0 0
    %4180 = vmatpush1.bf16.msra.mxu0 %v3863
    %4181 = vmatprep.subr.bf16.mxu0 0
    %4182 = vmatpush1.bf16.msra.mxu0 %v3864
    %4183 = vmatprep.subr.bf16.mxu0 0
    %4184 = vmatpush1.bf16.msra.mxu0 %v3865
    %4185 = vmatprep.subr.bf16.mxu0 0
    %4186 = vmatpush1.bf16.msra.mxu0 %v3866
    %4187 = vmatprep.subr.bf16.mxu0 0
    %4188 = vmatpush1.bf16.msra.mxu0 %v3867
    %4189 = vmatprep.subr.bf16.mxu0 0
    %4190 = vmatpush1.bf16.msra.mxu0 %v3868
    %4191 = vmatprep.mubr.bf16.mxu0 %v3035
    %4192 = vmatmul.mubr.bf16.gmra.mrb[0].mxu0 %v3034
    %v4193 = vpop.f32.mrb[0].mxu0
    %v4194 = vadd.f32 %v4153, %v4193
    %v4195 = vpop.f32.mrb[0].mxu0
    %v4196 = vpop.f32.mrb[0].mxu0
    %v4197 = vadd.f32 %v4156, %v4196
    %v4198 = vpop.f32.mrb[0].mxu0
    %4199 = vdwg.mxu0
    %4200 = vmatprep.subr.bf16.mxu0 0
    %4201 = vmatpush1.bf16.msra.mxu0 %v3869
    %4202 = vmatprep.subr.bf16.mxu0 0
    %4203 = vmatpush1.bf16.msra.mxu0 %v3870
    %4204 = vmatprep.subr.bf16.mxu0 0
    %4205 = vmatpush1.bf16.msra.mxu0 %v3871
    %4206 = vmatprep.subr.bf16.mxu0 0
    %4207 = vmatpush1.bf16.msra.mxu0 %v3872
    %4208 = vmatprep.subr.bf16.mxu0 0
    %4209 = vmatpush1.bf16.msra.mxu0 %v3873
    %4210 = vmatprep.subr.bf16.mxu0 0
    %4211 = vmatpush1.bf16.msra.mxu0 %v3874
    %4212 = vmatprep.subr.bf16.mxu0 0
    %4213 = vmatpush1.bf16.msra.mxu0 %v3875
    %4214 = vmatprep.subr.bf16.mxu0 0
    %4215 = vmatpush1.bf16.msra.mxu0 %v3876
    %4216 = vmatprep.subr.bf16.mxu0 0
    %4217 = vmatpush1.bf16.msra.mxu0 %v3877
    %4218 = vmatprep.subr.bf16.mxu0 0
    %4219 = vmatpush1.bf16.msra.mxu0 %v3878
    %4220 = vmatprep.subr.bf16.mxu0 0
    %4221 = vmatpush1.bf16.msra.mxu0 %v3879
    %4222 = vmatprep.subr.bf16.mxu0 0
    %4223 = vmatpush1.bf16.msra.mxu0 %v3880
    %4224 = vmatprep.subr.bf16.mxu0 0
    %4225 = vmatpush1.bf16.msra.mxu0 %v3881
    %4226 = vmatprep.subr.bf16.mxu0 0
    %4227 = vmatpush1.bf16.msra.mxu0 %v3882
    %4228 = vmatprep.subr.bf16.mxu0 0
    %4229 = vmatpush1.bf16.msra.mxu0 %v3883
    %4230 = vmatprep.subr.bf16.mxu0 0
    %4231 = vmatpush1.bf16.msra.mxu0 %v3884
    %4232 = vmatprep.mubr.bf16.mxu0 %v3037
    %4233 = vmatmul.mubr.bf16.gmra.mrb[0].mxu0 %v3036
    %v4234 = vpop.f32.mrb[0].mxu0
    %v4235 = vadd.f32 %v4194, %v4234
    %v4236 = vpop.f32.mrb[0].mxu0
    %v4237 = vpop.f32.mrb[0].mxu0
    %v4238 = vadd.f32 %v4197, %v4237
    %v4239 = vpop.f32.mrb[0].mxu0
    %4240 = vdwg.mxu0
    %4241 = vmatprep.subr.bf16.mxu0 0
    %4242 = vmatpush1.bf16.msra.mxu0 %v3885
    %4243 = vmatprep.subr.bf16.mxu0 0
    %4244 = vmatpush1.bf16.msra.mxu0 %v3886
    %4245 = vmatprep.subr.bf16.mxu0 0
    %4246 = vmatpush1.bf16.msra.mxu0 %v3887
    %4247 = vmatprep.subr.bf16.mxu0 0
    %4248 = vmatpush1.bf16.msra.mxu0 %v3888
    %4249 = vmatprep.subr.bf16.mxu0 0
    %4250 = vmatpush1.bf16.msra.mxu0 %v3889
    %4251 = vmatprep.subr.bf16.mxu0 0
    %4252 = vmatpush1.bf16.msra.mxu0 %v3890
    %4253 = vmatprep.subr.bf16.mxu0 0
    %4254 = vmatpush1.bf16.msra.mxu0 %v3891
    %4255 = vmatprep.subr.bf16.mxu0 0
    %4256 = vmatpush1.bf16.msra.mxu0 %v3892
    %4257 = vmatprep.subr.bf16.mxu0 0
    %4258 = vmatpush1.bf16.msra.mxu0 %v3893
    %4259 = vmatprep.subr.bf16.mxu0 0
    %4260 = vmatpush1.bf16.msra.mxu0 %v3894
    %4261 = vmatprep.subr.bf16.mxu0 0
    %4262 = vmatpush1.bf16.msra.mxu0 %v3895
    %4263 = vmatprep.subr.bf16.mxu0 0
    %4264 = vmatpush1.bf16.msra.mxu0 %v3896
    %4265 = vmatprep.subr.bf16.mxu0 0
    %4266 = vmatpush1.bf16.msra.mxu0 %v3897
    %4267 = vmatprep.subr.bf16.mxu0 0
    %4268 = vmatpush1.bf16.msra.mxu0 %v3898
    %4269 = vmatprep.subr.bf16.mxu0 0
    %4270 = vmatpush1.bf16.msra.mxu0 %v3899
    %4271 = vmatprep.subr.bf16.mxu0 0
    %4272 = vmatpush1.bf16.msra.mxu0 %v3900
    %4273 = vmatprep.mubr.bf16.mxu0 %v3039
    %4274 = vmatmul.mubr.bf16.gmra.mrb[0].mxu0 %v3038
    %v4275 = vpop.f32.mrb[0].mxu0
    %v4276 = vadd.f32 %v4235, %v4275
    %v4277 = vpop.f32.mrb[0].mxu0
    %v4278 = vpop.f32.mrb[0].mxu0
    %v4279 = vadd.f32 %v4238, %v4278
    %v4280 = vpop.f32.mrb[0].mxu0
    %4281 = vdwg.mxu0
    %4282 = vmatprep.subr.bf16.mxu0 0
    %4283 = vmatpush1.bf16.msra.mxu0 %v3901
    %4284 = vmatprep.subr.bf16.mxu0 0
    %4285 = vmatpush1.bf16.msra.mxu0 %v3902
    %4286 = vmatprep.subr.bf16.mxu0 0
    %4287 = vmatpush1.bf16.msra.mxu0 %v3903
    %4288 = vmatprep.subr.bf16.mxu0 0
    %4289 = vmatpush1.bf16.msra.mxu0 %v3904
    %4290 = vmatprep.subr.bf16.mxu0 0
    %4291 = vmatpush1.bf16.msra.mxu0 %v3905
    %4292 = vmatprep.subr.bf16.mxu0 0
    %4293 = vmatpush1.bf16.msra.mxu0 %v3906
    %4294 = vmatprep.subr.bf16.mxu0 0
    %4295 = vmatpush1.bf16.msra.mxu0 %v3907
    %4296 = vmatprep.subr.bf16.mxu0 0
    %4297 = vmatpush1.bf16.msra.mxu0 %v3908
    %4298 = vmatprep.subr.bf16.mxu0 0
    %4299 = vmatpush1.bf16.msra.mxu0 %v3909
    %4300 = vmatprep.subr.bf16.mxu0 0
    %4301 = vmatpush1.bf16.msra.mxu0 %v3910
    %4302 = vmatprep.subr.bf16.mxu0 0
    %4303 = vmatpush1.bf16.msra.mxu0 %v3911
    %4304 = vmatprep.subr.bf16.mxu0 0
    %4305 = vmatpush1.bf16.msra.mxu0 %v3912
    %4306 = vmatprep.subr.bf16.mxu0 0
    %4307 = vmatpush1.bf16.msra.mxu0 %v3913
    %4308 = vmatprep.subr.bf16.mxu0 0
    %4309 = vmatpush1.bf16.msra.mxu0 %v3914
    %4310 = vmatprep.subr.bf16.mxu0 0
    %4311 = vmatpush1.bf16.msra.mxu0 %v3915
    %4312 = vmatprep.subr.bf16.mxu0 0
    %4313 = vmatpush1.bf16.msra.mxu0 %v3916
    %4314 = vmatprep.mubr.bf16.mxu0 %v3041
    %4315 = vmatmul.mubr.bf16.gmra.mrb[0].mxu0 %v3040
    %v4316 = vpop.f32.mrb[0].mxu0
    %v4317 = vadd.f32 %v4276, %v4316
    %v4318 = vpop.f32.mrb[0].mxu0
    %v4319 = vpop.f32.mrb[0].mxu0
    %v4320 = vadd.f32 %v4279, %v4319
    %v4321 = vpop.f32.mrb[0].mxu0
    %4322 = vdwg.mxu0
    %4323 = vmatprep.subr.bf16.mxu0 0
    %4324 = vmatpush1.bf16.msra.mxu0 %v3917
    %4325 = vmatprep.subr.bf16.mxu0 0
    %4326 = vmatpush1.bf16.msra.mxu0 %v3918
    %4327 = vmatprep.subr.bf16.mxu0 0
    %4328 = vmatpush1.bf16.msra.mxu0 %v3919
    %4329 = vmatprep.subr.bf16.mxu0 0
    %4330 = vmatpush1.bf16.msra.mxu0 %v3920
    %4331 = vmatprep.subr.bf16.mxu0 0
    %4332 = vmatpush1.bf16.msra.mxu0 %v3921
    %4333 = vmatprep.subr.bf16.mxu0 0
    %4334 = vmatpush1.bf16.msra.mxu0 %v3922
    %4335 = vmatprep.subr.bf16.mxu0 0
    %4336 = vmatpush1.bf16.msra.mxu0 %v3923
    %4337 = vmatprep.subr.bf16.mxu0 0
    %4338 = vmatpush1.bf16.msra.mxu0 %v3924
    %4339 = vmatprep.subr.bf16.mxu0 0
    %4340 = vmatpush1.bf16.msra.mxu0 %v3925
    %4341 = vmatprep.subr.bf16.mxu0 0
    %4342 = vmatpush1.bf16.msra.mxu0 %v3926
    %4343 = vmatprep.subr.bf16.mxu0 0
    %4344 = vmatpush1.bf16.msra.mxu0 %v3927
    %4345 = vmatprep.subr.bf16.mxu0 0
    %4346 = vmatpush1.bf16.msra.mxu0 %v3928
    %4347 = vmatprep.subr.bf16.mxu0 0
    %4348 = vmatpush1.bf16.msra.mxu0 %v3929
    %4349 = vmatprep.subr.bf16.mxu0 0
    %4350 = vmatpush1.bf16.msra.mxu0 %v3930
    %4351 = vmatprep.subr.bf16.mxu0 0
    %4352 = vmatpush1.bf16.msra.mxu0 %v3931
    %4353 = vmatprep.subr.bf16.mxu0 0
    %4354 = vmatpush1.bf16.msra.mxu0 %v3932
    %4355 = vmatprep.mubr.bf16.mxu0 %v3043
    %4356 = vmatmul.mubr.bf16.gmra.mrb[0].mxu0 %v3042
    %v4357 = vpop.f32.mrb[0].mxu0
    %v4358 = vadd.f32 %v4317, %v4357
    %v4359 = vpop.f32.mrb[0].mxu0
    %v4360 = vpop.f32.mrb[0].mxu0
    %v4361 = vadd.f32 %v4320, %v4360
    %v4362 = vpop.f32.mrb[0].mxu0
    %4363 = vdwg.mxu0
    %4364 = vmatprep.subr.bf16.mxu0 0
    %4365 = vmatpush1.bf16.msra.mxu0 %v3933
    %4366 = vmatprep.subr.bf16.mxu0 0
    %4367 = vmatpush1.bf16.msra.mxu0 %v3934
    %4368 = vmatprep.subr.bf16.mxu0 0
    %4369 = vmatpush1.bf16.msra.mxu0 %v3935
    %4370 = vmatprep.subr.bf16.mxu0 0
    %4371 = vmatpush1.bf16.msra.mxu0 %v3936
    %4372 = vmatprep.subr.bf16.mxu0 0
    %4373 = vmatpush1.bf16.msra.mxu0 %v3937
    %4374 = vmatprep.subr.bf16.mxu0 0
    %4375 = vmatpush1.bf16.msra.mxu0 %v3938
    %4376 = vmatprep.subr.bf16.mxu0 0
    %4377 = vmatpush1.bf16.msra.mxu0 %v3939
    %4378 = vmatprep.subr.bf16.mxu0 0
    %4379 = vmatpush1.bf16.msra.mxu0 %v3940
    %4380 = vmatprep.subr.bf16.mxu0 0
    %4381 = vmatpush1.bf16.msra.mxu0 %v3941
    %4382 = vmatprep.subr.bf16.mxu0 0
    %4383 = vmatpush1.bf16.msra.mxu0 %v3942
    %4384 = vmatprep.subr.bf16.mxu0 0
    %4385 = vmatpush1.bf16.msra.mxu0 %v3943
    %4386 = vmatprep.subr.bf16.mxu0 0
    %4387 = vmatpush1.bf16.msra.mxu0 %v3944
    %4388 = vmatprep.subr.bf16.mxu0 0
    %4389 = vmatpush1.bf16.msra.mxu0 %v3945
    %4390 = vmatprep.subr.bf16.mxu0 0
    %4391 = vmatpush1.bf16.msra.mxu0 %v3946
    %4392 = vmatprep.subr.bf16.mxu0 0
    %4393 = vmatpush1.bf16.msra.mxu0 %v3947
    %4394 = vmatprep.subr.bf16.mxu0 0
    %4395 = vmatpush1.bf16.msra.mxu0 %v3948
    %4396 = vmatprep.mubr.bf16.mxu0 %v3045
    %4397 = vmatmul.mubr.bf16.gmra.mrb[0].mxu0 %v3044
    %v4398 = vpop.f32.mrb[0].mxu0
    %v4399 = vadd.f32 %v4358, %v4398
    %v4400 = vpop.f32.mrb[0].mxu0
    %v4401 = vpop.f32.mrb[0].mxu0
    %v4402 = vadd.f32 %v4361, %v4401
    %v4403 = vpop.f32.mrb[0].mxu0
    %4404 = vdwg.mxu0
    %v4405 = vadd.f32 %v2372, %v4399
    %v4406 = vadd.f32 %v2373, %v4402
    %v4407 = vsel %vm179, %v4405, 0.0
    %4408 = vadd.xlane.f32.xlu0 %v4407
    %v4409 = vpop.xlane.xlu0 %4408
    %v4410 = vsel %vm179, %v4406, 0.0
    %4411 = vadd.xlane.f32.xlu0 %v4410
    %v4412 = vpop.xlane.xlu0 %4411
    %v4413 = vmul.f32 %v4409, %v2335
    %v4414 = vmul.f32 %v4412, %v2335
    %v4415 = vsub.f32 %v4405, %v4413
    %v4416 = vsub.f32 %v4406, %v4414
    %v4417 = vmul.f32 %v4415, %v4415
    %v4418 = vmul.f32 %v4416, %v4416
    %v4419 = vsel %vm179, %v4417, 0.0
    %4420 = vadd.xlane.f32.xlu0 %v4419
    %v4421 = vpop.xlane.xlu0 %4420
    %v4422 = vsel %vm179, %v4418, 0.0
    %4423 = vadd.xlane.f32.xlu0 %v4422
    %v4424 = vpop.xlane.xlu0 %4423
    %v4425 = vmul.f32 %v4421, %v2335
    %v4426 = vmul.f32 %v4424, %v2335
    %v4427 = vadd.f32 %v4425, 1e-05
    %v4428 = vadd.f32 %v4426, 1e-05
    %v4429 = vrsqrt.pop %v4427
    %v4430 = vrsqrt.pop %v4428
    %v4431 = vmul.f32 %v4415, %v4429
    %v4432 = vmul.f32 %v4416, %v4430
    %v4433 = vld [vmem:[%s18] sm:$0x1]
    %v4435 = vlaneseq
    %v4436 = vshrl.u32 %v4435, 7
    %v4437 = vsub.s32 0, %v4436
    %v4438 = vrot.slane %v4433, %v4437
    %v4440 = vmul.f32 %v4431, %v4438
    %v4441 = vmul.f32 %v4432, %v4438
    %v4442 = vld [vmem:[%s19] sm:$0x1]
    %v4444 = vlaneseq
    %v4445 = vshrl.u32 %v4444, 7
    %v4446 = vsub.s32 0, %v4445
    %v4447 = vrot.slane %v4442, %v4446
    %v4449 = vadd.f32 %v4440, %v4447
    %v4450 = vadd.f32 %v4441, %v4447
    %v4451 = vld [vmem:[%s20] sm:$0xff]
    %v4452 = vld [vmem:[%s20 + $0x8] sm:$0xff]
    %v4453 = vld [vmem:[%s20 + $0x10] sm:$0xff]
    %v4454 = vld [vmem:[%s20 + $0x18] sm:$0xff]
    %v4455 = vld [vmem:[%s21] sm:$0x1]
    %v4457 = vlaneseq
    %v4458 = vshrl.u32 %v4457, 7
    %v4459 = vsub.s32 0, %v4458
    %v4460 = vrot.slane %v4455, %v4459
    %v4463 = vsel %vm179, %v4449, 0
    %v4466 = vsel %vm179, %v4450, 0
    %4468 = vmatprep.subr.mxu0 0.0
    %4469 = vmatpush1.msra.mxu0 %v4451
    %4470 = vmatprep.subr.mxu0 0.0
    %4471 = vmatpush1.msra.mxu0 %v4452
    %4472 = vmatprep.subr.mxu0 0.0
    %4473 = vmatpush1.msra.mxu0 %v4453
    %4474 = vmatprep.subr.mxu0 0.0
    %4475 = vmatpush1.msra.mxu0 %v4454
    %4476 = vmatprep.subr.mxu0 0.0
    %4477 = vmatpush1.msra.mxu0 0.0
    %4478 = vmatprep.subr.mxu0 0.0
    %4479 = vmatpush1.msra.mxu0 0.0
    %4480 = vmatprep.subr.mxu0 0.0
    %4481 = vmatpush1.msra.mxu0 0.0
    %4482 = vmatprep.subr.mxu0 0.0
    %4483 = vmatpush1.msra.mxu0 0.0
    %4484 = vmatprep.subr.mxu0 0.0
    %4485 = vmatpush1.msra.mxu0 0.0
    %4486 = vmatprep.subr.mxu0 0.0
    %4487 = vmatpush1.msra.mxu0 0.0
    %4488 = vmatprep.subr.mxu0 0.0
    %4489 = vmatpush1.msra.mxu0 0.0
    %4490 = vmatprep.subr.mxu0 0.0
    %4491 = vmatpush1.msra.mxu0 0.0
    %4492 = vmatprep.subr.mxu0 0.0
    %4493 = vmatpush1.msra.mxu0 0.0
    %4494 = vmatprep.subr.mxu0 0.0
    %4495 = vmatpush1.msra.mxu0 0.0
    %4496 = vmatprep.subr.mxu0 0.0
    %4497 = vmatpush1.msra.mxu0 0.0
    %4498 = vmatprep.subr.mxu0 0.0
    %4499 = vmatpush1.msra.mxu0 0.0
    %4500 = vmatprep.subr.mxu0 0.0
    %4501 = vmatpush1.msra.mxu0 0.0
    %4502 = vmatprep.subr.mxu0 0.0
    %4503 = vmatpush1.msra.mxu0 0.0
    %4504 = vmatprep.subr.mxu0 0.0
    %4505 = vmatpush1.msra.mxu0 0.0
    %4506 = vmatprep.subr.mxu0 0.0
    %4507 = vmatpush1.msra.mxu0 0.0
    %4508 = vmatprep.subr.mxu0 0.0
    %4509 = vmatpush1.msra.mxu0 0.0
    %4510 = vmatprep.subr.mxu0 0.0
    %4511 = vmatpush1.msra.mxu0 0.0
    %4512 = vmatprep.subr.mxu0 0.0
    %4513 = vmatpush1.msra.mxu0 0.0
    %4514 = vmatprep.subr.mxu0 0.0
    %4515 = vmatpush1.msra.mxu0 0.0
    %4516 = vmatprep.subr.mxu0 0.0
    %4517 = vmatpush1.msra.mxu0 0.0
    %4518 = vmatprep.subr.mxu0 0.0
    %4519 = vmatpush1.msra.mxu0 0.0
    %4520 = vmatprep.subr.mxu0 0.0
    %4521 = vmatpush1.msra.mxu0 0.0
    %4522 = vmatprep.subr.mxu0 0.0
    %4523 = vmatpush1.msra.mxu0 0.0
    %4524 = vmatprep.subr.mxu0 0.0
    %4525 = vmatpush1.msra.mxu0 0.0
    %4526 = vmatprep.subr.mxu0 0.0
    %4527 = vmatpush1.msra.mxu0 0.0
    %4528 = vmatprep.subr.mxu0 0.0
    %4529 = vmatpush1.msra.mxu0 0.0
    %4530 = vmatprep.subr.mxu0 0.0
    %4531 = vmatpush1.msra.mxu0 0.0
    %4532 = vmatprep.mubr.f32.mxu0 0.0
    %4533 = vmatmul.mubr.f32.gmra.mrb[0].mxu0 %v4463
    %v4534 = vpop.f32.mrb[0].mxu0
    %v4535 = vadd.f32 %v4460, %v4534
    %v4536 = vpop.f32.mrb[0].mxu0
    %4537 = vmatprep.mubr.f32.mxu0 0.0
    %4538 = vmatmul.mubr.f32.gmra.mrb[0].mxu0 %v4466
    %v4539 = vpop.f32.mrb[0].mxu0
    %v4540 = vadd.f32 %v4460, %v4539
    %v4541 = vpop.f32.mrb[0].mxu0
    %4542 = vdwg.mxu0
    %4543 = vst [vmem:[#allocation2] sm:$0xff] %v4535
    %4544 = vst [vmem:[#allocation2 + $0x8] sm:$0xff] %v4540
    // Predicated region
    $region90: #{tpu_custom_call.1} parent=1 // pred_check
      _
    $region91: #{tpu_custom_call.1} parent=1 // pred_check_branch
      %4546 = sbr.rel (0) target = $region93
    $region92: #{tpu_custom_call.1} parent=1 // pred_region
      %s4548 = ssub.s32 256, 256
      %4549 = vsyncadd [#allocation3], %s4548
      %s4550 = sshll.u32 [#allocation2], 4
      %s4551 = int_to_ptr.vmem [resolvable:$true] %s4550
      %4556 = dma.vmem_to_hbm [thread:$0]  %s4551, 256, %s22, [#allocation3], 128, 128, 8
    $region93: #{tpu_custom_call.1} parent=1 // pred_fallthru
      _
    // Predicated region
    $region94: #{tpu_custom_call.1} parent=1 // pred_check
      _
    $region95: #{tpu_custom_call.1} parent=1 // pred_check_branch
      %4558 = sbr.rel (0) target = $region97
    $region96: #{tpu_custom_call.1} parent=1 // pred_region
      %4559 = dma.done [#allocation3], 256
    $region97: #{tpu_custom_call.1} parent=1 // pred_fallthru
      _
    %4560 = vsyncpa [#allocation3], 1

</llo_original>
